<compile_context>
chip_gen: v7x
topology: tpu7x:2x2x1
jax: 0.10.0
libtpu: 0.0.40
codegen_flags: <defaults>
</compile_context>

<pallas_src>
import jax
import jax.numpy as jnp
from jax.experimental import pallas as pl
from jax.experimental.pallas import tpu as pltpu

KSIZE = 5
POOL = 2
BN_EPS = 1e-5

_VMEM = pl.BlockSpec(memory_space=pltpu.MemorySpace.VMEM)
_COMPILER_PARAMS = pltpu.CompilerParams(vmem_limit_bytes=64 * 1024 * 1024)


def _conv_relu_bn_pool(patches, w, b, gamma, beta):
    """One bf16 matmul + ReLU + batch-stat BatchNorm + 2x2 average pool.

    `patches`: (4*rows, K*K*Cin) bf16 with the 2x2 pool offset as the leading
    row block (so all N*OH*OW conv outputs appear exactly once -> correct
    full-batch BN statistics).  Returns (rows, Cout) f32, rows keeping the
    per-block ordering chosen by the caller.
    """
    y = jnp.dot(patches, w, preferred_element_type=jnp.float32)   # single MXU push
    y = jnp.maximum(y + b, 0.0)                                   # Conv bias + ReLU (f32)
    total = y.shape[0]                                            # = N * OH * OW
    rows = total // (POOL * POOL)
    inv_n = 1.0 / float(total)
    mean = jnp.sum(y, axis=0, keepdims=True) * inv_n              # one XLU reduction
    var = jnp.sum(y * y, axis=0, keepdims=True) * inv_n - mean * mean
    var = jnp.maximum(var, 0.0)                                   # guard vs. cancellation
    scale = jax.lax.rsqrt(var + BN_EPS) * gamma                   # EUP rsqrt
    shift = beta - mean * scale
    pooled = (y[0 * rows:1 * rows] + y[1 * rows:2 * rows] +
              y[2 * rows:3 * rows] + y[3 * rows:4 * rows]) * 0.25  # AvgPool2d(2,2)
    return pooled * scale + shift                                  # BN affine after pool


def _conv_block_kernel(p_ref, w_ref, b_ref, gamma_ref, beta_ref, o_ref):
    """Conv2d -> ReLU -> BatchNorm2d (batch stats) -> AvgPool2d(2,2)."""
    o_ref[...] = _conv_relu_bn_pool(p_ref[...], w_ref[...], b_ref[...],
                                    gamma_ref[...], beta_ref[...])


def _tail_kernel(p_ref, w_ref, b_ref, gamma_ref, beta_ref,
                 w1_ref, b1_ref, w2_ref, b2_ref, w3_ref, b3_ref, o_ref):
    """Conv block 2 + flatten + (Linear,ReLU)x2 + Linear + Softmax, fused."""
    n = o_ref.shape[0]
    a2 = _conv_relu_bn_pool(p_ref[...], w_ref[...], b_ref[...],
                            gamma_ref[...], beta_ref[...])       # (S*n, 16), rows (s, n)
    a2 = a2.astype(jnp.bfloat16)

    s_count = w1_ref.shape[0]                                    # 25 spatial positions
    h = jnp.zeros((n, w1_ref.shape[2]), jnp.float32)
    for s in range(s_count):                                     # flatten folded into fc1
        h = h + jnp.dot(a2[s * n:(s + 1) * n, :], w1_ref[s],
                        preferred_element_type=jnp.float32)
    h = jnp.maximum(h + b1_ref[...], 0.0)                        # Linear(400,120) + ReLU
    h = jnp.dot(h.astype(jnp.bfloat16), w2_ref[...],
                preferred_element_type=jnp.float32) + b2_ref[...]
    h = jnp.maximum(h, 0.0)                                      # Linear(120,84) + ReLU
    logits = jnp.dot(h.astype(jnp.bfloat16), w3_ref[...],
                     preferred_element_type=jnp.float32) + b3_ref[...]
    m = jnp.max(logits, axis=-1, keepdims=True)                  # Softmax(dim=1), f32
    e = jnp.exp(logits - m)
    o_ref[...] = e / jnp.sum(e, axis=-1, keepdims=True)


def _run_conv_block(patches, w, b, gamma, beta):
    rows = patches.shape[0] // (POOL * POOL)
    cout = w.shape[1]
    return pl.pallas_call(
        _conv_block_kernel,
        out_shape=jax.ShapeDtypeStruct((rows, cout), jnp.float32),
        in_specs=[_VMEM] * 5,
        out_specs=_VMEM,
        compiler_params=_COMPILER_PARAMS,
    )(patches, w, b, gamma, beta)


def _run_tail(n, patches, w, b, gamma, beta, w1, b1, w2, b2, w3, b3):
    return pl.pallas_call(
        _tail_kernel,
        out_shape=jax.ShapeDtypeStruct((n, w3.shape[1]), jnp.float32),
        in_specs=[_VMEM] * 11,
        out_specs=_VMEM,
        compiler_params=_COMPILER_PARAMS,
    )(patches, w, b, gamma, beta, w1, b1, w2, b2, w3, b3)


def _im2col_pooled(x_nhwc, spatial_major):
    """One patch matrix (4*rows, K*K*C) for a fused VALID-conv + 2x2 avg pool.

    The four leading row blocks enumerate the (dh, dw) position inside each
    pooling window; inside each block rows are ordered (n, ph, pw) when
    spatial_major is False, else (ph, pw, n).  Columns are ordered (kh, kw, c)
    to match the flattened PyTorch conv weight.
    """
    # TODO(synk): build these shifted views in-kernel from a VMEM-resident NHWC
    # tile (static slices) to remove the remaining im2col HBM round-trip.
    n, h, w, c = x_nhwc.shape
    oh, ow = h - KSIZE + 1, w - KSIZE + 1
    ph, pw = oh // POOL, ow // POOL
    offs = []
    for dh in range(POOL):
        for dw in range(POOL):
            cols = []
            for kh in range(KSIZE):
                for kw in range(KSIZE):
                    r0, c0 = dh + kh, dw + kw
                    sl = x_nhwc[:, r0:r0 + POOL * (ph - 1) + 1:POOL,
                                   c0:c0 + POOL * (pw - 1) + 1:POOL, :]
                    cols.append(sl)                        # (N, PH, PW, C)
            p = jnp.stack(cols, axis=3)                    # (N, PH, PW, K*K, C)
            if spatial_major:
                p = jnp.transpose(p, (1, 2, 0, 3, 4))      # (PH, PW, N, K*K, C)
            offs.append(p.reshape(-1, KSIZE * KSIZE * c))
    return jnp.concatenate(offs, axis=0), (n, ph, pw)


def init_params(key):
    ks = jax.random.split(key, 10)
    p = {}
    # Conv2d(1, 6, 5) -- PyTorch weight layout (out_c, in_c, kh, kw)
    p["w_conv1"] = 0.1 * jax.random.normal(ks[0], (6, 1, 5, 5), jnp.float32)
    p["b_conv1"] = 0.05 * jax.random.normal(ks[1], (6,), jnp.float32)
    # BatchNorm2d(6) -- PyTorch default init
    p["gamma1"] = jnp.ones((6,), jnp.float32)
    p["beta1"] = jnp.zeros((6,), jnp.float32)
    # Conv2d(6, 16, 5)
    p["w_conv2"] = 0.1 * jax.random.normal(ks[2], (16, 6, 5, 5), jnp.float32)
    p["b_conv2"] = 0.05 * jax.random.normal(ks[3], (16,), jnp.float32)
    # BatchNorm2d(16)
    p["gamma2"] = jnp.ones((16,), jnp.float32)
    p["beta2"] = jnp.zeros((16,), jnp.float32)
    # Linear layers -- PyTorch weight layout (out, in)
    p["w_fc1"] = 0.05 * jax.random.normal(ks[4], (120, 400), jnp.float32)
    p["b_fc1"] = 0.05 * jax.random.normal(ks[5], (120,), jnp.float32)
    p["w_fc2"] = 0.05 * jax.random.normal(ks[6], (84, 120), jnp.float32)
    p["b_fc2"] = 0.05 * jax.random.normal(ks[7], (84,), jnp.float32)
    p["w_fc3"] = 0.05 * jax.random.normal(ks[8], (10, 84), jnp.float32)
    p["b_fc3"] = 0.05 * jax.random.normal(ks[9], (10,), jnp.float32)
    return p


def lenet5_forward(x_nchw, p):
    n = x_nchw.shape[0]
    x = jnp.transpose(x_nchw, (0, 2, 3, 1)).astype(jnp.float32)        # NHWC

    # ---- block 1: Conv(1->6,5) -> ReLU -> BN -> AvgPool(2,2) ----
    patches1, (_, ph1, pw1) = _im2col_pooled(x, spatial_major=False)   # (4*N*196, 25)
    w1c = jnp.transpose(p["w_conv1"], (2, 3, 1, 0)).reshape(25, 6)     # (kh,kw,cin)->cout
    a1 = _run_conv_block(patches1.astype(jnp.bfloat16),
                         w1c.astype(jnp.bfloat16),
                         p["b_conv1"].reshape(1, 6),
                         p["gamma1"].reshape(1, 6),
                         p["beta1"].reshape(1, 6))                     # (N*196, 6) f32
    a1 = a1.reshape(n, ph1, pw1, 6)                                    # NHWC

    # ---- fused tail: Conv(6->16,5)+ReLU+BN+AvgPool + flatten + classifier ----
    patches2, (_, ph2, pw2) = _im2col_pooled(a1, spatial_major=True)   # (4*25*N, 150)
    w2c = jnp.transpose(p["w_conv2"], (2, 3, 1, 0)).reshape(150, 16)
    # Fold torch.flatten(NCHW, 1) into fc1 by permuting its input dim to
    # (ph, pw, c) order; w1_fc[s] is the (16, 120) slab for spatial position s,
    # matching the kernel's spatial-major, channel-last pooled activation.
    w1_fc = jnp.transpose(p["w_fc1"].reshape(120, 16, ph2, pw2),
                          (2, 3, 1, 0)).reshape(ph2 * pw2, 16, 120)
    return _run_tail(
        n,
        patches2.astype(jnp.bfloat16),
        w2c.astype(jnp.bfloat16),
        p["b_conv2"].reshape(1, 16),
        p["gamma2"].reshape(1, 16),
        p["beta2"].reshape(1, 16),
        w1_fc.astype(jnp.bfloat16), p["b_fc1"].reshape(1, 120),
        p["w_fc2"].T.astype(jnp.bfloat16), p["b_fc2"].reshape(1, 84),
        p["w_fc3"].T.astype(jnp.bfloat16), p["b_fc3"].reshape(1, 10))


def _lenet5_reference(x_nchw, p):
    """Pure-jnp (f32, XLA) reference matching the PyTorch module."""
    def conv_block(x, w, b, gamma, beta):
        y = jax.lax.conv_general_dilated(
            x, w, window_strides=(1, 1), padding="VALID",
            dimension_numbers=("NCHW", "OIHW", "NCHW"))
        y = jnp.maximum(y + b.reshape(1, -1, 1, 1), 0.0)
        mean = jnp.mean(y, axis=(0, 2, 3), keepdims=True)
        var = jnp.mean(jnp.square(y - mean), axis=(0, 2, 3), keepdims=True)
        z = (y - mean) * jax.lax.rsqrt(var + BN_EPS)
        z = z * gamma.reshape(1, -1, 1, 1) + beta.reshape(1, -1, 1, 1)
        nn_, cc, hh, ww = z.shape
        return z.reshape(nn_, cc, hh // 2, 2, ww // 2, 2).mean(axis=(3, 5))

    x = x_nchw.astype(jnp.float32)
    a = conv_block(x, p["w_conv1"], p["b_conv1"], p["gamma1"], p["beta1"])
    a = conv_block(a, p["w_conv2"], p["b_conv2"], p["gamma2"], p["beta2"])
    feat = a.reshape(a.shape[0], -1)                    # NCHW flatten
    h = jnp.maximum(feat @ p["w_fc1"].T + p["b_fc1"], 0.0)
    h = jnp.maximum(h @ p["w_fc2"].T + p["b_fc2"], 0.0)
    logits = h @ p["w_fc3"].T + p["b_fc3"]
    return jax.nn.softmax(logits, axis=-1)


if __name__ == "__main__":
    key = jax.random.PRNGKey(0)
    pkey, xkey = jax.random.split(key)
    params = init_params(pkey)
    # LeNet-5 requires a 32x32 single-channel input for the 400-dim flatten.
    x = jax.random.normal(xkey, (2, 1, 32, 32), jnp.float32)

    out = jax.jit(lambda xx: lenet5_forward(xx, params))(x)
    out = jax.block_until_ready(out)

    assert out.shape == (2, 10)
    assert bool(jnp.all(jnp.isfinite(out)))
    assert bool(jnp.allclose(jnp.sum(out, axis=-1), 1.0, atol=1e-5))
    # Loose tolerance: kernels use bf16 MXU operands with f32 accumulation.
    ref = jax.jit(lambda xx: _lenet5_reference(xx, params))(x)
    assert bool(jnp.max(jnp.abs(out - ref)) < 5e-2)
    print("KERNEL_OK")
</pallas_src>

<mosaic_0001>
module attributes {stable_mosaic.version = 11 : i64} {
  func.func @_conv_block_kernel(%arg0: memref<1568x25xbf16, #tpu.memory_space<vmem>>, %arg1: memref<25x6xbf16, #tpu.memory_space<vmem>>, %arg2: memref<1x6xf32, #tpu.memory_space<vmem>>, %arg3: memref<1x6xf32, #tpu.memory_space<vmem>>, %arg4: memref<1x6xf32, #tpu.memory_space<vmem>>, %arg5: memref<392x6xf32, #tpu.memory_space<vmem>>) attributes {dimension_semantics = [], scalar_prefetch = 0 : i64, scratch_operands = 0 : i64, tpu.core_type = #tpu.core_type<tc>} {
    %c0 = arith.constant 0 : index
    %c0_0 = arith.constant 0 : index
    %0 = vector.load %arg0[%c0, %c0_0] : memref<1568x25xbf16, #tpu.memory_space<vmem>>, vector<1568x25xbf16>
    %c0_1 = arith.constant 0 : index
    %c0_2 = arith.constant 0 : index
    %1 = vector.load %arg1[%c0_1, %c0_2] : memref<25x6xbf16, #tpu.memory_space<vmem>>, vector<25x6xbf16>
    %c0_3 = arith.constant 0 : index
    %c0_4 = arith.constant 0 : index
    %2 = vector.load %arg2[%c0_3, %c0_4] : memref<1x6xf32, #tpu.memory_space<vmem>>, vector<1x6xf32>
    %c0_5 = arith.constant 0 : index
    %c0_6 = arith.constant 0 : index
    %3 = vector.load %arg3[%c0_5, %c0_6] : memref<1x6xf32, #tpu.memory_space<vmem>>, vector<1x6xf32>
    %c0_7 = arith.constant 0 : index
    %c0_8 = arith.constant 0 : index
    %4 = vector.load %arg4[%c0_7, %c0_8] : memref<1x6xf32, #tpu.memory_space<vmem>>, vector<1x6xf32>
    %cst = arith.constant dense<0.000000e+00> : vector<1568x6xf32>
    %5 = tpu.matmul %0, %1, %cst {dimension_numbers = #tpu.dot_dimension_numbers<[1], [0], [0], [1], [0, 0, 1, 1], [], []>} : vector<1568x25xbf16>, vector<25x6xbf16>, vector<1568x6xf32> -> vector<1568x6xf32>
    %6 = vector.broadcast %2 : vector<1x6xf32> to vector<1568x6xf32>
    %7 = arith.addf %5, %6 : vector<1568x6xf32>
    %cst_9 = arith.constant 0.000000e+00 : f32
    %8 = vector.broadcast %cst_9 : f32 to vector<1568x6xf32>
    %9 = arith.maximumf %7, %8 : vector<1568x6xf32>
    %cst_10 = arith.constant dense<0.000000e+00> : vector<6xf32>
    %10 = vector.multi_reduction <add>, %9, %cst_10 [0] : vector<1568x6xf32> to vector<6xf32>
    %11 = vector.shape_cast %10 : vector<6xf32> to vector<1x6xf32>
    %cst_11 = arith.constant 6.37755089E-4 : f32
    %12 = vector.broadcast %cst_11 : f32 to vector<1x6xf32>
    %13 = arith.mulf %11, %12 : vector<1x6xf32>
    %14 = arith.mulf %9, %9 : vector<1568x6xf32>
    %cst_12 = arith.constant dense<0.000000e+00> : vector<6xf32>
    %15 = vector.multi_reduction <add>, %14, %cst_12 [0] : vector<1568x6xf32> to vector<6xf32>
    %16 = vector.shape_cast %15 : vector<6xf32> to vector<1x6xf32>
    %cst_13 = arith.constant 6.37755089E-4 : f32
    %17 = vector.broadcast %cst_13 : f32 to vector<1x6xf32>
    %18 = arith.mulf %16, %17 : vector<1x6xf32>
    %19 = arith.mulf %13, %13 : vector<1x6xf32>
    %20 = arith.subf %18, %19 : vector<1x6xf32>
    %cst_14 = arith.constant 0.000000e+00 : f32
    %21 = vector.broadcast %cst_14 : f32 to vector<1x6xf32>
    %22 = arith.maximumf %20, %21 : vector<1x6xf32>
    %cst_15 = arith.constant 9.99999974E-6 : f32
    %23 = vector.broadcast %cst_15 : f32 to vector<1x6xf32>
    %24 = arith.addf %22, %23 : vector<1x6xf32>
    %25 = math.rsqrt %24 : vector<1x6xf32>
    %26 = arith.mulf %25, %3 : vector<1x6xf32>
    %27 = arith.mulf %13, %26 : vector<1x6xf32>
    %28 = arith.subf %4, %27 : vector<1x6xf32>
    %29 = vector.extract_strided_slice %9 {offsets = [0, 0], sizes = [392, 6], strides = [1, 1]} : vector<1568x6xf32> to vector<392x6xf32>
    %30 = vector.extract_strided_slice %9 {offsets = [392, 0], sizes = [392, 6], strides = [1, 1]} : vector<1568x6xf32> to vector<392x6xf32>
    %31 = arith.addf %29, %30 : vector<392x6xf32>
    %32 = vector.extract_strided_slice %9 {offsets = [784, 0], sizes = [392, 6], strides = [1, 1]} : vector<1568x6xf32> to vector<392x6xf32>
    %33 = arith.addf %31, %32 : vector<392x6xf32>
    %34 = vector.extract_strided_slice %9 {offsets = [1176, 0], sizes = [392, 6], strides = [1, 1]} : vector<1568x6xf32> to vector<392x6xf32>
    %35 = arith.addf %33, %34 : vector<392x6xf32>
    %cst_16 = arith.constant 2.500000e-01 : f32
    %36 = vector.broadcast %cst_16 : f32 to vector<392x6xf32>
    %37 = arith.mulf %35, %36 : vector<392x6xf32>
    %38 = vector.broadcast %26 : vector<1x6xf32> to vector<392x6xf32>
    %39 = arith.mulf %37, %38 : vector<392x6xf32>
    %40 = vector.broadcast %28 : vector<1x6xf32> to vector<392x6xf32>
    %41 = arith.addf %39, %40 : vector<392x6xf32>
    %c0_17 = arith.constant 0 : index
    %c0_18 = arith.constant 0 : index
    %42 = vector.load %arg5[%c0_17, %c0_18] : memref<392x6xf32, #tpu.memory_space<vmem>>, vector<392x6xf32>
    tpu.vector_store %arg5[%c0_17, %c0_18], %41 {strides = array<i32>} : memref<392x6xf32, #tpu.memory_space<vmem>>, vector<392x6xf32>,
    return
  }
}

module attributes {stable_mosaic.version = 11 : i64} {
  func.func @_tail_kernel(%arg0: memref<200x150xbf16, #tpu.memory_space<vmem>>, %arg1: memref<150x16xbf16, #tpu.memory_space<vmem>>, %arg2: memref<1x16xf32, #tpu.memory_space<vmem>>, %arg3: memref<1x16xf32, #tpu.memory_space<vmem>>, %arg4: memref<1x16xf32, #tpu.memory_space<vmem>>, %arg5: memref<25x16x120xbf16, #tpu.memory_space<vmem>>, %arg6: memref<1x120xf32, #tpu.memory_space<vmem>>, %arg7: memref<120x84xbf16, #tpu.memory_space<vmem>>, %arg8: memref<1x84xf32, #tpu.memory_space<vmem>>, %arg9: memref<84x10xbf16, #tpu.memory_space<vmem>>, %arg10: memref<1x10xf32, #tpu.memory_space<vmem>>, %arg11: memref<2x10xf32, #tpu.memory_space<vmem>>) attributes {dimension_semantics = [], scalar_prefetch = 0 : i64, scratch_operands = 0 : i64, tpu.core_type = #tpu.core_type<tc>} {
    %c0 = arith.constant 0 : index
    %c0_0 = arith.constant 0 : index
    %0 = vector.load %arg0[%c0, %c0_0] : memref<200x150xbf16, #tpu.memory_space<vmem>>, vector<200x150xbf16>
    %c0_1 = arith.constant 0 : index
    %c0_2 = arith.constant 0 : index
    %1 = vector.load %arg1[%c0_1, %c0_2] : memref<150x16xbf16, #tpu.memory_space<vmem>>, vector<150x16xbf16>
    %c0_3 = arith.constant 0 : index
    %c0_4 = arith.constant 0 : index
    %2 = vector.load %arg2[%c0_3, %c0_4] : memref<1x16xf32, #tpu.memory_space<vmem>>, vector<1x16xf32>
    %c0_5 = arith.constant 0 : index
    %c0_6 = arith.constant 0 : index
    %3 = vector.load %arg3[%c0_5, %c0_6] : memref<1x16xf32, #tpu.memory_space<vmem>>, vector<1x16xf32>
    %c0_7 = arith.constant 0 : index
    %c0_8 = arith.constant 0 : index
    %4 = vector.load %arg4[%c0_7, %c0_8] : memref<1x16xf32, #tpu.memory_space<vmem>>, vector<1x16xf32>
    %cst = arith.constant dense<0.000000e+00> : vector<200x16xf32>
    %5 = tpu.matmul %0, %1, %cst {dimension_numbers = #tpu.dot_dimension_numbers<[1], [0], [0], [1], [0, 0, 1, 1], [], []>} : vector<200x150xbf16>, vector<150x16xbf16>, vector<200x16xf32> -> vector<200x16xf32>
    %6 = vector.broadcast %2 : vector<1x16xf32> to vector<200x16xf32>
    %7 = arith.addf %5, %6 : vector<200x16xf32>
    %cst_9 = arith.constant 0.000000e+00 : f32
    %8 = vector.broadcast %cst_9 : f32 to vector<200x16xf32>
    %9 = arith.maximumf %7, %8 : vector<200x16xf32>
    %cst_10 = arith.constant dense<0.000000e+00> : vector<16xf32>
    %10 = vector.multi_reduction <add>, %9, %cst_10 [0] : vector<200x16xf32> to vector<16xf32>
    %11 = vector.shape_cast %10 : vector<16xf32> to vector<1x16xf32>
    %cst_11 = arith.constant 5.000000e-03 : f32
    %12 = vector.broadcast %cst_11 : f32 to vector<1x16xf32>
    %13 = arith.mulf %11, %12 : vector<1x16xf32>
    %14 = arith.mulf %9, %9 : vector<200x16xf32>
    %cst_12 = arith.constant dense<0.000000e+00> : vector<16xf32>
    %15 = vector.multi_reduction <add>, %14, %cst_12 [0] : vector<200x16xf32> to vector<16xf32>
    %16 = vector.shape_cast %15 : vector<16xf32> to vector<1x16xf32>
    %cst_13 = arith.constant 5.000000e-03 : f32
    %17 = vector.broadcast %cst_13 : f32 to vector<1x16xf32>
    %18 = arith.mulf %16, %17 : vector<1x16xf32>
    %19 = arith.mulf %13, %13 : vector<1x16xf32>
    %20 = arith.subf %18, %19 : vector<1x16xf32>
    %cst_14 = arith.constant 0.000000e+00 : f32
    %21 = vector.broadcast %cst_14 : f32 to vector<1x16xf32>
    %22 = arith.maximumf %20, %21 : vector<1x16xf32>
    %cst_15 = arith.constant 9.99999974E-6 : f32
    %23 = vector.broadcast %cst_15 : f32 to vector<1x16xf32>
    %24 = arith.addf %22, %23 : vector<1x16xf32>
    %25 = math.rsqrt %24 : vector<1x16xf32>
    %26 = arith.mulf %25, %3 : vector<1x16xf32>
    %27 = arith.mulf %13, %26 : vector<1x16xf32>
    %28 = arith.subf %4, %27 : vector<1x16xf32>
    %29 = vector.extract_strided_slice %9 {offsets = [0, 0], sizes = [50, 16], strides = [1, 1]} : vector<200x16xf32> to vector<50x16xf32>
    %30 = vector.extract_strided_slice %9 {offsets = [50, 0], sizes = [50, 16], strides = [1, 1]} : vector<200x16xf32> to vector<50x16xf32>
    %31 = arith.addf %29, %30 : vector<50x16xf32>
    %32 = vector.extract_strided_slice %9 {offsets = [100, 0], sizes = [50, 16], strides = [1, 1]} : vector<200x16xf32> to vector<50x16xf32>
    %33 = arith.addf %31, %32 : vector<50x16xf32>
    %34 = vector.extract_strided_slice %9 {offsets = [150, 0], sizes = [50, 16], strides = [1, 1]} : vector<200x16xf32> to vector<50x16xf32>
    %35 = arith.addf %33, %34 : vector<50x16xf32>
    %cst_16 = arith.constant 2.500000e-01 : f32
    %36 = vector.broadcast %cst_16 : f32 to vector<50x16xf32>
    %37 = arith.mulf %35, %36 : vector<50x16xf32>
    %38 = vector.broadcast %26 : vector<1x16xf32> to vector<50x16xf32>
    %39 = arith.mulf %37, %38 : vector<50x16xf32>
    %40 = vector.broadcast %28 : vector<1x16xf32> to vector<50x16xf32>
    %41 = arith.addf %39, %40 : vector<50x16xf32>
    %42 = arith.truncf %41 : vector<50x16xf32> to vector<50x16xbf16>
    %cst_17 = arith.constant 0.000000e+00 : f32
    %43 = vector.broadcast %cst_17 : f32 to vector<2x120xf32>
    %44 = vector.extract_strided_slice %42 {offsets = [0, 0], sizes = [2, 16], strides = [1, 1]} : vector<50x16xbf16> to vector<2x16xbf16>
    %c0_18 = arith.constant 0 : index
    %c0_19 = arith.constant 0 : index
    %c0_20 = arith.constant 0 : index
    %45 = vector.load %arg5[%c0_18, %c0_19, %c0_20] : memref<25x16x120xbf16, #tpu.memory_space<vmem>>, vector<1x16x120xbf16>
    %46 = vector.shape_cast %45 : vector<1x16x120xbf16> to vector<16x120xbf16>
    %cst_21 = arith.constant dense<0.000000e+00> : vector<2x120xf32>
    %47 = tpu.matmul %44, %46, %cst_21 {dimension_numbers = #tpu.dot_dimension_numbers<[1], [0], [0], [1], [0, 0, 1, 1], [], []>} : vector<2x16xbf16>, vector<16x120xbf16>, vector<2x120xf32> -> vector<2x120xf32>
    %48 = arith.addf %43, %47 : vector<2x120xf32>
    %49 = vector.extract_strided_slice %42 {offsets = [2, 0], sizes = [2, 16], strides = [1, 1]} : vector<50x16xbf16> to vector<2x16xbf16>
    %c1 = arith.constant 1 : index
    %c0_22 = arith.constant 0 : index
    %c0_23 = arith.constant 0 : index
    %50 = vector.load %arg5[%c1, %c0_22, %c0_23] : memref<25x16x120xbf16, #tpu.memory_space<vmem>>, vector<1x16x120xbf16>
    %51 = vector.shape_cast %50 : vector<1x16x120xbf16> to vector<16x120xbf16>
    %cst_24 = arith.constant dense<0.000000e+00> : vector<2x120xf32>
    %52 = tpu.matmul %49, %51, %cst_24 {dimension_numbers = #tpu.dot_dimension_numbers<[1], [0], [0], [1], [0, 0, 1, 1], [], []>} : vector<2x16xbf16>, vector<16x120xbf16>, vector<2x120xf32> -> vector<2x120xf32>
    %53 = arith.addf %48, %52 : vector<2x120xf32>
    %54 = vector.extract_strided_slice %42 {offsets = [4, 0], sizes = [2, 16], strides = [1, 1]} : vector<50x16xbf16> to vector<2x16xbf16>
    %c2 = arith.constant 2 : index
    %c0_25 = arith.constant 0 : index
    %c0_26 = arith.constant 0 : index
    %55 = vector.load %arg5[%c2, %c0_25, %c0_26] : memref<25x16x120xbf16, #tpu.memory_space<vmem>>, vector<1x16x120xbf16>
    %56 = vector.shape_cast %55 : vector<1x16x120xbf16> to vector<16x120xbf16>
    %cst_27 = arith.constant dense<0.000000e+00> : vector<2x120xf32>
    %57 = tpu.matmul %54, %56, %cst_27 {dimension_numbers = #tpu.dot_dimension_numbers<[1], [0], [0], [1], [0, 0, 1, 1], [], []>} : vector<2x16xbf16>, vector<16x120xbf16>, vector<2x120xf32> -> vector<2x120xf32>
    %58 = arith.addf %53, %57 : vector<2x120xf32>
    %59 = vector.extract_strided_slice %42 {offsets = [6, 0], sizes = [2, 16], strides = [1, 1]} : vector<50x16xbf16> to vector<2x16xbf16>
    %c3 = arith.constant 3 : index
    %c0_28 = arith.constant 0 : index
    %c0_29 = arith.constant 0 : index
    %60 = vector.load %arg5[%c3, %c0_28, %c0_29] : memref<25x16x120xbf16, #tpu.memory_space<vmem>>, vector<1x16x120xbf16>
    %61 = vector.shape_cast %60 : vector<1x16x120xbf16> to vector<16x120xbf16>
    %cst_30 = arith.constant dense<0.000000e+00> : vector<2x120xf32>
    %62 = tpu.matmul %59, %61, %cst_30 {dimension_numbers = #tpu.dot_dimension_numbers<[1], [0], [0], [1], [0, 0, 1, 1], [], []>} : vector<2x16xbf16>, vector<16x120xbf16>, vector<2x120xf32> -> vector<2x120xf32>
    %63 = arith.addf %58, %62 : vector<2x120xf32>
    %64 = vector.extract_strided_slice %42 {offsets = [8, 0], sizes = [2, 16], strides = [1, 1]} : vector<50x16xbf16> to vector<2x16xbf16>
    %c4 = arith.constant 4 : index
    %c0_31 = arith.constant 0 : index
    %c0_32 = arith.constant 0 : index
    %65 = vector.load %arg5[%c4, %c0_31, %c0_32] : memref<25x16x120xbf16, #tpu.memory_space<vmem>>, vector<1x16x120xbf16>
    %66 = vector.shape_cast %65 : vector<1x16x120xbf16> to vector<16x120xbf16>
    %cst_33 = arith.constant dense<0.000000e+00> : vector<2x120xf32>
    %67 = tpu.matmul %64, %66, %cst_33 {dimension_numbers = #tpu.dot_dimension_numbers<[1], [0], [0], [1], [0, 0, 1, 1], [], []>} : vector<2x16xbf16>, vector<16x120xbf16>, vector<2x120xf32> -> vector<2x120xf32>
    %68 = arith.addf %63, %67 : vector<2x120xf32>
    %69 = vector.extract_strided_slice %42 {offsets = [10, 0], sizes = [2, 16], strides = [1, 1]} : vector<50x16xbf16> to vector<2x16xbf16>
    %c5 = arith.constant 5 : index
    %c0_34 = arith.constant 0 : index
    %c0_35 = arith.constant 0 : index
    %70 = vector.load %arg5[%c5, %c0_34, %c0_35] : memref<25x16x120xbf16, #tpu.memory_space<vmem>>, vector<1x16x120xbf16>
    %71 = vector.shape_cast %70 : vector<1x16x120xbf16> to vector<16x120xbf16>
    %cst_36 = arith.constant dense<0.000000e+00> : vector<2x120xf32>
    %72 = tpu.matmul %69, %71, %cst_36 {dimension_numbers = #tpu.dot_dimension_numbers<[1], [0], [0], [1], [0, 0, 1, 1], [], []>} : vector<2x16xbf16>, vector<16x120xbf16>, vector<2x120xf32> -> vector<2x120xf32>
    %73 = arith.addf %68, %72 : vector<2x120xf32>
    %74 = vector.extract_strided_slice %42 {offsets = [12, 0], sizes = [2, 16], strides = [1, 1]} : vector<50x16xbf16> to vector<2x16xbf16>
    %c6 = arith.constant 6 : index
    %c0_37 = arith.constant 0 : index
    %c0_38 = arith.constant 0 : index
    %75 = vector.load %arg5[%c6, %c0_37, %c0_38] : memref<25x16x120xbf16, #tpu.memory_space<vmem>>, vector<1x16x120xbf16>
    %76 = vector.shape_cast %75 : vector<1x16x120xbf16> to vector<16x120xbf16>
    %cst_39 = arith.constant dense<0.000000e+00> : vector<2x120xf32>
    %77 = tpu.matmul %74, %76, %cst_39 {dimension_numbers = #tpu.dot_dimension_numbers<[1], [0], [0], [1], [0, 0, 1, 1], [], []>} : vector<2x16xbf16>, vector<16x120xbf16>, vector<2x120xf32> -> vector<2x120xf32>
    %78 = arith.addf %73, %77 : vector<2x120xf32>
    %79 = vector.extract_strided_slice %42 {offsets = [14, 0], sizes = [2, 16], strides = [1, 1]} : vector<50x16xbf16> to vector<2x16xbf16>
    %c7 = arith.constant 7 : index
    %c0_40 = arith.constant 0 : index
    %c0_41 = arith.constant 0 : index
    %80 = vector.load %arg5[%c7, %c0_40, %c0_41] : memref<25x16x120xbf16, #tpu.memory_space<vmem>>, vector<1x16x120xbf16>
    %81 = vector.shape_cast %80 : vector<1x16x120xbf16> to vector<16x120xbf16>
    %cst_42 = arith.constant dense<0.000000e+00> : vector<2x120xf32>
    %82 = tpu.matmul %79, %81, %cst_42 {dimension_numbers = #tpu.dot_dimension_numbers<[1], [0], [0], [1], [0, 0, 1, 1], [], []>} : vector<2x16xbf16>, vector<16x120xbf16>, vector<2x120xf32> -> vector<2x120xf32>
    %83 = arith.addf %78, %82 : vector<2x120xf32>
    %84 = vector.extract_strided_slice %42 {offsets = [16, 0], sizes = [2, 16], strides = [1, 1]} : vector<50x16xbf16> to vector<2x16xbf16>
    %c8 = arith.constant 8 : index
    %c0_43 = arith.constant 0 : index
    %c0_44 = arith.constant 0 : index
    %85 = vector.load %arg5[%c8, %c0_43, %c0_44] : memref<25x16x120xbf16, #tpu.memory_space<vmem>>, vector<1x16x120xbf16>
    %86 = vector.shape_cast %85 : vector<1x16x120xbf16> to vector<16x120xbf16>
    %cst_45 = arith.constant dense<0.000000e+00> : vector<2x120xf32>
    %87 = tpu.matmul %84, %86, %cst_45 {dimension_numbers = #tpu.dot_dimension_numbers<[1], [0], [0], [1], [0, 0, 1, 1], [], []>} : vector<2x16xbf16>, vector<16x120xbf16>, vector<2x120xf32> -> vector<2x120xf32>
    %88 = arith.addf %83, %87 : vector<2x120xf32>
    %89 = vector.extract_strided_slice %42 {offsets = [18, 0], sizes = [2, 16], strides = [1, 1]} : vector<50x16xbf16> to vector<2x16xbf16>
    %c9 = arith.constant 9 : index
    %c0_46 = arith.constant 0 : index
    %c0_47 = arith.constant 0 : index
    %90 = vector.load %arg5[%c9, %c0_46, %c0_47] : memref<25x16x120xbf16, #tpu.memory_space<vmem>>, vector<1x16x120xbf16>
    %91 = vector.shape_cast %90 : vector<1x16x120xbf16> to vector<16x120xbf16>
    %cst_48 = arith.constant dense<0.000000e+00> : vector<2x120xf32>
    %92 = tpu.matmul %89, %91, %cst_48 {dimension_numbers = #tpu.dot_dimension_numbers<[1], [0], [0], [1], [0, 0, 1, 1], [], []>} : vector<2x16xbf16>, vector<16x120xbf16>, vector<2x120xf32> -> vector<2x120xf32>
    %93 = arith.addf %88, %92 : vector<2x120xf32>
    %94 = vector.extract_strided_slice %42 {offsets = [20, 0], sizes = [2, 16], strides = [1, 1]} : vector<50x16xbf16> to vector<2x16xbf16>
    %c10 = arith.constant 10 : index
    %c0_49 = arith.constant 0 : index
    %c0_50 = arith.constant 0 : index
    %95 = vector.load %arg5[%c10, %c0_49, %c0_50] : memref<25x16x120xbf16, #tpu.memory_space<vmem>>, vector<1x16x120xbf16>
    %96 = vector.shape_cast %95 : vector<1x16x120xbf16> to vector<16x120xbf16>
    %cst_51 = arith.constant dense<0.000000e+00> : vector<2x120xf32>
    %97 = tpu.matmul %94, %96, %cst_51 {dimension_numbers = #tpu.dot_dimension_numbers<[1], [0], [0], [1], [0, 0, 1, 1], [], []>} : vector<2x16xbf16>, vector<16x120xbf16>, vector<2x120xf32> -> vector<2x120xf32>
    %98 = arith.addf %93, %97 : vector<2x120xf32>
    %99 = vector.extract_strided_slice %42 {offsets = [22, 0], sizes = [2, 16], strides = [1, 1]} : vector<50x16xbf16> to vector<2x16xbf16>
    %c11 = arith.constant 11 : index
    %c0_52 = arith.constant 0 : index
    %c0_53 = arith.constant 0 : index
    %100 = vector.load %arg5[%c11, %c0_52, %c0_53] : memref<25x16x120xbf16, #tpu.memory_space<vmem>>, vector<1x16x120xbf16>
    %101 = vector.shape_cast %100 : vector<1x16x120xbf16> to vector<16x120xbf16>
    %cst_54 = arith.constant dense<0.000000e+00> : vector<2x120xf32>
    %102 = tpu.matmul %99, %101, %cst_54 {dimension_numbers = #tpu.dot_dimension_numbers<[1], [0], [0], [1], [0, 0, 1, 1], [], []>} : vector<2x16xbf16>, vector<16x120xbf16>, vector<2x120xf32> -> vector<2x120xf32>
    %103 = arith.addf %98, %102 : vector<2x120xf32>
    %104 = vector.extract_strided_slice %42 {offsets = [24, 0], sizes = [2, 16], strides = [1, 1]} : vector<50x16xbf16> to vector<2x16xbf16>
    %c12 = arith.constant 12 : index
    %c0_55 = arith.constant 0 : index
    %c0_56 = arith.constant 0 : index
    %105 = vector.load %arg5[%c12, %c0_55, %c0_56] : memref<25x16x120xbf16, #tpu.memory_space<vmem>>, vector<1x16x120xbf16>
    %106 = vector.shape_cast %105 : vector<1x16x120xbf16> to vector<16x120xbf16>
    %cst_57 = arith.constant dense<0.000000e+00> : vector<2x120xf32>
    %107 = tpu.matmul %104, %106, %cst_57 {dimension_numbers = #tpu.dot_dimension_numbers<[1], [0], [0], [1], [0, 0, 1, 1], [], []>} : vector<2x16xbf16>, vector<16x120xbf16>, vector<2x120xf32> -> vector<2x120xf32>
    %108 = arith.addf %103, %107 : vector<2x120xf32>
    %109 = vector.extract_strided_slice %42 {offsets = [26, 0], sizes = [2, 16], strides = [1, 1]} : vector<50x16xbf16> to vector<2x16xbf16>
    %c13 = arith.constant 13 : index
    %c0_58 = arith.constant 0 : index
    %c0_59 = arith.constant 0 : index
    %110 = vector.load %arg5[%c13, %c0_58, %c0_59] : memref<25x16x120xbf16, #tpu.memory_space<vmem>>, vector<1x16x120xbf16>
    %111 = vector.shape_cast %110 : vector<1x16x120xbf16> to vector<16x120xbf16>
    %cst_60 = arith.constant dense<0.000000e+00> : vector<2x120xf32>
    %112 = tpu.matmul %109, %111, %cst_60 {dimension_numbers = #tpu.dot_dimension_numbers<[1], [0], [0], [1], [0, 0, 1, 1], [], []>} : vector<2x16xbf16>, vector<16x120xbf16>, vector<2x120xf32> -> vector<2x120xf32>
    %113 = arith.addf %108, %112 : vector<2x120xf32>
    %114 = vector.extract_strided_slice %42 {offsets = [28, 0], sizes = [2, 16], strides = [1, 1]} : vector<50x16xbf16> to vector<2x16xbf16>
    %c14 = arith.constant 14 : index
    %c0_61 = arith.constant 0 : index
    %c0_62 = arith.constant 0 : index
    %115 = vector.load %arg5[%c14, %c0_61, %c0_62] : memref<25x16x120xbf16, #tpu.memory_space<vmem>>, vector<1x16x120xbf16>
    %116 = vector.shape_cast %115 : vector<1x16x120xbf16> to vector<16x120xbf16>
    %cst_63 = arith.constant dense<0.000000e+00> : vector<2x120xf32>
    %117 = tpu.matmul %114, %116, %cst_63 {dimension_numbers = #tpu.dot_dimension_numbers<[1], [0], [0], [1], [0, 0, 1, 1], [], []>} : vector<2x16xbf16>, vector<16x120xbf16>, vector<2x120xf32> -> vector<2x120xf32>
    %118 = arith.addf %113, %117 : vector<2x120xf32>
    %119 = vector.extract_strided_slice %42 {offsets = [30, 0], sizes = [2, 16], strides = [1, 1]} : vector<50x16xbf16> to vector<2x16xbf16>
    %c15 = arith.constant 15 : index
    %c0_64 = arith.constant 0 : index
    %c0_65 = arith.constant 0 : index
    %120 = vector.load %arg5[%c15, %c0_64, %c0_65] : memref<25x16x120xbf16, #tpu.memory_space<vmem>>, vector<1x16x120xbf16>
    %121 = vector.shape_cast %120 : vector<1x16x120xbf16> to vector<16x120xbf16>
    %cst_66 = arith.constant dense<0.000000e+00> : vector<2x120xf32>
    %122 = tpu.matmul %119, %121, %cst_66 {dimension_numbers = #tpu.dot_dimension_numbers<[1], [0], [0], [1], [0, 0, 1, 1], [], []>} : vector<2x16xbf16>, vector<16x120xbf16>, vector<2x120xf32> -> vector<2x120xf32>
    %123 = arith.addf %118, %122 : vector<2x120xf32>
    %124 = vector.extract_strided_slice %42 {offsets = [32, 0], sizes = [2, 16], strides = [1, 1]} : vector<50x16xbf16> to vector<2x16xbf16>
    %c16 = arith.constant 16 : index
    %c0_67 = arith.constant 0 : index
    %c0_68 = arith.constant 0 : index
    %125 = vector.load %arg5[%c16, %c0_67, %c0_68] : memref<25x16x120xbf16, #tpu.memory_space<vmem>>, vector<1x16x120xbf16>
    %126 = vector.shape_cast %125 : vector<1x16x120xbf16> to vector<16x120xbf16>
    %cst_69 = arith.constant dense<0.000000e+00> : vector<2x120xf32>
    %127 = tpu.matmul %124, %126, %cst_69 {dimension_numbers = #tpu.dot_dimension_numbers<[1], [0], [0], [1], [0, 0, 1, 1], [], []>} : vector<2x16xbf16>, vector<16x120xbf16>, vector<2x120xf32> -> vector<2x120xf32>
    %128 = arith.addf %123, %127 : vector<2x120xf32>
    %129 = vector.extract_strided_slice %42 {offsets = [34, 0], sizes = [2, 16], strides = [1, 1]} : vector<50x16xbf16> to vector<2x16xbf16>
    %c17 = arith.constant 17 : index
    %c0_70 = arith.constant 0 : index
    %c0_71 = arith.constant 0 : index
    %130 = vector.load %arg5[%c17, %c0_70, %c0_71] : memref<25x16x120xbf16, #tpu.memory_space<vmem>>, vector<1x16x120xbf16>
    %131 = vector.shape_cast %130 : vector<1x16x120xbf16> to vector<16x120xbf16>
    %cst_72 = arith.constant dense<0.000000e+00> : vector<2x120xf32>
    %132 = tpu.matmul %129, %131, %cst_72 {dimension_numbers = #tpu.dot_dimension_numbers<[1], [0], [0], [1], [0, 0, 1, 1], [], []>} : vector<2x16xbf16>, vector<16x120xbf16>, vector<2x120xf32> -> vector<2x120xf32>
    %133 = arith.addf %128, %132 : vector<2x120xf32>
    %134 = vector.extract_strided_slice %42 {offsets = [36, 0], sizes = [2, 16], strides = [1, 1]} : vector<50x16xbf16> to vector<2x16xbf16>
    %c18 = arith.constant 18 : index
    %c0_73 = arith.constant 0 : index
    %c0_74 = arith.constant 0 : index
    %135 = vector.load %arg5[%c18, %c0_73, %c0_74] : memref<25x16x120xbf16, #tpu.memory_space<vmem>>, vector<1x16x120xbf16>
    %136 = vector.shape_cast %135 : vector<1x16x120xbf16> to vector<16x120xbf16>
    %cst_75 = arith.constant dense<0.000000e+00> : vector<2x120xf32>
    %137 = tpu.matmul %134, %136, %cst_75 {dimension_numbers = #tpu.dot_dimension_numbers<[1], [0], [0], [1], [0, 0, 1, 1], [], []>} : vector<2x16xbf16>, vector<16x120xbf16>, vector<2x120xf32> -> vector<2x120xf32>
    %138 = arith.addf %133, %137 : vector<2x120xf32>
    %139 = vector.extract_strided_slice %42 {offsets = [38, 0], sizes = [2, 16], strides = [1, 1]} : vector<50x16xbf16> to vector<2x16xbf16>
    %c19 = arith.constant 19 : index
    %c0_76 = arith.constant 0 : index
    %c0_77 = arith.constant 0 : index
    %140 = vector.load %arg5[%c19, %c0_76, %c0_77] : memref<25x16x120xbf16, #tpu.memory_space<vmem>>, vector<1x16x120xbf16>
    %141 = vector.shape_cast %140 : vector<1x16x120xbf16> to vector<16x120xbf16>
    %cst_78 = arith.constant dense<0.000000e+00> : vector<2x120xf32>
    %142 = tpu.matmul %139, %141, %cst_78 {dimension_numbers = #tpu.dot_dimension_numbers<[1], [0], [0], [1], [0, 0, 1, 1], [], []>} : vector<2x16xbf16>, vector<16x120xbf16>, vector<2x120xf32> -> vector<2x120xf32>
    %143 = arith.addf %138, %142 : vector<2x120xf32>
    %144 = vector.extract_strided_slice %42 {offsets = [40, 0], sizes = [2, 16], strides = [1, 1]} : vector<50x16xbf16> to vector<2x16xbf16>
    %c20 = arith.constant 20 : index
    %c0_79 = arith.constant 0 : index
    %c0_80 = arith.constant 0 : index
    %145 = vector.load %arg5[%c20, %c0_79, %c0_80] : memref<25x16x120xbf16, #tpu.memory_space<vmem>>, vector<1x16x120xbf16>
    %146 = vector.shape_cast %145 : vector<1x16x120xbf16> to vector<16x120xbf16>
    %cst_81 = arith.constant dense<0.000000e+00> : vector<2x120xf32>
    %147 = tpu.matmul %144, %146, %cst_81 {dimension_numbers = #tpu.dot_dimension_numbers<[1], [0], [0], [1], [0, 0, 1, 1], [], []>} : vector<2x16xbf16>, vector<16x120xbf16>, vector<2x120xf32> -> vector<2x120xf32>
    %148 = arith.addf %143, %147 : vector<2x120xf32>
    %149 = vector.extract_strided_slice %42 {offsets = [42, 0], sizes = [2, 16], strides = [1, 1]} : vector<50x16xbf16> to vector<2x16xbf16>
    %c21 = arith.constant 21 : index
    %c0_82 = arith.constant 0 : index
    %c0_83 = arith.constant 0 : index
    %150 = vector.load %arg5[%c21, %c0_82, %c0_83] : memref<25x16x120xbf16, #tpu.memory_space<vmem>>, vector<1x16x120xbf16>
    %151 = vector.shape_cast %150 : vector<1x16x120xbf16> to vector<16x120xbf16>
    %cst_84 = arith.constant dense<0.000000e+00> : vector<2x120xf32>
    %152 = tpu.matmul %149, %151, %cst_84 {dimension_numbers = #tpu.dot_dimension_numbers<[1], [0], [0], [1], [0, 0, 1, 1], [], []>} : vector<2x16xbf16>, vector<16x120xbf16>, vector<2x120xf32> -> vector<2x120xf32>
    %153 = arith.addf %148, %152 : vector<2x120xf32>
    %154 = vector.extract_strided_slice %42 {offsets = [44, 0], sizes = [2, 16], strides = [1, 1]} : vector<50x16xbf16> to vector<2x16xbf16>
    %c22 = arith.constant 22 : index
    %c0_85 = arith.constant 0 : index
    %c0_86 = arith.constant 0 : index
    %155 = vector.load %arg5[%c22, %c0_85, %c0_86] : memref<25x16x120xbf16, #tpu.memory_space<vmem>>, vector<1x16x120xbf16>
    %156 = vector.shape_cast %155 : vector<1x16x120xbf16> to vector<16x120xbf16>
    %cst_87 = arith.constant dense<0.000000e+00> : vector<2x120xf32>
    %157 = tpu.matmul %154, %156, %cst_87 {dimension_numbers = #tpu.dot_dimension_numbers<[1], [0], [0], [1], [0, 0, 1, 1], [], []>} : vector<2x16xbf16>, vector<16x120xbf16>, vector<2x120xf32> -> vector<2x120xf32>
    %158 = arith.addf %153, %157 : vector<2x120xf32>
    %159 = vector.extract_strided_slice %42 {offsets = [46, 0], sizes = [2, 16], strides = [1, 1]} : vector<50x16xbf16> to vector<2x16xbf16>
    %c23 = arith.constant 23 : index
    %c0_88 = arith.constant 0 : index
    %c0_89 = arith.constant 0 : index
    %160 = vector.load %arg5[%c23, %c0_88, %c0_89] : memref<25x16x120xbf16, #tpu.memory_space<vmem>>, vector<1x16x120xbf16>
    %161 = vector.shape_cast %160 : vector<1x16x120xbf16> to vector<16x120xbf16>
    %cst_90 = arith.constant dense<0.000000e+00> : vector<2x120xf32>
    %162 = tpu.matmul %159, %161, %cst_90 {dimension_numbers = #tpu.dot_dimension_numbers<[1], [0], [0], [1], [0, 0, 1, 1], [], []>} : vector<2x16xbf16>, vector<16x120xbf16>, vector<2x120xf32> -> vector<2x120xf32>
    %163 = arith.addf %158, %162 : vector<2x120xf32>
    %164 = vector.extract_strided_slice %42 {offsets = [48, 0], sizes = [2, 16], strides = [1, 1]} : vector<50x16xbf16> to vector<2x16xbf16>
    %c24 = arith.constant 24 : index
    %c0_91 = arith.constant 0 : index
    %c0_92 = arith.constant 0 : index
    %165 = vector.load %arg5[%c24, %c0_91, %c0_92] : memref<25x16x120xbf16, #tpu.memory_space<vmem>>, vector<1x16x120xbf16>
    %166 = vector.shape_cast %165 : vector<1x16x120xbf16> to vector<16x120xbf16>
    %cst_93 = arith.constant dense<0.000000e+00> : vector<2x120xf32>
    %167 = tpu.matmul %164, %166, %cst_93 {dimension_numbers = #tpu.dot_dimension_numbers<[1], [0], [0], [1], [0, 0, 1, 1], [], []>} : vector<2x16xbf16>, vector<16x120xbf16>, vector<2x120xf32> -> vector<2x120xf32>
    %168 = arith.addf %163, %167 : vector<2x120xf32>
    %c0_94 = arith.constant 0 : index
    %c0_95 = arith.constant 0 : index
    %169 = vector.load %arg6[%c0_94, %c0_95] : memref<1x120xf32, #tpu.memory_space<vmem>>, vector<1x120xf32>
    %170 = vector.broadcast %169 : vector<1x120xf32> to vector<2x120xf32>
    %171 = arith.addf %168, %170 : vector<2x120xf32>
    %cst_96 = arith.constant 0.000000e+00 : f32
    %172 = vector.broadcast %cst_96 : f32 to vector<2x120xf32>
    %173 = arith.maximumf %171, %172 : vector<2x120xf32>
    %174 = arith.truncf %173 : vector<2x120xf32> to vector<2x120xbf16>
    %c0_97 = arith.constant 0 : index
    %c0_98 = arith.constant 0 : index
    %175 = vector.load %arg7[%c0_97, %c0_98] : memref<120x84xbf16, #tpu.memory_space<vmem>>, vector<120x84xbf16>
    %cst_99 = arith.constant dense<0.000000e+00> : vector<2x84xf32>
    %176 = tpu.matmul %174, %175, %cst_99 {dimension_numbers = #tpu.dot_dimension_numbers<[1], [0], [0], [1], [0, 0, 1, 1], [], []>} : vector<2x120xbf16>, vector<120x84xbf16>, vector<2x84xf32> -> vector<2x84xf32>
    %c0_100 = arith.constant 0 : index
    %c0_101 = arith.constant 0 : index
    %177 = vector.load %arg8[%c0_100, %c0_101] : memref<1x84xf32, #tpu.memory_space<vmem>>, vector<1x84xf32>
    %178 = vector.broadcast %177 : vector<1x84xf32> to vector<2x84xf32>
    %179 = arith.addf %176, %178 : vector<2x84xf32>
    %cst_102 = arith.constant 0.000000e+00 : f32
    %180 = vector.broadcast %cst_102 : f32 to vector<2x84xf32>
    %181 = arith.maximumf %179, %180 : vector<2x84xf32>
    %182 = arith.truncf %181 : vector<2x84xf32> to vector<2x84xbf16>
    %c0_103 = arith.constant 0 : index
    %c0_104 = arith.constant 0 : index
    %183 = vector.load %arg9[%c0_103, %c0_104] : memref<84x10xbf16, #tpu.memory_space<vmem>>, vector<84x10xbf16>
    %cst_105 = arith.constant dense<0.000000e+00> : vector<2x10xf32>
    %184 = tpu.matmul %182, %183, %cst_105 {dimension_numbers = #tpu.dot_dimension_numbers<[1], [0], [0], [1], [0, 0, 1, 1], [], []>} : vector<2x84xbf16>, vector<84x10xbf16>, vector<2x10xf32> -> vector<2x10xf32>
    %c0_106 = arith.constant 0 : index
    %c0_107 = arith.constant 0 : index
    %185 = vector.load %arg10[%c0_106, %c0_107] : memref<1x10xf32, #tpu.memory_space<vmem>>, vector<1x10xf32>
    %186 = vector.broadcast %185 : vector<1x10xf32> to vector<2x10xf32>
    %187 = arith.addf %184, %186 : vector<2x10xf32>
    %cst_108 = arith.constant dense<0xFF800000> : vector<2xf32>
    %188 = vector.multi_reduction <maximumf>, %187, %cst_108 [1] : vector<2x10xf32> to vector<2xf32>
    %189 = vector.shape_cast %188 : vector<2xf32> to vector<2x1xf32>
    %190 = vector.broadcast %189 : vector<2x1xf32> to vector<2x10xf32>
    %191 = arith.subf %187, %190 : vector<2x10xf32>
    %192 = math.exp %191 : vector<2x10xf32>
    %cst_109 = arith.constant dense<0.000000e+00> : vector<2xf32>
    %193 = vector.multi_reduction <add>, %192, %cst_109 [1] : vector<2x10xf32> to vector<2xf32>
    %194 = vector.shape_cast %193 : vector<2xf32> to vector<2x1xf32>
    %195 = vector.broadcast %194 : vector<2x1xf32> to vector<2x10xf32>
    %196 = arith.divf %192, %195 : vector<2x10xf32>
    %c0_110 = arith.constant 0 : index
    %c0_111 = arith.constant 0 : index
    %197 = vector.load %arg11[%c0_110, %c0_111] : memref<2x10xf32, #tpu.memory_space<vmem>>, vector<2x10xf32>
    tpu.vector_store %arg11[%c0_110, %c0_111], %196 {strides = array<i32>} : memref<2x10xf32, #tpu.memory_space<vmem>>, vector<2x10xf32>,
    return
  }
}

</mosaic_0001>

<llo_original>
// kernel: _lambda_.2
$region0: #{_lambda_.2}
  #allocation0 [shape = 'u32[]', space=smem, size = 0x4, offset = 0x4, fixed_abs, tag = 'smem constant byte address 0x4 - core index']
  #allocation1 [shape = 'u32[144,128]{1,0:T(1,128)}', space=vmem, size = 0x12000, scoped, tag = 'internal scratch']
  %s0 = inlined_call_operand.hbm [shape: bf16[1568,25], index: 0, kind: input, shape index: {}]
  %s1 = inlined_call_operand.hbm [shape: bf16[25,6], index: 1, kind: input, shape index: {}]
  %s2 = inlined_call_operand.hbm [shape: f32[1,6], index: 2, kind: input, shape index: {}]
  %s3 = inlined_call_operand.hbm [shape: f32[1,6], index: 3, kind: input, shape index: {}]
  %s4 = inlined_call_operand.hbm [shape: f32[1,6], index: 4, kind: input, shape index: {}]
  %s5 = inlined_call_operand.hbm [shape: f32[392,6], index: 5, kind: output, shape index: {}]
  %s6 = sld [smem:[#allocation0]]
  $region50: #{_lambda_.2} parent=0
    _
  %s8 = ssub.s32 1, %s6
  %s9 = scalar_select 0, %s8, %s6
  $region1: #{_lambda_.2} parent=0
    #allocation2 [shape = 'u8[401408]{0}', space=vmem, size = 0x62000, scoped, tag = 'input window, operand 0, single buffered']
    #allocation3 [shape = 's32[1]{0}', space=sflag, size = 0x4, scoped, tag = 'scoped memory for _lambda_.2']
    #allocation4 [shape = 's32[1]{0}', space=sflag, size = 0x4, scoped, tag = 'scoped memory for _lambda_.2']
    #allocation5 [shape = 'u8[8192]{0}', space=vmem, size = 0x2000, scoped, tag = 'input window, operand 1, single buffered']
    #allocation6 [shape = 's32[1]{0}', space=sflag, size = 0x4, scoped, tag = 'scoped memory for _lambda_.2']
    #allocation7 [shape = 'u8[512]{0}', space=vmem, size = 0x400, scoped, tag = 'input window, operand 2, single buffered']
    #allocation8 [shape = 'u8[512]{0}', space=vmem, size = 0x400, scoped, tag = 'input window, operand 3, single buffered']
    #allocation9 [shape = 's32[1]{0}', space=sflag, size = 0x4, scoped, tag = 'scoped memory for _lambda_.2']
    #allocation10 [shape = 'u8[512]{0}', space=vmem, size = 0x400, scoped, tag = 'input window, operand 4, single buffered']
    #allocation11 [shape = 'u8[200704]{0}', space=vmem, size = 0x31000, scoped, tag = 'output window, operand 0, single buffered']
    %10 = vsyncpa [#allocation3], 0
    %11 = vsyncpa [#allocation6], 0
    %12 = vsyncpa [#allocation9], 0
    %13 = vsyncpa [#allocation4], 0
    // Predicated region
    $region2: #{_lambda_.2} parent=1 // pred_check
      _
    $region3: #{_lambda_.2} parent=1 // pred_check_branch
      %15 = sbr.rel (0) target = $region5
    $region4: #{_lambda_.2} parent=1 // pred_region
      %s17 = ssub.s32 12544, 12544
      %18 = vsyncadd [#allocation3], %s17
      %s19 = sshll.u32 [#allocation2], 4
      %s20 = int_to_ptr.vmem [resolvable:$true] %s19
      %25 = dma.hbm_to_vmem [thread:$0]  %s0, 12544, %s20, [#allocation3], 64, 64, 4
    $region5: #{_lambda_.2} parent=1 // pred_fallthru
      _
    // Predicated region
    $region6: #{_lambda_.2} parent=1 // pred_check
      _
    $region7: #{_lambda_.2} parent=1 // pred_check_branch
      %27 = sbr.rel (0) target = $region9
    $region8: #{_lambda_.2} parent=1 // pred_region
      %s29 = ssub.s32 256, 256
      %30 = vsyncadd [#allocation6], %s29
      %s31 = sshll.u32 [#allocation5], 4
      %s32 = int_to_ptr.vmem [resolvable:$true] %s31
      %37 = dma.hbm_to_vmem [thread:$0]  %s1, 256, %s32, [#allocation6], 64, 64, 4
    $region9: #{_lambda_.2} parent=1 // pred_fallthru
      _
    // Predicated region
    $region10: #{_lambda_.2} parent=1 // pred_check
      _
    $region11: #{_lambda_.2} parent=1 // pred_check_branch
      %39 = sbr.rel (0) target = $region13
    $region12: #{_lambda_.2} parent=1 // pred_region
      %s41 = ssub.s32 16, 16
      %42 = vsyncadd [#allocation6], %s41
      %s44 = sshll.u32 [#allocation7], 4
      %s45 = int_to_ptr.vmem [resolvable:$true] %s44
      %47 = dma.hbm_to_vmem [thread:$0]  %s2, 16, %s45, [#allocation6]
    $region13: #{_lambda_.2} parent=1 // pred_fallthru
      _
    // Predicated region
    $region14: #{_lambda_.2} parent=1 // pred_check
      _
    $region15: #{_lambda_.2} parent=1 // pred_check_branch
      %49 = sbr.rel (0) target = $region17
    $region16: #{_lambda_.2} parent=1 // pred_region
      %s51 = ssub.s32 16, 16
      %52 = vsyncadd [#allocation9], %s51
      %s54 = sshll.u32 [#allocation8], 4
      %s55 = int_to_ptr.vmem [resolvable:$true] %s54
      %57 = dma.hbm_to_vmem [thread:$0]  %s3, 16, %s55, [#allocation9]
    $region17: #{_lambda_.2} parent=1 // pred_fallthru
      _
    // Predicated region
    $region18: #{_lambda_.2} parent=1 // pred_check
      _
    $region19: #{_lambda_.2} parent=1 // pred_check_branch
      %59 = sbr.rel (0) target = $region21
    $region20: #{_lambda_.2} parent=1 // pred_region
      %s61 = ssub.s32 16, 16
      %62 = vsyncadd [#allocation9], %s61
      %s64 = sshll.u32 [#allocation10], 4
      %s65 = int_to_ptr.vmem [resolvable:$true] %s64
      %67 = dma.hbm_to_vmem [thread:$0]  %s4, 16, %s65, [#allocation9]
    $region21: #{_lambda_.2} parent=1 // pred_fallthru
      _
    // Predicated region
    $region22: #{_lambda_.2} parent=1 // pred_check
      _
    $region23: #{_lambda_.2} parent=1 // pred_check_branch
      %69 = sbr.rel (0) target = $region25
    $region24: #{_lambda_.2} parent=1 // pred_region
      %70 = dma.done [#allocation3], 12544
    $region25: #{_lambda_.2} parent=1 // pred_fallthru
      _
    // Predicated region
    $region26: #{_lambda_.2} parent=1 // pred_check
      _
    $region27: #{_lambda_.2} parent=1 // pred_check_branch
      %72 = sbr.rel (0) target = $region29
    $region28: #{_lambda_.2} parent=1 // pred_region
      %73 = dma.done [#allocation6], 256
    $region29: #{_lambda_.2} parent=1 // pred_fallthru
      _
    // Predicated region
    $region30: #{_lambda_.2} parent=1 // pred_check
      _
    $region31: #{_lambda_.2} parent=1 // pred_check_branch
      %75 = sbr.rel (0) target = $region33
    $region32: #{_lambda_.2} parent=1 // pred_region
      %76 = dma.done [#allocation6], 16
    $region33: #{_lambda_.2} parent=1 // pred_fallthru
      _
    // Predicated region
    $region34: #{_lambda_.2} parent=1 // pred_check
      _
    $region35: #{_lambda_.2} parent=1 // pred_check_branch
      %78 = sbr.rel (0) target = $region37
    $region36: #{_lambda_.2} parent=1 // pred_region
      %79 = dma.done [#allocation9], 16
    $region37: #{_lambda_.2} parent=1 // pred_fallthru
      _
    // Predicated region
    $region38: #{_lambda_.2} parent=1 // pred_check
      _
    $region39: #{_lambda_.2} parent=1 // pred_check_branch
      %81 = sbr.rel (0) target = $region41
    $region40: #{_lambda_.2} parent=1 // pred_region
      %82 = dma.done [#allocation9], 16
    $region41: #{_lambda_.2} parent=1 // pred_fallthru
      _
    %v84 = vld [vmem:[#allocation2] sm:$0xf]
    %v85 = vld [vmem:[#allocation2 + $0x4] sm:$0xf]
    %v86 = vld [vmem:[#allocation2 + $0x8] sm:$0xf]
    %v87 = vld [vmem:[#allocation2 + $0xc] sm:$0xf]
    %v88 = vld [vmem:[#allocation2 + $0x10] sm:$0xf]
    %v89 = vld [vmem:[#allocation2 + $0x14] sm:$0xf]
    %v90 = vld [vmem:[#allocation2 + $0x18] sm:$0xf]
    %v91 = vld [vmem:[#allocation2 + $0x1c] sm:$0xf]
    %v92 = vld [vmem:[#allocation2 + $0x20] sm:$0xf]
    %v93 = vld [vmem:[#allocation2 + $0x24] sm:$0xf]
    %v94 = vld [vmem:[#allocation2 + $0x28] sm:$0xf]
    %v95 = vld [vmem:[#allocation2 + $0x2c] sm:$0xf]
    %v96 = vld [vmem:[#allocation2 + $0x30] sm:$0xf]
    %v97 = vld [vmem:[#allocation2 + $0x34] sm:$0xf]
    %v98 = vld [vmem:[#allocation2 + $0x38] sm:$0xf]
    %v99 = vld [vmem:[#allocation2 + $0x3c] sm:$0xf]
    %v100 = vld [vmem:[#allocation2 + $0x40] sm:$0xf]
    %v101 = vld [vmem:[#allocation2 + $0x44] sm:$0xf]
    %v102 = vld [vmem:[#allocation2 + $0x48] sm:$0xf]
    %v103 = vld [vmem:[#allocation2 + $0x4c] sm:$0xf]
    %v104 = vld [vmem:[#allocation2 + $0x50] sm:$0xf]
    %v105 = vld [vmem:[#allocation2 + $0x54] sm:$0xf]
    %v106 = vld [vmem:[#allocation2 + $0x58] sm:$0xf]
    %v107 = vld [vmem:[#allocation2 + $0x5c] sm:$0xf]
    %v108 = vld [vmem:[#allocation2 + $0x60] sm:$0xf]
    %v109 = vld [vmem:[#allocation2 + $0x64] sm:$0xf]
    %v110 = vld [vmem:[#allocation2 + $0x68] sm:$0xf]
    %v111 = vld [vmem:[#allocation2 + $0x6c] sm:$0xf]
    %v112 = vld [vmem:[#allocation2 + $0x70] sm:$0xf]
    %v113 = vld [vmem:[#allocation2 + $0x74] sm:$0xf]
    %v114 = vld [vmem:[#allocation2 + $0x78] sm:$0xf]
    %v115 = vld [vmem:[#allocation2 + $0x7c] sm:$0xf]
    %v116 = vld [vmem:[#allocation2 + $0x80] sm:$0xf]
    %v117 = vld [vmem:[#allocation2 + $0x84] sm:$0xf]
    %v118 = vld [vmem:[#allocation2 + $0x88] sm:$0xf]
    %v119 = vld [vmem:[#allocation2 + $0x8c] sm:$0xf]
    %v120 = vld [vmem:[#allocation2 + $0x90] sm:$0xf]
    %v121 = vld [vmem:[#allocation2 + $0x94] sm:$0xf]
    %v122 = vld [vmem:[#allocation2 + $0x98] sm:$0xf]
    %v123 = vld [vmem:[#allocation2 + $0x9c] sm:$0xf]
    %v124 = vld [vmem:[#allocation2 + $0xa0] sm:$0xf]
    %v125 = vld [vmem:[#allocation2 + $0xa4] sm:$0xf]
    %v126 = vld [vmem:[#allocation2 + $0xa8] sm:$0xf]
    %v127 = vld [vmem:[#allocation2 + $0xac] sm:$0xf]
    %v128 = vld [vmem:[#allocation2 + $0xb0] sm:$0xf]
    %v129 = vld [vmem:[#allocation2 + $0xb4] sm:$0xf]
    %v130 = vld [vmem:[#allocation2 + $0xb8] sm:$0xf]
    %v131 = vld [vmem:[#allocation2 + $0xbc] sm:$0xf]
    %v132 = vld [vmem:[#allocation2 + $0xc0] sm:$0xf]
    %v133 = vld [vmem:[#allocation2 + $0xc4] sm:$0xf]
    %v134 = vld [vmem:[#allocation2 + $0xc8] sm:$0xf]
    %v135 = vld [vmem:[#allocation2 + $0xcc] sm:$0xf]
    %v136 = vld [vmem:[#allocation2 + $0xd0] sm:$0xf]
    %v137 = vld [vmem:[#allocation2 + $0xd4] sm:$0xf]
    %v138 = vld [vmem:[#allocation2 + $0xd8] sm:$0xf]
    %v139 = vld [vmem:[#allocation2 + $0xdc] sm:$0xf]
    %v140 = vld [vmem:[#allocation2 + $0xe0] sm:$0xf]
    %v141 = vld [vmem:[#allocation2 + $0xe4] sm:$0xf]
    %v142 = vld [vmem:[#allocation2 + $0xe8] sm:$0xf]
    %v143 = vld [vmem:[#allocation2 + $0xec] sm:$0xf]
    %v144 = vld [vmem:[#allocation2 + $0xf0] sm:$0xf]
    %v145 = vld [vmem:[#allocation2 + $0xf4] sm:$0xf]
    %v146 = vld [vmem:[#allocation2 + $0xf8] sm:$0xf]
    %v147 = vld [vmem:[#allocation2 + $0xfc] sm:$0xf]
    %v148 = vld [vmem:[#allocation2 + $0x100] sm:$0xf]
    %v149 = vld [vmem:[#allocation2 + $0x104] sm:$0xf]
    %v150 = vld [vmem:[#allocation2 + $0x108] sm:$0xf]
    %v151 = vld [vmem:[#allocation2 + $0x10c] sm:$0xf]
    %v152 = vld [vmem:[#allocation2 + $0x110] sm:$0xf]
    %v153 = vld [vmem:[#allocation2 + $0x114] sm:$0xf]
    %v154 = vld [vmem:[#allocation2 + $0x118] sm:$0xf]
    %v155 = vld [vmem:[#allocation2 + $0x11c] sm:$0xf]
    %v156 = vld [vmem:[#allocation2 + $0x120] sm:$0xf]
    %v157 = vld [vmem:[#allocation2 + $0x124] sm:$0xf]
    %v158 = vld [vmem:[#allocation2 + $0x128] sm:$0xf]
    %v159 = vld [vmem:[#allocation2 + $0x12c] sm:$0xf]
    %v160 = vld [vmem:[#allocation2 + $0x130] sm:$0xf]
    %v161 = vld [vmem:[#allocation2 + $0x134] sm:$0xf]
    %v162 = vld [vmem:[#allocation2 + $0x138] sm:$0xf]
    %v163 = vld [vmem:[#allocation2 + $0x13c] sm:$0xf]
    %v164 = vld [vmem:[#allocation2 + $0x140] sm:$0xf]
    %v165 = vld [vmem:[#allocation2 + $0x144] sm:$0xf]
    %v166 = vld [vmem:[#allocation2 + $0x148] sm:$0xf]
    %v167 = vld [vmem:[#allocation2 + $0x14c] sm:$0xf]
    %v168 = vld [vmem:[#allocation2 + $0x150] sm:$0xf]
    %v169 = vld [vmem:[#allocation2 + $0x154] sm:$0xf]
    %v170 = vld [vmem:[#allocation2 + $0x158] sm:$0xf]
    %v171 = vld [vmem:[#allocation2 + $0x15c] sm:$0xf]
    %v172 = vld [vmem:[#allocation2 + $0x160] sm:$0xf]
    %v173 = vld [vmem:[#allocation2 + $0x164] sm:$0xf]
    %v174 = vld [vmem:[#allocation2 + $0x168] sm:$0xf]
    %v175 = vld [vmem:[#allocation2 + $0x16c] sm:$0xf]
    %v176 = vld [vmem:[#allocation2 + $0x170] sm:$0xf]
    %v177 = vld [vmem:[#allocation2 + $0x174] sm:$0xf]
    %v178 = vld [vmem:[#allocation2 + $0x178] sm:$0xf]
    %v179 = vld [vmem:[#allocation2 + $0x17c] sm:$0xf]
    %v180 = vld [vmem:[#allocation2 + $0x180] sm:$0xf]
    %v181 = vld [vmem:[#allocation2 + $0x184] sm:$0xf]
    %v182 = vld [vmem:[#allocation2 + $0x188] sm:$0xf]
    %v183 = vld [vmem:[#allocation2 + $0x18c] sm:$0xf]
    %v184 = vld [vmem:[#allocation2 + $0x190] sm:$0xf]
    %v185 = vld [vmem:[#allocation2 + $0x194] sm:$0xf]
    %v186 = vld [vmem:[#allocation2 + $0x198] sm:$0xf]
    %v187 = vld [vmem:[#allocation2 + $0x19c] sm:$0xf]
    %v188 = vld [vmem:[#allocation2 + $0x1a0] sm:$0xf]
    %v189 = vld [vmem:[#allocation2 + $0x1a4] sm:$0xf]
    %v190 = vld [vmem:[#allocation2 + $0x1a8] sm:$0xf]
    %v191 = vld [vmem:[#allocation2 + $0x1ac] sm:$0xf]
    %v192 = vld [vmem:[#allocation2 + $0x1b0] sm:$0xf]
    %v193 = vld [vmem:[#allocation2 + $0x1b4] sm:$0xf]
    %v194 = vld [vmem:[#allocation2 + $0x1b8] sm:$0xf]
    %v195 = vld [vmem:[#allocation2 + $0x1bc] sm:$0xf]
    %v196 = vld [vmem:[#allocation2 + $0x1c0] sm:$0xf]
    %v197 = vld [vmem:[#allocation2 + $0x1c4] sm:$0xf]
    %v198 = vld [vmem:[#allocation2 + $0x1c8] sm:$0xf]
    %v199 = vld [vmem:[#allocation2 + $0x1cc] sm:$0xf]
    %v200 = vld [vmem:[#allocation2 + $0x1d0] sm:$0xf]
    %v201 = vld [vmem:[#allocation2 + $0x1d4] sm:$0xf]
    %v202 = vld [vmem:[#allocation2 + $0x1d8] sm:$0xf]
    %v203 = vld [vmem:[#allocation2 + $0x1dc] sm:$0xf]
    %v204 = vld [vmem:[#allocation2 + $0x1e0] sm:$0xf]
    %v205 = vld [vmem:[#allocation2 + $0x1e4] sm:$0xf]
    %v206 = vld [vmem:[#allocation2 + $0x1e8] sm:$0xf]
    %v207 = vld [vmem:[#allocation2 + $0x1ec] sm:$0xf]
    %v208 = vld [vmem:[#allocation2 + $0x1f0] sm:$0xf]
    %v209 = vld [vmem:[#allocation2 + $0x1f4] sm:$0xf]
    %v210 = vld [vmem:[#allocation2 + $0x1f8] sm:$0xf]
    %v211 = vld [vmem:[#allocation2 + $0x1fc] sm:$0xf]
    %v212 = vld [vmem:[#allocation2 + $0x200] sm:$0xf]
    %v213 = vld [vmem:[#allocation2 + $0x204] sm:$0xf]
    %v214 = vld [vmem:[#allocation2 + $0x208] sm:$0xf]
    %v215 = vld [vmem:[#allocation2 + $0x20c] sm:$0xf]
    %v216 = vld [vmem:[#allocation2 + $0x210] sm:$0xf]
    %v217 = vld [vmem:[#allocation2 + $0x214] sm:$0xf]
    %v218 = vld [vmem:[#allocation2 + $0x218] sm:$0xf]
    %v219 = vld [vmem:[#allocation2 + $0x21c] sm:$0xf]
    %v220 = vld [vmem:[#allocation2 + $0x220] sm:$0xf]
    %v221 = vld [vmem:[#allocation2 + $0x224] sm:$0xf]
    %v222 = vld [vmem:[#allocation2 + $0x228] sm:$0xf]
    %v223 = vld [vmem:[#allocation2 + $0x22c] sm:$0xf]
    %v224 = vld [vmem:[#allocation2 + $0x230] sm:$0xf]
    %v225 = vld [vmem:[#allocation2 + $0x234] sm:$0xf]
    %v226 = vld [vmem:[#allocation2 + $0x238] sm:$0xf]
    %v227 = vld [vmem:[#allocation2 + $0x23c] sm:$0xf]
    %v228 = vld [vmem:[#allocation2 + $0x240] sm:$0xf]
    %v229 = vld [vmem:[#allocation2 + $0x244] sm:$0xf]
    %v230 = vld [vmem:[#allocation2 + $0x248] sm:$0xf]
    %v231 = vld [vmem:[#allocation2 + $0x24c] sm:$0xf]
    %v232 = vld [vmem:[#allocation2 + $0x250] sm:$0xf]
    %v233 = vld [vmem:[#allocation2 + $0x254] sm:$0xf]
    %v234 = vld [vmem:[#allocation2 + $0x258] sm:$0xf]
    %v235 = vld [vmem:[#allocation2 + $0x25c] sm:$0xf]
    %v236 = vld [vmem:[#allocation2 + $0x260] sm:$0xf]
    %v237 = vld [vmem:[#allocation2 + $0x264] sm:$0xf]
    %v238 = vld [vmem:[#allocation2 + $0x268] sm:$0xf]
    %v239 = vld [vmem:[#allocation2 + $0x26c] sm:$0xf]
    %v240 = vld [vmem:[#allocation2 + $0x270] sm:$0xf]
    %v241 = vld [vmem:[#allocation2 + $0x274] sm:$0xf]
    %v242 = vld [vmem:[#allocation2 + $0x278] sm:$0xf]
    %v243 = vld [vmem:[#allocation2 + $0x27c] sm:$0xf]
    %v244 = vld [vmem:[#allocation2 + $0x280] sm:$0xf]
    %v245 = vld [vmem:[#allocation2 + $0x284] sm:$0xf]
    %v246 = vld [vmem:[#allocation2 + $0x288] sm:$0xf]
    %v247 = vld [vmem:[#allocation2 + $0x28c] sm:$0xf]
    %v248 = vld [vmem:[#allocation2 + $0x290] sm:$0xf]
    %v249 = vld [vmem:[#allocation2 + $0x294] sm:$0xf]
    %v250 = vld [vmem:[#allocation2 + $0x298] sm:$0xf]
    %v251 = vld [vmem:[#allocation2 + $0x29c] sm:$0xf]
    %v252 = vld [vmem:[#allocation2 + $0x2a0] sm:$0xf]
    %v253 = vld [vmem:[#allocation2 + $0x2a4] sm:$0xf]
    %v254 = vld [vmem:[#allocation2 + $0x2a8] sm:$0xf]
    %v255 = vld [vmem:[#allocation2 + $0x2ac] sm:$0xf]
    %v256 = vld [vmem:[#allocation2 + $0x2b0] sm:$0xf]
    %v257 = vld [vmem:[#allocation2 + $0x2b4] sm:$0xf]
    %v258 = vld [vmem:[#allocation2 + $0x2b8] sm:$0xf]
    %v259 = vld [vmem:[#allocation2 + $0x2bc] sm:$0xf]
    %v260 = vld [vmem:[#allocation2 + $0x2c0] sm:$0xf]
    %v261 = vld [vmem:[#allocation2 + $0x2c4] sm:$0xf]
    %v262 = vld [vmem:[#allocation2 + $0x2c8] sm:$0xf]
    %v263 = vld [vmem:[#allocation2 + $0x2cc] sm:$0xf]
    %v264 = vld [vmem:[#allocation2 + $0x2d0] sm:$0xf]
    %v265 = vld [vmem:[#allocation2 + $0x2d4] sm:$0xf]
    %v266 = vld [vmem:[#allocation2 + $0x2d8] sm:$0xf]
    %v267 = vld [vmem:[#allocation2 + $0x2dc] sm:$0xf]
    %v268 = vld [vmem:[#allocation2 + $0x2e0] sm:$0xf]
    %v269 = vld [vmem:[#allocation2 + $0x2e4] sm:$0xf]
    %v270 = vld [vmem:[#allocation2 + $0x2e8] sm:$0xf]
    %v271 = vld [vmem:[#allocation2 + $0x2ec] sm:$0xf]
    %v272 = vld [vmem:[#allocation2 + $0x2f0] sm:$0xf]
    %v273 = vld [vmem:[#allocation2 + $0x2f4] sm:$0xf]
    %v274 = vld [vmem:[#allocation2 + $0x2f8] sm:$0xf]
    %v275 = vld [vmem:[#allocation2 + $0x2fc] sm:$0xf]
    %v276 = vld [vmem:[#allocation2 + $0x300] sm:$0xf]
    %v277 = vld [vmem:[#allocation2 + $0x304] sm:$0xf]
    %v278 = vld [vmem:[#allocation2 + $0x308] sm:$0xf]
    %v279 = vld [vmem:[#allocation2 + $0x30c] sm:$0xf]
    %v280 = vld [vmem:[#allocation5] sm:$0xf]
    %v281 = vld [vmem:[#allocation5 + $0x4] sm:$0xf]
    %v282 = vld [vmem:[#allocation5 + $0x8] sm:$0xf]
    %v283 = vld [vmem:[#allocation5 + $0xc] sm:$0x1]
    %v284 = vld [vmem:[#allocation7] sm:$0x1]
    %v285 = vld [vmem:[#allocation8] sm:$0x1]
    %v286 = vld [vmem:[#allocation10] sm:$0x1]
    %v288 = vlaneseq
    %v289 = vshrl.u32 %v288, 7
    %v290 = vsub.s32 0, %v289
    %v291 = vrot.slane %v284, %v290
    %v489 = vunpack.c.l.b16 %v84
    %v490 = vunpack.c.l.b16 %v85
    %v491 = vunpack.c.l.b16 %v86
    %v492 = vunpack.c.l.b16 %v87
    %v493 = vunpack.c.l.b16 %v88
    %v494 = vunpack.c.l.b16 %v89
    %v495 = vunpack.c.l.b16 %v90
    %v496 = vunpack.c.l.b16 %v91
    %v497 = vunpack.c.l.b16 %v92
    %v498 = vunpack.c.l.b16 %v93
    %v499 = vunpack.c.l.b16 %v94
    %v500 = vunpack.c.l.b16 %v95
    %v501 = vunpack.c.l.b16 %v96
    %v502 = vunpack.c.l.b16 %v97
    %v503 = vunpack.c.l.b16 %v98
    %v504 = vunpack.c.l.b16 %v99
    %v505 = vunpack.c.l.b16 %v100
    %v506 = vunpack.c.l.b16 %v101
    %v507 = vunpack.c.l.b16 %v102
    %v508 = vunpack.c.l.b16 %v103
    %v509 = vunpack.c.l.b16 %v104
    %v510 = vunpack.c.l.b16 %v105
    %v511 = vunpack.c.l.b16 %v106
    %v512 = vunpack.c.l.b16 %v107
    %v513 = vunpack.c.l.b16 %v108
    %v514 = vunpack.c.l.b16 %v109
    %v515 = vunpack.c.l.b16 %v110
    %v516 = vunpack.c.l.b16 %v111
    %v517 = vunpack.c.l.b16 %v112
    %v518 = vunpack.c.l.b16 %v113
    %v519 = vunpack.c.l.b16 %v114
    %v520 = vunpack.c.l.b16 %v115
    %v521 = vunpack.c.l.b16 %v116
    %v522 = vunpack.c.l.b16 %v117
    %v523 = vunpack.c.l.b16 %v118
    %v524 = vunpack.c.l.b16 %v119
    %v525 = vunpack.c.l.b16 %v120
    %v526 = vunpack.c.l.b16 %v121
    %v527 = vunpack.c.l.b16 %v122
    %v528 = vunpack.c.l.b16 %v123
    %v529 = vunpack.c.l.b16 %v124
    %v530 = vunpack.c.l.b16 %v125
    %v531 = vunpack.c.l.b16 %v126
    %v532 = vunpack.c.l.b16 %v127
    %v533 = vunpack.c.l.b16 %v128
    %v534 = vunpack.c.l.b16 %v129
    %v535 = vunpack.c.l.b16 %v130
    %v536 = vunpack.c.l.b16 %v131
    %v537 = vunpack.c.l.b16 %v132
    %v538 = vunpack.c.l.b16 %v133
    %v539 = vunpack.c.l.b16 %v134
    %v540 = vunpack.c.l.b16 %v135
    %v541 = vunpack.c.l.b16 %v136
    %v542 = vunpack.c.l.b16 %v137
    %v543 = vunpack.c.l.b16 %v138
    %v544 = vunpack.c.l.b16 %v139
    %v545 = vunpack.c.l.b16 %v140
    %v546 = vunpack.c.l.b16 %v141
    %v547 = vunpack.c.l.b16 %v142
    %v548 = vunpack.c.l.b16 %v143
    %v549 = vunpack.c.l.b16 %v144
    %v550 = vunpack.c.l.b16 %v145
    %v551 = vunpack.c.l.b16 %v146
    %v552 = vunpack.c.l.b16 %v147
    %v553 = vunpack.c.l.b16 %v148
    %v554 = vunpack.c.l.b16 %v149
    %v555 = vunpack.c.l.b16 %v150
    %v556 = vunpack.c.l.b16 %v151
    %v557 = vunpack.c.l.b16 %v152
    %v558 = vunpack.c.l.b16 %v153
    %v559 = vunpack.c.l.b16 %v154
    %v560 = vunpack.c.l.b16 %v155
    %v561 = vunpack.c.l.b16 %v156
    %v562 = vunpack.c.l.b16 %v157
    %v563 = vunpack.c.l.b16 %v158
    %v564 = vunpack.c.l.b16 %v159
    %v565 = vunpack.c.l.b16 %v160
    %v566 = vunpack.c.l.b16 %v161
    %v567 = vunpack.c.l.b16 %v162
    %v568 = vunpack.c.l.b16 %v163
    %v569 = vunpack.c.l.b16 %v164
    %v570 = vunpack.c.l.b16 %v165
    %v571 = vunpack.c.l.b16 %v166
    %v572 = vunpack.c.l.b16 %v167
    %v573 = vunpack.c.l.b16 %v168
    %v574 = vunpack.c.l.b16 %v169
    %v575 = vunpack.c.l.b16 %v170
    %v576 = vunpack.c.l.b16 %v171
    %v577 = vunpack.c.l.b16 %v172
    %v578 = vunpack.c.l.b16 %v173
    %v579 = vunpack.c.l.b16 %v174
    %v580 = vunpack.c.l.b16 %v175
    %v581 = vunpack.c.l.b16 %v176
    %v582 = vunpack.c.l.b16 %v177
    %v583 = vunpack.c.l.b16 %v178
    %v584 = vunpack.c.l.b16 %v179
    %v585 = vunpack.c.l.b16 %v180
    %v586 = vunpack.c.l.b16 %v181
    %v587 = vunpack.c.l.b16 %v182
    %v588 = vunpack.c.l.b16 %v183
    %v589 = vunpack.c.l.b16 %v184
    %v590 = vunpack.c.l.b16 %v185
    %v591 = vunpack.c.l.b16 %v186
    %v592 = vunpack.c.l.b16 %v187
    %v593 = vunpack.c.l.b16 %v188
    %v594 = vunpack.c.l.b16 %v189
    %v595 = vunpack.c.l.b16 %v190
    %v596 = vunpack.c.l.b16 %v191
    %v597 = vunpack.c.l.b16 %v192
    %v598 = vunpack.c.l.b16 %v193
    %v599 = vunpack.c.l.b16 %v194
    %v600 = vunpack.c.l.b16 %v195
    %v601 = vunpack.c.l.b16 %v196
    %v602 = vunpack.c.l.b16 %v197
    %v603 = vunpack.c.l.b16 %v198
    %v604 = vunpack.c.l.b16 %v199
    %v605 = vunpack.c.l.b16 %v200
    %v606 = vunpack.c.l.b16 %v201
    %v607 = vunpack.c.l.b16 %v202
    %v608 = vunpack.c.l.b16 %v203
    %v609 = vunpack.c.l.b16 %v204
    %v610 = vunpack.c.l.b16 %v205
    %v611 = vunpack.c.l.b16 %v206
    %v612 = vunpack.c.l.b16 %v207
    %v613 = vunpack.c.l.b16 %v208
    %v614 = vunpack.c.l.b16 %v209
    %v615 = vunpack.c.l.b16 %v210
    %v616 = vunpack.c.l.b16 %v211
    %v617 = vunpack.c.l.b16 %v212
    %v618 = vunpack.c.l.b16 %v213
    %v619 = vunpack.c.l.b16 %v214
    %v620 = vunpack.c.l.b16 %v215
    %v621 = vunpack.c.l.b16 %v216
    %v622 = vunpack.c.l.b16 %v217
    %v623 = vunpack.c.l.b16 %v218
    %v624 = vunpack.c.l.b16 %v219
    %v625 = vunpack.c.l.b16 %v220
    %v626 = vunpack.c.l.b16 %v221
    %v627 = vunpack.c.l.b16 %v222
    %v628 = vunpack.c.l.b16 %v223
    %v629 = vunpack.c.l.b16 %v224
    %v630 = vunpack.c.l.b16 %v225
    %v631 = vunpack.c.l.b16 %v226
    %v632 = vunpack.c.l.b16 %v227
    %v633 = vunpack.c.l.b16 %v228
    %v634 = vunpack.c.l.b16 %v229
    %v635 = vunpack.c.l.b16 %v230
    %v636 = vunpack.c.l.b16 %v231
    %v637 = vunpack.c.l.b16 %v232
    %v638 = vunpack.c.l.b16 %v233
    %v639 = vunpack.c.l.b16 %v234
    %v640 = vunpack.c.l.b16 %v235
    %v641 = vunpack.c.l.b16 %v236
    %v642 = vunpack.c.l.b16 %v237
    %v643 = vunpack.c.l.b16 %v238
    %v644 = vunpack.c.l.b16 %v239
    %v645 = vunpack.c.l.b16 %v240
    %v646 = vunpack.c.l.b16 %v241
    %v647 = vunpack.c.l.b16 %v242
    %v648 = vunpack.c.l.b16 %v243
    %v649 = vunpack.c.l.b16 %v244
    %v650 = vunpack.c.l.b16 %v245
    %v651 = vunpack.c.l.b16 %v246
    %v652 = vunpack.c.l.b16 %v247
    %v653 = vunpack.c.l.b16 %v248
    %v654 = vunpack.c.l.b16 %v249
    %v655 = vunpack.c.l.b16 %v250
    %v656 = vunpack.c.l.b16 %v251
    %v657 = vunpack.c.l.b16 %v252
    %v658 = vunpack.c.l.b16 %v253
    %v659 = vunpack.c.l.b16 %v254
    %v660 = vunpack.c.l.b16 %v255
    %v661 = vunpack.c.l.b16 %v256
    %v662 = vunpack.c.l.b16 %v257
    %v663 = vunpack.c.l.b16 %v258
    %v664 = vunpack.c.l.b16 %v259
    %v665 = vunpack.c.l.b16 %v260
    %v666 = vunpack.c.l.b16 %v261
    %v667 = vunpack.c.l.b16 %v262
    %v668 = vunpack.c.l.b16 %v263
    %v669 = vunpack.c.l.b16 %v264
    %v670 = vunpack.c.l.b16 %v265
    %v671 = vunpack.c.l.b16 %v266
    %v672 = vunpack.c.l.b16 %v267
    %v673 = vunpack.c.l.b16 %v268
    %v674 = vunpack.c.l.b16 %v269
    %v675 = vunpack.c.l.b16 %v270
    %v676 = vunpack.c.l.b16 %v271
    %v677 = vunpack.c.l.b16 %v272
    %v678 = vunpack.c.l.b16 %v273
    %v679 = vunpack.c.l.b16 %v274
    %v680 = vunpack.c.l.b16 %v275
    %v681 = vunpack.c.l.b16 %v276
    %v682 = vunpack.c.l.b16 %v277
    %v683 = vunpack.c.l.b16 %v278
    %v684 = vunpack.c.l.b16 %v279
    %v685 = vpack.c.b16 %v490, %v489
    %v686 = vpack.c.b16 %v492, %v491
    %v687 = vpack.c.b16 %v494, %v493
    %v688 = vpack.c.b16 %v496, %v495
    %v689 = vpack.c.b16 %v498, %v497
    %v690 = vpack.c.b16 %v500, %v499
    %v691 = vpack.c.b16 %v502, %v501
    %v692 = vpack.c.b16 %v504, %v503
    %v693 = vpack.c.b16 %v506, %v505
    %v694 = vpack.c.b16 %v508, %v507
    %v695 = vpack.c.b16 %v510, %v509
    %v696 = vpack.c.b16 %v512, %v511
    %v697 = vpack.c.b16 %v514, %v513
    %v698 = vpack.c.b16 %v516, %v515
    %v699 = vpack.c.b16 %v518, %v517
    %v700 = vpack.c.b16 %v520, %v519
    %v701 = vpack.c.b16 %v522, %v521
    %v702 = vpack.c.b16 %v524, %v523
    %v703 = vpack.c.b16 %v526, %v525
    %v704 = vpack.c.b16 %v528, %v527
    %v705 = vpack.c.b16 %v530, %v529
    %v706 = vpack.c.b16 %v532, %v531
    %v707 = vpack.c.b16 %v534, %v533
    %v708 = vpack.c.b16 %v536, %v535
    %v709 = vpack.c.b16 %v538, %v537
    %v710 = vpack.c.b16 %v540, %v539
    %v711 = vpack.c.b16 %v542, %v541
    %v712 = vpack.c.b16 %v544, %v543
    %v713 = vpack.c.b16 %v546, %v545
    %v714 = vpack.c.b16 %v548, %v547
    %v715 = vpack.c.b16 %v550, %v549
    %v716 = vpack.c.b16 %v552, %v551
    %v717 = vpack.c.b16 %v554, %v553
    %v718 = vpack.c.b16 %v556, %v555
    %v719 = vpack.c.b16 %v558, %v557
    %v720 = vpack.c.b16 %v560, %v559
    %v721 = vpack.c.b16 %v562, %v561
    %v722 = vpack.c.b16 %v564, %v563
    %v723 = vpack.c.b16 %v566, %v565
    %v724 = vpack.c.b16 %v568, %v567
    %v725 = vpack.c.b16 %v570, %v569
    %v726 = vpack.c.b16 %v572, %v571
    %v727 = vpack.c.b16 %v574, %v573
    %v728 = vpack.c.b16 %v576, %v575
    %v729 = vpack.c.b16 %v578, %v577
    %v730 = vpack.c.b16 %v580, %v579
    %v731 = vpack.c.b16 %v582, %v581
    %v732 = vpack.c.b16 %v584, %v583
    %v733 = vpack.c.b16 %v586, %v585
    %v734 = vpack.c.b16 %v588, %v587
    %v735 = vpack.c.b16 %v590, %v589
    %v736 = vpack.c.b16 %v592, %v591
    %v737 = vpack.c.b16 %v594, %v593
    %v738 = vpack.c.b16 %v596, %v595
    %v739 = vpack.c.b16 %v598, %v597
    %v740 = vpack.c.b16 %v600, %v599
    %v741 = vpack.c.b16 %v602, %v601
    %v742 = vpack.c.b16 %v604, %v603
    %v743 = vpack.c.b16 %v606, %v605
    %v744 = vpack.c.b16 %v608, %v607
    %v745 = vpack.c.b16 %v610, %v609
    %v746 = vpack.c.b16 %v612, %v611
    %v747 = vpack.c.b16 %v614, %v613
    %v748 = vpack.c.b16 %v616, %v615
    %v749 = vpack.c.b16 %v618, %v617
    %v750 = vpack.c.b16 %v620, %v619
    %v751 = vpack.c.b16 %v622, %v621
    %v752 = vpack.c.b16 %v624, %v623
    %v753 = vpack.c.b16 %v626, %v625
    %v754 = vpack.c.b16 %v628, %v627
    %v755 = vpack.c.b16 %v630, %v629
    %v756 = vpack.c.b16 %v632, %v631
    %v757 = vpack.c.b16 %v634, %v633
    %v758 = vpack.c.b16 %v636, %v635
    %v759 = vpack.c.b16 %v638, %v637
    %v760 = vpack.c.b16 %v640, %v639
    %v761 = vpack.c.b16 %v642, %v641
    %v762 = vpack.c.b16 %v644, %v643
    %v763 = vpack.c.b16 %v646, %v645
    %v764 = vpack.c.b16 %v648, %v647
    %v765 = vpack.c.b16 %v650, %v649
    %v766 = vpack.c.b16 %v652, %v651
    %v767 = vpack.c.b16 %v654, %v653
    %v768 = vpack.c.b16 %v656, %v655
    %v769 = vpack.c.b16 %v658, %v657
    %v770 = vpack.c.b16 %v660, %v659
    %v771 = vpack.c.b16 %v662, %v661
    %v772 = vpack.c.b16 %v664, %v663
    %v773 = vpack.c.b16 %v666, %v665
    %v774 = vpack.c.b16 %v668, %v667
    %v775 = vpack.c.b16 %v670, %v669
    %v776 = vpack.c.b16 %v672, %v671
    %v777 = vpack.c.b16 %v674, %v673
    %v778 = vpack.c.b16 %v676, %v675
    %v779 = vpack.c.b16 %v678, %v677
    %v780 = vpack.c.b16 %v680, %v679
    %v781 = vpack.c.b16 %v682, %v681
    %v782 = vpack.c.b16 %v684, %v683
    %v787 = vunpack.c.l.b16 %v280
    %v788 = vunpack.c.l.b16 %v281
    %v789 = vunpack.c.l.b16 %v282
    %v790 = vunpack.c.l.b16 %v283
    %v791 = vpack.c.b16 %v788, %v787
    %v792 = vpack.c.b16 %v790, %v789
    %vm794 = vcmask 203776
    %v796 = vsel %vm794, %v685, 0
    %v799 = vsel %vm794, %v686, 0
    %v802 = vsel %vm794, %v687, 0
    %v805 = vsel %vm794, %v688, 0
    %v808 = vsel %vm794, %v689, 0
    %v811 = vsel %vm794, %v690, 0
    %v814 = vsel %vm794, %v691, 0
    %v817 = vsel %vm794, %v692, 0
    %v820 = vsel %vm794, %v693, 0
    %v823 = vsel %vm794, %v694, 0
    %v826 = vsel %vm794, %v695, 0
    %v829 = vsel %vm794, %v696, 0
    %v832 = vsel %vm794, %v697, 0
    %v835 = vsel %vm794, %v698, 0
    %v838 = vsel %vm794, %v699, 0
    %v841 = vsel %vm794, %v700, 0
    %v844 = vsel %vm794, %v701, 0
    %v847 = vsel %vm794, %v702, 0
    %v850 = vsel %vm794, %v703, 0
    %v853 = vsel %vm794, %v704, 0
    %v856 = vsel %vm794, %v705, 0
    %v859 = vsel %vm794, %v706, 0
    %v862 = vsel %vm794, %v707, 0
    %v865 = vsel %vm794, %v708, 0
    %v868 = vsel %vm794, %v709, 0
    %v871 = vsel %vm794, %v710, 0
    %v874 = vsel %vm794, %v711, 0
    %v877 = vsel %vm794, %v712, 0
    %v880 = vsel %vm794, %v713, 0
    %v883 = vsel %vm794, %v714, 0
    %v886 = vsel %vm794, %v715, 0
    %v889 = vsel %vm794, %v716, 0
    %v892 = vsel %vm794, %v717, 0
    %v895 = vsel %vm794, %v718, 0
    %v898 = vsel %vm794, %v719, 0
    %v901 = vsel %vm794, %v720, 0
    %v904 = vsel %vm794, %v721, 0
    %v907 = vsel %vm794, %v722, 0
    %v910 = vsel %vm794, %v723, 0
    %v913 = vsel %vm794, %v724, 0
    %v916 = vsel %vm794, %v725, 0
    %v919 = vsel %vm794, %v726, 0
    %v922 = vsel %vm794, %v727, 0
    %v925 = vsel %vm794, %v728, 0
    %v928 = vsel %vm794, %v729, 0
    %v931 = vsel %vm794, %v730, 0
    %v934 = vsel %vm794, %v731, 0
    %v937 = vsel %vm794, %v732, 0
    %v940 = vsel %vm794, %v733, 0
    %v943 = vsel %vm794, %v734, 0
    %v946 = vsel %vm794, %v735, 0
    %v949 = vsel %vm794, %v736, 0
    %v952 = vsel %vm794, %v737, 0
    %v955 = vsel %vm794, %v738, 0
    %v958 = vsel %vm794, %v739, 0
    %v961 = vsel %vm794, %v740, 0
    %v964 = vsel %vm794, %v741, 0
    %v967 = vsel %vm794, %v742, 0
    %v970 = vsel %vm794, %v743, 0
    %v973 = vsel %vm794, %v744, 0
    %v976 = vsel %vm794, %v745, 0
    %v979 = vsel %vm794, %v746, 0
    %v982 = vsel %vm794, %v747, 0
    %v985 = vsel %vm794, %v748, 0
    %v988 = vsel %vm794, %v749, 0
    %v991 = vsel %vm794, %v750, 0
    %v994 = vsel %vm794, %v751, 0
    %v997 = vsel %vm794, %v752, 0
    %v1000 = vsel %vm794, %v753, 0
    %v1003 = vsel %vm794, %v754, 0
    %v1006 = vsel %vm794, %v755, 0
    %v1009 = vsel %vm794, %v756, 0
    %v1012 = vsel %vm794, %v757, 0
    %v1015 = vsel %vm794, %v758, 0
    %v1018 = vsel %vm794, %v759, 0
    %v1021 = vsel %vm794, %v760, 0
    %v1024 = vsel %vm794, %v761, 0
    %v1027 = vsel %vm794, %v762, 0
    %v1030 = vsel %vm794, %v763, 0
    %v1033 = vsel %vm794, %v764, 0
    %v1036 = vsel %vm794, %v765, 0
    %v1039 = vsel %vm794, %v766, 0
    %v1042 = vsel %vm794, %v767, 0
    %v1045 = vsel %vm794, %v768, 0
    %v1048 = vsel %vm794, %v769, 0
    %v1051 = vsel %vm794, %v770, 0
    %v1054 = vsel %vm794, %v771, 0
    %v1057 = vsel %vm794, %v772, 0
    %v1060 = vsel %vm794, %v773, 0
    %v1063 = vsel %vm794, %v774, 0
    %v1066 = vsel %vm794, %v775, 0
    %v1069 = vsel %vm794, %v776, 0
    %v1072 = vsel %vm794, %v777, 0
    %v1075 = vsel %vm794, %v778, 0
    %v1078 = vsel %vm794, %v779, 0
    %v1081 = vsel %vm794, %v780, 0
    %v1084 = vsel %vm794, %v781, 0
    %v1087 = vsel %vm794, %v782, 0
    %vm1089 = vcmask 1043456
    %vm1090 = vcmask 1044480
    %v1091 = vsel %vm1089, 4294967295, 65535
    %v1092 = vsel %vm1090, %v1091, 0
    %v1094 = vand.u32 %v792, %v1092
    %1096 = vmatprep.subr.bf16.mxu0 0
    %1097 = vmatpush1.bf16.msra.mxu0 %v791
    %1098 = vmatprep.subr.bf16.mxu0 0
    %1099 = vmatpush1.bf16.msra.mxu0 %v1094
    %1100 = vmatprep.subr.bf16.mxu0 0
    %1101 = vmatpush1.bf16.msra.mxu0 0
    %1102 = vmatprep.subr.bf16.mxu0 0
    %1103 = vmatpush1.bf16.msra.mxu0 0
    %1104 = vmatprep.subr.bf16.mxu0 0
    %1105 = vmatpush1.bf16.msra.mxu0 0
    %1106 = vmatprep.subr.bf16.mxu0 0
    %1107 = vmatpush1.bf16.msra.mxu0 0
    %1108 = vmatprep.subr.bf16.mxu0 0
    %1109 = vmatpush1.bf16.msra.mxu0 0
    %1110 = vmatprep.subr.bf16.mxu0 0
    %1111 = vmatpush1.bf16.msra.mxu0 0
    %1112 = vmatprep.subr.bf16.mxu0 0
    %1113 = vmatpush1.bf16.msra.mxu0 0
    %1114 = vmatprep.subr.bf16.mxu0 0
    %1115 = vmatpush1.bf16.msra.mxu0 0
    %1116 = vmatprep.subr.bf16.mxu0 0
    %1117 = vmatpush1.bf16.msra.mxu0 0
    %1118 = vmatprep.subr.bf16.mxu0 0
    %1119 = vmatpush1.bf16.msra.mxu0 0
    %1120 = vmatprep.subr.bf16.mxu0 0
    %1121 = vmatpush1.bf16.msra.mxu0 0
    %1122 = vmatprep.subr.bf16.mxu0 0
    %1123 = vmatpush1.bf16.msra.mxu0 0
    %1124 = vmatprep.subr.bf16.mxu0 0
    %1125 = vmatpush1.bf16.msra.mxu0 0
    %1126 = vmatprep.subr.bf16.mxu0 0
    %1127 = vmatpush1.bf16.msra.mxu0 0
    %1128 = vmatprep.mubr.bf16.mxu0 0
    %1129 = vmatmul.mubr.bf16.gmra.mrb[0].mxu0 %v796
    %v1130 = vpop.f32.mrb[0].mxu0
    %v1131 = vadd.f32 %v291, %v1130
    %v1132 = vpop.f32.mrb[0].mxu0
    %v1133 = vpop.f32.mrb[0].mxu0
    %v1134 = vadd.f32 %v291, %v1133
    %v1135 = vpop.f32.mrb[0].mxu0
    %1136 = vmatprep.mubr.bf16.mxu0 0
    %1137 = vmatmul.mubr.bf16.gmra.mrb[0].mxu0 %v799
    %v1138 = vpop.f32.mrb[0].mxu0
    %v1139 = vadd.f32 %v291, %v1138
    %v1140 = vpop.f32.mrb[0].mxu0
    %v1141 = vpop.f32.mrb[0].mxu0
    %v1142 = vadd.f32 %v291, %v1141
    %v1143 = vpop.f32.mrb[0].mxu0
    %1144 = vmatprep.mubr.bf16.mxu0 0
    %1145 = vmatmul.mubr.bf16.gmra.mrb[0].mxu0 %v802
    %v1146 = vpop.f32.mrb[0].mxu0
    %v1147 = vadd.f32 %v291, %v1146
    %v1148 = vpop.f32.mrb[0].mxu0
    %v1149 = vpop.f32.mrb[0].mxu0
    %v1150 = vadd.f32 %v291, %v1149
    %v1151 = vpop.f32.mrb[0].mxu0
    %1152 = vmatprep.mubr.bf16.mxu0 0
    %1153 = vmatmul.mubr.bf16.gmra.mrb[0].mxu0 %v805
    %v1154 = vpop.f32.mrb[0].mxu0
    %v1155 = vadd.f32 %v291, %v1154
    %v1156 = vpop.f32.mrb[0].mxu0
    %v1157 = vpop.f32.mrb[0].mxu0
    %v1158 = vadd.f32 %v291, %v1157
    %v1159 = vpop.f32.mrb[0].mxu0
    %1160 = vmatprep.mubr.bf16.mxu0 0
    %1161 = vmatmul.mubr.bf16.gmra.mrb[0].mxu0 %v808
    %v1162 = vpop.f32.mrb[0].mxu0
    %v1163 = vadd.f32 %v291, %v1162
    %v1164 = vpop.f32.mrb[0].mxu0
    %v1165 = vpop.f32.mrb[0].mxu0
    %v1166 = vadd.f32 %v291, %v1165
    %v1167 = vpop.f32.mrb[0].mxu0
    %1168 = vmatprep.mubr.bf16.mxu0 0
    %1169 = vmatmul.mubr.bf16.gmra.mrb[0].mxu0 %v811
    %v1170 = vpop.f32.mrb[0].mxu0
    %v1171 = vadd.f32 %v291, %v1170
    %v1172 = vpop.f32.mrb[0].mxu0
    %v1173 = vpop.f32.mrb[0].mxu0
    %v1174 = vadd.f32 %v291, %v1173
    %v1175 = vpop.f32.mrb[0].mxu0
    %1176 = vmatprep.mubr.bf16.mxu0 0
    %1177 = vmatmul.mubr.bf16.gmra.mrb[0].mxu0 %v814
    %v1178 = vpop.f32.mrb[0].mxu0
    %v1179 = vadd.f32 %v291, %v1178
    %v1180 = vpop.f32.mrb[0].mxu0
    %v1181 = vpop.f32.mrb[0].mxu0
    %v1182 = vadd.f32 %v291, %v1181
    %v1183 = vpop.f32.mrb[0].mxu0
    %1184 = vmatprep.mubr.bf16.mxu0 0
    %1185 = vmatmul.mubr.bf16.gmra.mrb[0].mxu0 %v817
    %v1186 = vpop.f32.mrb[0].mxu0
    %v1187 = vadd.f32 %v291, %v1186
    %v1188 = vpop.f32.mrb[0].mxu0
    %v1189 = vpop.f32.mrb[0].mxu0
    %v1190 = vadd.f32 %v291, %v1189
    %v1191 = vpop.f32.mrb[0].mxu0
    %1192 = vmatprep.mubr.bf16.mxu0 0
    %1193 = vmatmul.mubr.bf16.gmra.mrb[0].mxu0 %v820
    %v1194 = vpop.f32.mrb[0].mxu0
    %v1195 = vadd.f32 %v291, %v1194
    %v1196 = vpop.f32.mrb[0].mxu0
    %v1197 = vpop.f32.mrb[0].mxu0
    %v1198 = vadd.f32 %v291, %v1197
    %v1199 = vpop.f32.mrb[0].mxu0
    %1200 = vmatprep.mubr.bf16.mxu0 0
    %1201 = vmatmul.mubr.bf16.gmra.mrb[0].mxu0 %v823
    %v1202 = vpop.f32.mrb[0].mxu0
    %v1203 = vadd.f32 %v291, %v1202
    %v1204 = vpop.f32.mrb[0].mxu0
    %v1205 = vpop.f32.mrb[0].mxu0
    %v1206 = vadd.f32 %v291, %v1205
    %v1207 = vpop.f32.mrb[0].mxu0
    %1208 = vmatprep.mubr.bf16.mxu0 0
    %1209 = vmatmul.mubr.bf16.gmra.mrb[0].mxu0 %v826
    %v1210 = vpop.f32.mrb[0].mxu0
    %v1211 = vadd.f32 %v291, %v1210
    %v1212 = vpop.f32.mrb[0].mxu0
    %v1213 = vpop.f32.mrb[0].mxu0
    %v1214 = vadd.f32 %v291, %v1213
    %v1215 = vpop.f32.mrb[0].mxu0
    %1216 = vmatprep.mubr.bf16.mxu0 0
    %1217 = vmatmul.mubr.bf16.gmra.mrb[0].mxu0 %v829
    %v1218 = vpop.f32.mrb[0].mxu0
    %v1219 = vadd.f32 %v291, %v1218
    %v1220 = vpop.f32.mrb[0].mxu0
    %v1221 = vpop.f32.mrb[0].mxu0
    %v1222 = vadd.f32 %v291, %v1221
    %v1223 = vpop.f32.mrb[0].mxu0
    %1224 = vmatprep.mubr.bf16.mxu0 0
    %1225 = vmatmul.mubr.bf16.gmra.mrb[0].mxu0 %v832
    %v1226 = vpop.f32.mrb[0].mxu0
    %v1227 = vadd.f32 %v291, %v1226
    %v1228 = vpop.f32.mrb[0].mxu0
    %v1229 = vpop.f32.mrb[0].mxu0
    %v1230 = vadd.f32 %v291, %v1229
    %v1231 = vpop.f32.mrb[0].mxu0
    %1232 = vmatprep.mubr.bf16.mxu0 0
    %1233 = vmatmul.mubr.bf16.gmra.mrb[0].mxu0 %v835
    %v1234 = vpop.f32.mrb[0].mxu0
    %v1235 = vadd.f32 %v291, %v1234
    %v1236 = vpop.f32.mrb[0].mxu0
    %v1237 = vpop.f32.mrb[0].mxu0
    %v1238 = vadd.f32 %v291, %v1237
    %v1239 = vpop.f32.mrb[0].mxu0
    %1240 = vmatprep.mubr.bf16.mxu0 0
    %1241 = vmatmul.mubr.bf16.gmra.mrb[0].mxu0 %v838
    %v1242 = vpop.f32.mrb[0].mxu0
    %v1243 = vadd.f32 %v291, %v1242
    %v1244 = vpop.f32.mrb[0].mxu0
    %v1245 = vpop.f32.mrb[0].mxu0
    %v1246 = vadd.f32 %v291, %v1245
    %v1247 = vpop.f32.mrb[0].mxu0
    %1248 = vmatprep.mubr.bf16.mxu0 0
    %1249 = vmatmul.mubr.bf16.gmra.mrb[0].mxu0 %v841
    %v1250 = vpop.f32.mrb[0].mxu0
    %v1251 = vadd.f32 %v291, %v1250
    %v1252 = vpop.f32.mrb[0].mxu0
    %v1253 = vpop.f32.mrb[0].mxu0
    %v1254 = vadd.f32 %v291, %v1253
    %v1255 = vpop.f32.mrb[0].mxu0
    %1256 = vmatprep.mubr.bf16.mxu0 0
    %1257 = vmatmul.mubr.bf16.gmra.mrb[0].mxu0 %v844
    %v1258 = vpop.f32.mrb[0].mxu0
    %v1259 = vadd.f32 %v291, %v1258
    %v1260 = vpop.f32.mrb[0].mxu0
    %v1261 = vpop.f32.mrb[0].mxu0
    %v1262 = vadd.f32 %v291, %v1261
    %v1263 = vpop.f32.mrb[0].mxu0
    %1264 = vmatprep.mubr.bf16.mxu0 0
    %1265 = vmatmul.mubr.bf16.gmra.mrb[0].mxu0 %v847
    %v1266 = vpop.f32.mrb[0].mxu0
    %v1267 = vadd.f32 %v291, %v1266
    %v1268 = vpop.f32.mrb[0].mxu0
    %v1269 = vpop.f32.mrb[0].mxu0
    %v1270 = vadd.f32 %v291, %v1269
    %v1271 = vpop.f32.mrb[0].mxu0
    %1272 = vmatprep.mubr.bf16.mxu0 0
    %1273 = vmatmul.mubr.bf16.gmra.mrb[0].mxu0 %v850
    %v1274 = vpop.f32.mrb[0].mxu0
    %v1275 = vadd.f32 %v291, %v1274
    %v1276 = vpop.f32.mrb[0].mxu0
    %v1277 = vpop.f32.mrb[0].mxu0
    %v1278 = vadd.f32 %v291, %v1277
    %v1279 = vpop.f32.mrb[0].mxu0
    %1280 = vmatprep.mubr.bf16.mxu0 0
    %1281 = vmatmul.mubr.bf16.gmra.mrb[0].mxu0 %v853
    %v1282 = vpop.f32.mrb[0].mxu0
    %v1283 = vadd.f32 %v291, %v1282
    %v1284 = vpop.f32.mrb[0].mxu0
    %v1285 = vpop.f32.mrb[0].mxu0
    %v1286 = vadd.f32 %v291, %v1285
    %v1287 = vpop.f32.mrb[0].mxu0
    %1288 = vmatprep.mubr.bf16.mxu0 0
    %1289 = vmatmul.mubr.bf16.gmra.mrb[0].mxu0 %v856
    %v1290 = vpop.f32.mrb[0].mxu0
    %v1291 = vadd.f32 %v291, %v1290
    %v1292 = vpop.f32.mrb[0].mxu0
    %v1293 = vpop.f32.mrb[0].mxu0
    %v1294 = vadd.f32 %v291, %v1293
    %v1295 = vpop.f32.mrb[0].mxu0
    %1296 = vmatprep.mubr.bf16.mxu0 0
    %1297 = vmatmul.mubr.bf16.gmra.mrb[0].mxu0 %v859
    %v1298 = vpop.f32.mrb[0].mxu0
    %v1299 = vadd.f32 %v291, %v1298
    %v1300 = vpop.f32.mrb[0].mxu0
    %v1301 = vpop.f32.mrb[0].mxu0
    %v1302 = vadd.f32 %v291, %v1301
    %v1303 = vpop.f32.mrb[0].mxu0
    %1304 = vmatprep.mubr.bf16.mxu0 0
    %1305 = vmatmul.mubr.bf16.gmra.mrb[0].mxu0 %v862
    %v1306 = vpop.f32.mrb[0].mxu0
    %v1307 = vadd.f32 %v291, %v1306
    %v1308 = vpop.f32.mrb[0].mxu0
    %v1309 = vpop.f32.mrb[0].mxu0
    %v1310 = vadd.f32 %v291, %v1309
    %v1311 = vpop.f32.mrb[0].mxu0
    %1312 = vmatprep.mubr.bf16.mxu0 0
    %1313 = vmatmul.mubr.bf16.gmra.mrb[0].mxu0 %v865
    %v1314 = vpop.f32.mrb[0].mxu0
    %v1315 = vadd.f32 %v291, %v1314
    %v1316 = vpop.f32.mrb[0].mxu0
    %v1317 = vpop.f32.mrb[0].mxu0
    %v1318 = vadd.f32 %v291, %v1317
    %v1319 = vpop.f32.mrb[0].mxu0
    %1320 = vmatprep.mubr.bf16.mxu0 0
    %1321 = vmatmul.mubr.bf16.gmra.mrb[0].mxu0 %v868
    %v1322 = vpop.f32.mrb[0].mxu0
    %v1323 = vadd.f32 %v291, %v1322
    %v1324 = vpop.f32.mrb[0].mxu0
    %v1325 = vpop.f32.mrb[0].mxu0
    %v1326 = vadd.f32 %v291, %v1325
    %v1327 = vpop.f32.mrb[0].mxu0
    %1328 = vmatprep.mubr.bf16.mxu0 0
    %1329 = vmatmul.mubr.bf16.gmra.mrb[0].mxu0 %v871
    %v1330 = vpop.f32.mrb[0].mxu0
    %v1331 = vadd.f32 %v291, %v1330
    %v1332 = vpop.f32.mrb[0].mxu0
    %v1333 = vpop.f32.mrb[0].mxu0
    %v1334 = vadd.f32 %v291, %v1333
    %v1335 = vpop.f32.mrb[0].mxu0
    %1336 = vmatprep.mubr.bf16.mxu0 0
    %1337 = vmatmul.mubr.bf16.gmra.mrb[0].mxu0 %v874
    %v1338 = vpop.f32.mrb[0].mxu0
    %v1339 = vadd.f32 %v291, %v1338
    %v1340 = vpop.f32.mrb[0].mxu0
    %v1341 = vpop.f32.mrb[0].mxu0
    %v1342 = vadd.f32 %v291, %v1341
    %v1343 = vpop.f32.mrb[0].mxu0
    %1344 = vmatprep.mubr.bf16.mxu0 0
    %1345 = vmatmul.mubr.bf16.gmra.mrb[0].mxu0 %v877
    %v1346 = vpop.f32.mrb[0].mxu0
    %v1347 = vadd.f32 %v291, %v1346
    %v1348 = vpop.f32.mrb[0].mxu0
    %v1349 = vpop.f32.mrb[0].mxu0
    %v1350 = vadd.f32 %v291, %v1349
    %v1351 = vpop.f32.mrb[0].mxu0
    %1352 = vmatprep.mubr.bf16.mxu0 0
    %1353 = vmatmul.mubr.bf16.gmra.mrb[0].mxu0 %v880
    %v1354 = vpop.f32.mrb[0].mxu0
    %v1355 = vadd.f32 %v291, %v1354
    %v1356 = vpop.f32.mrb[0].mxu0
    %v1357 = vpop.f32.mrb[0].mxu0
    %v1358 = vadd.f32 %v291, %v1357
    %v1359 = vpop.f32.mrb[0].mxu0
    %1360 = vmatprep.mubr.bf16.mxu0 0
    %1361 = vmatmul.mubr.bf16.gmra.mrb[0].mxu0 %v883
    %v1362 = vpop.f32.mrb[0].mxu0
    %v1363 = vadd.f32 %v291, %v1362
    %v1364 = vpop.f32.mrb[0].mxu0
    %v1365 = vpop.f32.mrb[0].mxu0
    %v1366 = vadd.f32 %v291, %v1365
    %v1367 = vpop.f32.mrb[0].mxu0
    %1368 = vmatprep.mubr.bf16.mxu0 0
    %1369 = vmatmul.mubr.bf16.gmra.mrb[0].mxu0 %v886
    %v1370 = vpop.f32.mrb[0].mxu0
    %v1371 = vadd.f32 %v291, %v1370
    %v1372 = vpop.f32.mrb[0].mxu0
    %v1373 = vpop.f32.mrb[0].mxu0
    %v1374 = vadd.f32 %v291, %v1373
    %v1375 = vpop.f32.mrb[0].mxu0
    %1376 = vmatprep.mubr.bf16.mxu0 0
    %1377 = vmatmul.mubr.bf16.gmra.mrb[0].mxu0 %v889
    %v1378 = vpop.f32.mrb[0].mxu0
    %v1379 = vadd.f32 %v291, %v1378
    %v1380 = vpop.f32.mrb[0].mxu0
    %v1381 = vpop.f32.mrb[0].mxu0
    %v1382 = vadd.f32 %v291, %v1381
    %v1383 = vpop.f32.mrb[0].mxu0
    %1384 = vmatprep.mubr.bf16.mxu0 0
    %1385 = vmatmul.mubr.bf16.gmra.mrb[0].mxu0 %v892
    %v1386 = vpop.f32.mrb[0].mxu0
    %v1387 = vadd.f32 %v291, %v1386
    %v1388 = vpop.f32.mrb[0].mxu0
    %v1389 = vpop.f32.mrb[0].mxu0
    %v1390 = vadd.f32 %v291, %v1389
    %v1391 = vpop.f32.mrb[0].mxu0
    %1392 = vmatprep.mubr.bf16.mxu0 0
    %1393 = vmatmul.mubr.bf16.gmra.mrb[0].mxu0 %v895
    %v1394 = vpop.f32.mrb[0].mxu0
    %v1395 = vadd.f32 %v291, %v1394
    %v1396 = vpop.f32.mrb[0].mxu0
    %v1397 = vpop.f32.mrb[0].mxu0
    %v1398 = vadd.f32 %v291, %v1397
    %v1399 = vpop.f32.mrb[0].mxu0
    %1400 = vmatprep.mubr.bf16.mxu0 0
    %1401 = vmatmul.mubr.bf16.gmra.mrb[0].mxu0 %v898
    %v1402 = vpop.f32.mrb[0].mxu0
    %v1403 = vadd.f32 %v291, %v1402
    %v1404 = vpop.f32.mrb[0].mxu0
    %v1405 = vpop.f32.mrb[0].mxu0
    %v1406 = vadd.f32 %v291, %v1405
    %v1407 = vpop.f32.mrb[0].mxu0
    %1408 = vmatprep.mubr.bf16.mxu0 0
    %1409 = vmatmul.mubr.bf16.gmra.mrb[0].mxu0 %v901
    %v1410 = vpop.f32.mrb[0].mxu0
    %v1411 = vadd.f32 %v291, %v1410
    %v1412 = vpop.f32.mrb[0].mxu0
    %v1413 = vpop.f32.mrb[0].mxu0
    %v1414 = vadd.f32 %v291, %v1413
    %v1415 = vpop.f32.mrb[0].mxu0
    %1416 = vmatprep.mubr.bf16.mxu0 0
    %1417 = vmatmul.mubr.bf16.gmra.mrb[0].mxu0 %v904
    %v1418 = vpop.f32.mrb[0].mxu0
    %v1419 = vadd.f32 %v291, %v1418
    %v1420 = vpop.f32.mrb[0].mxu0
    %v1421 = vpop.f32.mrb[0].mxu0
    %v1422 = vadd.f32 %v291, %v1421
    %v1423 = vpop.f32.mrb[0].mxu0
    %1424 = vmatprep.mubr.bf16.mxu0 0
    %1425 = vmatmul.mubr.bf16.gmra.mrb[0].mxu0 %v907
    %v1426 = vpop.f32.mrb[0].mxu0
    %v1427 = vadd.f32 %v291, %v1426
    %v1428 = vpop.f32.mrb[0].mxu0
    %v1429 = vpop.f32.mrb[0].mxu0
    %v1430 = vadd.f32 %v291, %v1429
    %v1431 = vpop.f32.mrb[0].mxu0
    %1432 = vmatprep.mubr.bf16.mxu0 0
    %1433 = vmatmul.mubr.bf16.gmra.mrb[0].mxu0 %v910
    %v1434 = vpop.f32.mrb[0].mxu0
    %v1435 = vadd.f32 %v291, %v1434
    %v1436 = vpop.f32.mrb[0].mxu0
    %v1437 = vpop.f32.mrb[0].mxu0
    %v1438 = vadd.f32 %v291, %v1437
    %v1439 = vpop.f32.mrb[0].mxu0
    %1440 = vmatprep.mubr.bf16.mxu0 0
    %1441 = vmatmul.mubr.bf16.gmra.mrb[0].mxu0 %v913
    %v1442 = vpop.f32.mrb[0].mxu0
    %v1443 = vadd.f32 %v291, %v1442
    %v1444 = vpop.f32.mrb[0].mxu0
    %v1445 = vpop.f32.mrb[0].mxu0
    %v1446 = vadd.f32 %v291, %v1445
    %v1447 = vpop.f32.mrb[0].mxu0
    %1448 = vmatprep.mubr.bf16.mxu0 0
    %1449 = vmatmul.mubr.bf16.gmra.mrb[0].mxu0 %v916
    %v1450 = vpop.f32.mrb[0].mxu0
    %v1451 = vadd.f32 %v291, %v1450
    %v1452 = vpop.f32.mrb[0].mxu0
    %v1453 = vpop.f32.mrb[0].mxu0
    %v1454 = vadd.f32 %v291, %v1453
    %v1455 = vpop.f32.mrb[0].mxu0
    %1456 = vmatprep.mubr.bf16.mxu0 0
    %1457 = vmatmul.mubr.bf16.gmra.mrb[0].mxu0 %v919
    %v1458 = vpop.f32.mrb[0].mxu0
    %v1459 = vadd.f32 %v291, %v1458
    %v1460 = vpop.f32.mrb[0].mxu0
    %v1461 = vpop.f32.mrb[0].mxu0
    %v1462 = vadd.f32 %v291, %v1461
    %v1463 = vpop.f32.mrb[0].mxu0
    %1464 = vmatprep.mubr.bf16.mxu0 0
    %1465 = vmatmul.mubr.bf16.gmra.mrb[0].mxu0 %v922
    %v1466 = vpop.f32.mrb[0].mxu0
    %v1467 = vadd.f32 %v291, %v1466
    %v1468 = vpop.f32.mrb[0].mxu0
    %v1469 = vpop.f32.mrb[0].mxu0
    %v1470 = vadd.f32 %v291, %v1469
    %v1471 = vpop.f32.mrb[0].mxu0
    %1472 = vmatprep.mubr.bf16.mxu0 0
    %1473 = vmatmul.mubr.bf16.gmra.mrb[0].mxu0 %v925
    %v1474 = vpop.f32.mrb[0].mxu0
    %v1475 = vadd.f32 %v291, %v1474
    %v1476 = vpop.f32.mrb[0].mxu0
    %v1477 = vpop.f32.mrb[0].mxu0
    %v1478 = vadd.f32 %v291, %v1477
    %v1479 = vpop.f32.mrb[0].mxu0
    %1480 = vmatprep.mubr.bf16.mxu0 0
    %1481 = vmatmul.mubr.bf16.gmra.mrb[0].mxu0 %v928
    %v1482 = vpop.f32.mrb[0].mxu0
    %v1483 = vadd.f32 %v291, %v1482
    %v1484 = vpop.f32.mrb[0].mxu0
    %v1485 = vpop.f32.mrb[0].mxu0
    %v1486 = vadd.f32 %v291, %v1485
    %v1487 = vpop.f32.mrb[0].mxu0
    %1488 = vmatprep.mubr.bf16.mxu0 0
    %1489 = vmatmul.mubr.bf16.gmra.mrb[0].mxu0 %v931
    %v1490 = vpop.f32.mrb[0].mxu0
    %v1491 = vadd.f32 %v291, %v1490
    %v1492 = vpop.f32.mrb[0].mxu0
    %v1493 = vpop.f32.mrb[0].mxu0
    %v1494 = vadd.f32 %v291, %v1493
    %v1495 = vpop.f32.mrb[0].mxu0
    %1496 = vmatprep.mubr.bf16.mxu0 0
    %1497 = vmatmul.mubr.bf16.gmra.mrb[0].mxu0 %v934
    %v1498 = vpop.f32.mrb[0].mxu0
    %v1499 = vadd.f32 %v291, %v1498
    %v1500 = vpop.f32.mrb[0].mxu0
    %v1501 = vpop.f32.mrb[0].mxu0
    %v1502 = vadd.f32 %v291, %v1501
    %v1503 = vpop.f32.mrb[0].mxu0
    %1504 = vmatprep.mubr.bf16.mxu0 0
    %1505 = vmatmul.mubr.bf16.gmra.mrb[0].mxu0 %v937
    %v1506 = vpop.f32.mrb[0].mxu0
    %v1507 = vadd.f32 %v291, %v1506
    %v1508 = vpop.f32.mrb[0].mxu0
    %v1509 = vpop.f32.mrb[0].mxu0
    %v1510 = vadd.f32 %v291, %v1509
    %v1511 = vpop.f32.mrb[0].mxu0
    %1512 = vmatprep.mubr.bf16.mxu0 0
    %1513 = vmatmul.mubr.bf16.gmra.mrb[0].mxu0 %v940
    %v1514 = vpop.f32.mrb[0].mxu0
    %v1515 = vadd.f32 %v291, %v1514
    %v1516 = vpop.f32.mrb[0].mxu0
    %v1517 = vpop.f32.mrb[0].mxu0
    %v1518 = vadd.f32 %v291, %v1517
    %v1519 = vpop.f32.mrb[0].mxu0
    %1520 = vmatprep.mubr.bf16.mxu0 0
    %1521 = vmatmul.mubr.bf16.gmra.mrb[0].mxu0 %v943
    %v1522 = vpop.f32.mrb[0].mxu0
    %v1523 = vadd.f32 %v291, %v1522
    %v1524 = vpop.f32.mrb[0].mxu0
    %v1525 = vpop.f32.mrb[0].mxu0
    %v1526 = vadd.f32 %v291, %v1525
    %v1527 = vpop.f32.mrb[0].mxu0
    %1528 = vmatprep.mubr.bf16.mxu0 0
    %1529 = vmatmul.mubr.bf16.gmra.mrb[0].mxu0 %v946
    %v1530 = vpop.f32.mrb[0].mxu0
    %v1531 = vadd.f32 %v291, %v1530
    %v1532 = vpop.f32.mrb[0].mxu0
    %v1533 = vpop.f32.mrb[0].mxu0
    %v1534 = vadd.f32 %v291, %v1533
    %v1535 = vpop.f32.mrb[0].mxu0
    %1536 = vmatprep.mubr.bf16.mxu0 0
    %1537 = vmatmul.mubr.bf16.gmra.mrb[0].mxu0 %v949
    %v1538 = vpop.f32.mrb[0].mxu0
    %v1539 = vadd.f32 %v291, %v1538
    %v1540 = vpop.f32.mrb[0].mxu0
    %v1541 = vpop.f32.mrb[0].mxu0
    %v1542 = vadd.f32 %v291, %v1541
    %v1543 = vpop.f32.mrb[0].mxu0
    %1544 = vmatprep.mubr.bf16.mxu0 0
    %1545 = vmatmul.mubr.bf16.gmra.mrb[0].mxu0 %v952
    %v1546 = vpop.f32.mrb[0].mxu0
    %v1547 = vadd.f32 %v291, %v1546
    %v1548 = vpop.f32.mrb[0].mxu0
    %v1549 = vpop.f32.mrb[0].mxu0
    %v1550 = vadd.f32 %v291, %v1549
    %v1551 = vpop.f32.mrb[0].mxu0
    %1552 = vmatprep.mubr.bf16.mxu0 0
    %1553 = vmatmul.mubr.bf16.gmra.mrb[0].mxu0 %v955
    %v1554 = vpop.f32.mrb[0].mxu0
    %v1555 = vadd.f32 %v291, %v1554
    %v1556 = vpop.f32.mrb[0].mxu0
    %v1557 = vpop.f32.mrb[0].mxu0
    %v1558 = vadd.f32 %v291, %v1557
    %v1559 = vpop.f32.mrb[0].mxu0
    %1560 = vmatprep.mubr.bf16.mxu0 0
    %1561 = vmatmul.mubr.bf16.gmra.mrb[0].mxu0 %v958
    %v1562 = vpop.f32.mrb[0].mxu0
    %v1563 = vadd.f32 %v291, %v1562
    %v1564 = vpop.f32.mrb[0].mxu0
    %v1565 = vpop.f32.mrb[0].mxu0
    %v1566 = vadd.f32 %v291, %v1565
    %v1567 = vpop.f32.mrb[0].mxu0
    %1568 = vmatprep.mubr.bf16.mxu0 0
    %1569 = vmatmul.mubr.bf16.gmra.mrb[0].mxu0 %v961
    %v1570 = vpop.f32.mrb[0].mxu0
    %v1571 = vadd.f32 %v291, %v1570
    %v1572 = vpop.f32.mrb[0].mxu0
    %v1573 = vpop.f32.mrb[0].mxu0
    %v1574 = vadd.f32 %v291, %v1573
    %v1575 = vpop.f32.mrb[0].mxu0
    %1576 = vmatprep.mubr.bf16.mxu0 0
    %1577 = vmatmul.mubr.bf16.gmra.mrb[0].mxu0 %v964
    %v1578 = vpop.f32.mrb[0].mxu0
    %v1579 = vadd.f32 %v291, %v1578
    %v1580 = vpop.f32.mrb[0].mxu0
    %v1581 = vpop.f32.mrb[0].mxu0
    %v1582 = vadd.f32 %v291, %v1581
    %v1583 = vpop.f32.mrb[0].mxu0
    %1584 = vmatprep.mubr.bf16.mxu0 0
    %1585 = vmatmul.mubr.bf16.gmra.mrb[0].mxu0 %v967
    %v1586 = vpop.f32.mrb[0].mxu0
    %v1587 = vadd.f32 %v291, %v1586
    %v1588 = vpop.f32.mrb[0].mxu0
    %v1589 = vpop.f32.mrb[0].mxu0
    %v1590 = vadd.f32 %v291, %v1589
    %v1591 = vpop.f32.mrb[0].mxu0
    %1592 = vmatprep.mubr.bf16.mxu0 0
    %1593 = vmatmul.mubr.bf16.gmra.mrb[0].mxu0 %v970
    %v1594 = vpop.f32.mrb[0].mxu0
    %v1595 = vadd.f32 %v291, %v1594
    %v1596 = vpop.f32.mrb[0].mxu0
    %v1597 = vpop.f32.mrb[0].mxu0
    %v1598 = vadd.f32 %v291, %v1597
    %v1599 = vpop.f32.mrb[0].mxu0
    %1600 = vmatprep.mubr.bf16.mxu0 0
    %1601 = vmatmul.mubr.bf16.gmra.mrb[0].mxu0 %v973
    %v1602 = vpop.f32.mrb[0].mxu0
    %v1603 = vadd.f32 %v291, %v1602
    %v1604 = vpop.f32.mrb[0].mxu0
    %v1605 = vpop.f32.mrb[0].mxu0
    %v1606 = vadd.f32 %v291, %v1605
    %v1607 = vpop.f32.mrb[0].mxu0
    %1608 = vmatprep.mubr.bf16.mxu0 0
    %1609 = vmatmul.mubr.bf16.gmra.mrb[0].mxu0 %v976
    %v1610 = vpop.f32.mrb[0].mxu0
    %v1611 = vadd.f32 %v291, %v1610
    %v1612 = vpop.f32.mrb[0].mxu0
    %v1613 = vpop.f32.mrb[0].mxu0
    %v1614 = vadd.f32 %v291, %v1613
    %v1615 = vpop.f32.mrb[0].mxu0
    %1616 = vmatprep.mubr.bf16.mxu0 0
    %1617 = vmatmul.mubr.bf16.gmra.mrb[0].mxu0 %v979
    %v1618 = vpop.f32.mrb[0].mxu0
    %v1619 = vadd.f32 %v291, %v1618
    %v1620 = vpop.f32.mrb[0].mxu0
    %v1621 = vpop.f32.mrb[0].mxu0
    %v1622 = vadd.f32 %v291, %v1621
    %v1623 = vpop.f32.mrb[0].mxu0
    %1624 = vmatprep.mubr.bf16.mxu0 0
    %1625 = vmatmul.mubr.bf16.gmra.mrb[0].mxu0 %v982
    %v1626 = vpop.f32.mrb[0].mxu0
    %v1627 = vadd.f32 %v291, %v1626
    %v1628 = vpop.f32.mrb[0].mxu0
    %v1629 = vpop.f32.mrb[0].mxu0
    %v1630 = vadd.f32 %v291, %v1629
    %v1631 = vpop.f32.mrb[0].mxu0
    %1632 = vmatprep.mubr.bf16.mxu0 0
    %1633 = vmatmul.mubr.bf16.gmra.mrb[0].mxu0 %v985
    %v1634 = vpop.f32.mrb[0].mxu0
    %v1635 = vadd.f32 %v291, %v1634
    %v1636 = vpop.f32.mrb[0].mxu0
    %v1637 = vpop.f32.mrb[0].mxu0
    %v1638 = vadd.f32 %v291, %v1637
    %v1639 = vpop.f32.mrb[0].mxu0
    %1640 = vmatprep.mubr.bf16.mxu0 0
    %1641 = vmatmul.mubr.bf16.gmra.mrb[0].mxu0 %v988
    %v1642 = vpop.f32.mrb[0].mxu0
    %v1643 = vadd.f32 %v291, %v1642
    %v1644 = vpop.f32.mrb[0].mxu0
    %v1645 = vpop.f32.mrb[0].mxu0
    %v1646 = vadd.f32 %v291, %v1645
    %v1647 = vpop.f32.mrb[0].mxu0
    %1648 = vmatprep.mubr.bf16.mxu0 0
    %1649 = vmatmul.mubr.bf16.gmra.mrb[0].mxu0 %v991
    %v1650 = vpop.f32.mrb[0].mxu0
    %v1651 = vadd.f32 %v291, %v1650
    %v1652 = vpop.f32.mrb[0].mxu0
    %v1653 = vpop.f32.mrb[0].mxu0
    %v1654 = vadd.f32 %v291, %v1653
    %v1655 = vpop.f32.mrb[0].mxu0
    %1656 = vmatprep.mubr.bf16.mxu0 0
    %1657 = vmatmul.mubr.bf16.gmra.mrb[0].mxu0 %v994
    %v1658 = vpop.f32.mrb[0].mxu0
    %v1659 = vadd.f32 %v291, %v1658
    %v1660 = vpop.f32.mrb[0].mxu0
    %v1661 = vpop.f32.mrb[0].mxu0
    %v1662 = vadd.f32 %v291, %v1661
    %v1663 = vpop.f32.mrb[0].mxu0
    %1664 = vmatprep.mubr.bf16.mxu0 0
    %1665 = vmatmul.mubr.bf16.gmra.mrb[0].mxu0 %v997
    %v1666 = vpop.f32.mrb[0].mxu0
    %v1667 = vadd.f32 %v291, %v1666
    %v1668 = vpop.f32.mrb[0].mxu0
    %v1669 = vpop.f32.mrb[0].mxu0
    %v1670 = vadd.f32 %v291, %v1669
    %v1671 = vpop.f32.mrb[0].mxu0
    %1672 = vmatprep.mubr.bf16.mxu0 0
    %1673 = vmatmul.mubr.bf16.gmra.mrb[0].mxu0 %v1000
    %v1674 = vpop.f32.mrb[0].mxu0
    %v1675 = vadd.f32 %v291, %v1674
    %v1676 = vpop.f32.mrb[0].mxu0
    %v1677 = vpop.f32.mrb[0].mxu0
    %v1678 = vadd.f32 %v291, %v1677
    %v1679 = vpop.f32.mrb[0].mxu0
    %1680 = vmatprep.mubr.bf16.mxu0 0
    %1681 = vmatmul.mubr.bf16.gmra.mrb[0].mxu0 %v1003
    %v1682 = vpop.f32.mrb[0].mxu0
    %v1683 = vadd.f32 %v291, %v1682
    %v1684 = vpop.f32.mrb[0].mxu0
    %v1685 = vpop.f32.mrb[0].mxu0
    %v1686 = vadd.f32 %v291, %v1685
    %v1687 = vpop.f32.mrb[0].mxu0
    %1688 = vmatprep.mubr.bf16.mxu0 0
    %1689 = vmatmul.mubr.bf16.gmra.mrb[0].mxu0 %v1006
    %v1690 = vpop.f32.mrb[0].mxu0
    %v1691 = vadd.f32 %v291, %v1690
    %v1692 = vpop.f32.mrb[0].mxu0
    %v1693 = vpop.f32.mrb[0].mxu0
    %v1694 = vadd.f32 %v291, %v1693
    %v1695 = vpop.f32.mrb[0].mxu0
    %1696 = vmatprep.mubr.bf16.mxu0 0
    %1697 = vmatmul.mubr.bf16.gmra.mrb[0].mxu0 %v1009
    %v1698 = vpop.f32.mrb[0].mxu0
    %v1699 = vadd.f32 %v291, %v1698
    %v1700 = vpop.f32.mrb[0].mxu0
    %v1701 = vpop.f32.mrb[0].mxu0
    %v1702 = vadd.f32 %v291, %v1701
    %v1703 = vpop.f32.mrb[0].mxu0
    %1704 = vmatprep.mubr.bf16.mxu0 0
    %1705 = vmatmul.mubr.bf16.gmra.mrb[0].mxu0 %v1012
    %v1706 = vpop.f32.mrb[0].mxu0
    %v1707 = vadd.f32 %v291, %v1706
    %v1708 = vpop.f32.mrb[0].mxu0
    %v1709 = vpop.f32.mrb[0].mxu0
    %v1710 = vadd.f32 %v291, %v1709
    %v1711 = vpop.f32.mrb[0].mxu0
    %1712 = vmatprep.mubr.bf16.mxu0 0
    %1713 = vmatmul.mubr.bf16.gmra.mrb[0].mxu0 %v1015
    %v1714 = vpop.f32.mrb[0].mxu0
    %v1715 = vadd.f32 %v291, %v1714
    %v1716 = vpop.f32.mrb[0].mxu0
    %v1717 = vpop.f32.mrb[0].mxu0
    %v1718 = vadd.f32 %v291, %v1717
    %v1719 = vpop.f32.mrb[0].mxu0
    %1720 = vmatprep.mubr.bf16.mxu0 0
    %1721 = vmatmul.mubr.bf16.gmra.mrb[0].mxu0 %v1018
    %v1722 = vpop.f32.mrb[0].mxu0
    %v1723 = vadd.f32 %v291, %v1722
    %v1724 = vpop.f32.mrb[0].mxu0
    %v1725 = vpop.f32.mrb[0].mxu0
    %v1726 = vadd.f32 %v291, %v1725
    %v1727 = vpop.f32.mrb[0].mxu0
    %1728 = vmatprep.mubr.bf16.mxu0 0
    %1729 = vmatmul.mubr.bf16.gmra.mrb[0].mxu0 %v1021
    %v1730 = vpop.f32.mrb[0].mxu0
    %v1731 = vadd.f32 %v291, %v1730
    %v1732 = vpop.f32.mrb[0].mxu0
    %v1733 = vpop.f32.mrb[0].mxu0
    %v1734 = vadd.f32 %v291, %v1733
    %v1735 = vpop.f32.mrb[0].mxu0
    %1736 = vmatprep.mubr.bf16.mxu0 0
    %1737 = vmatmul.mubr.bf16.gmra.mrb[0].mxu0 %v1024
    %v1738 = vpop.f32.mrb[0].mxu0
    %v1739 = vadd.f32 %v291, %v1738
    %v1740 = vpop.f32.mrb[0].mxu0
    %v1741 = vpop.f32.mrb[0].mxu0
    %v1742 = vadd.f32 %v291, %v1741
    %v1743 = vpop.f32.mrb[0].mxu0
    %1744 = vmatprep.mubr.bf16.mxu0 0
    %1745 = vmatmul.mubr.bf16.gmra.mrb[0].mxu0 %v1027
    %v1746 = vpop.f32.mrb[0].mxu0
    %v1747 = vadd.f32 %v291, %v1746
    %v1748 = vpop.f32.mrb[0].mxu0
    %v1749 = vpop.f32.mrb[0].mxu0
    %v1750 = vadd.f32 %v291, %v1749
    %v1751 = vpop.f32.mrb[0].mxu0
    %1752 = vmatprep.mubr.bf16.mxu0 0
    %1753 = vmatmul.mubr.bf16.gmra.mrb[0].mxu0 %v1030
    %v1754 = vpop.f32.mrb[0].mxu0
    %v1755 = vadd.f32 %v291, %v1754
    %v1756 = vpop.f32.mrb[0].mxu0
    %v1757 = vpop.f32.mrb[0].mxu0
    %v1758 = vadd.f32 %v291, %v1757
    %v1759 = vpop.f32.mrb[0].mxu0
    %1760 = vmatprep.mubr.bf16.mxu0 0
    %1761 = vmatmul.mubr.bf16.gmra.mrb[0].mxu0 %v1033
    %v1762 = vpop.f32.mrb[0].mxu0
    %v1763 = vadd.f32 %v291, %v1762
    %v1764 = vpop.f32.mrb[0].mxu0
    %v1765 = vpop.f32.mrb[0].mxu0
    %v1766 = vadd.f32 %v291, %v1765
    %v1767 = vpop.f32.mrb[0].mxu0
    %1768 = vmatprep.mubr.bf16.mxu0 0
    %1769 = vmatmul.mubr.bf16.gmra.mrb[0].mxu0 %v1036
    %v1770 = vpop.f32.mrb[0].mxu0
    %v1771 = vadd.f32 %v291, %v1770
    %v1772 = vpop.f32.mrb[0].mxu0
    %v1773 = vpop.f32.mrb[0].mxu0
    %v1774 = vadd.f32 %v291, %v1773
    %v1775 = vpop.f32.mrb[0].mxu0
    %1776 = vmatprep.mubr.bf16.mxu0 0
    %1777 = vmatmul.mubr.bf16.gmra.mrb[0].mxu0 %v1039
    %v1778 = vpop.f32.mrb[0].mxu0
    %v1779 = vadd.f32 %v291, %v1778
    %v1780 = vpop.f32.mrb[0].mxu0
    %v1781 = vpop.f32.mrb[0].mxu0
    %v1782 = vadd.f32 %v291, %v1781
    %v1783 = vpop.f32.mrb[0].mxu0
    %1784 = vmatprep.mubr.bf16.mxu0 0
    %1785 = vmatmul.mubr.bf16.gmra.mrb[0].mxu0 %v1042
    %v1786 = vpop.f32.mrb[0].mxu0
    %v1787 = vadd.f32 %v291, %v1786
    %v1788 = vpop.f32.mrb[0].mxu0
    %v1789 = vpop.f32.mrb[0].mxu0
    %v1790 = vadd.f32 %v291, %v1789
    %v1791 = vpop.f32.mrb[0].mxu0
    %1792 = vmatprep.mubr.bf16.mxu0 0
    %1793 = vmatmul.mubr.bf16.gmra.mrb[0].mxu0 %v1045
    %v1794 = vpop.f32.mrb[0].mxu0
    %v1795 = vadd.f32 %v291, %v1794
    %v1796 = vpop.f32.mrb[0].mxu0
    %v1797 = vpop.f32.mrb[0].mxu0
    %v1798 = vadd.f32 %v291, %v1797
    %v1799 = vpop.f32.mrb[0].mxu0
    %1800 = vmatprep.mubr.bf16.mxu0 0
    %1801 = vmatmul.mubr.bf16.gmra.mrb[0].mxu0 %v1048
    %v1802 = vpop.f32.mrb[0].mxu0
    %v1803 = vadd.f32 %v291, %v1802
    %v1804 = vpop.f32.mrb[0].mxu0
    %v1805 = vpop.f32.mrb[0].mxu0
    %v1806 = vadd.f32 %v291, %v1805
    %v1807 = vpop.f32.mrb[0].mxu0
    %1808 = vmatprep.mubr.bf16.mxu0 0
    %1809 = vmatmul.mubr.bf16.gmra.mrb[0].mxu0 %v1051
    %v1810 = vpop.f32.mrb[0].mxu0
    %v1811 = vadd.f32 %v291, %v1810
    %v1812 = vpop.f32.mrb[0].mxu0
    %v1813 = vpop.f32.mrb[0].mxu0
    %v1814 = vadd.f32 %v291, %v1813
    %v1815 = vpop.f32.mrb[0].mxu0
    %1816 = vmatprep.mubr.bf16.mxu0 0
    %1817 = vmatmul.mubr.bf16.gmra.mrb[0].mxu0 %v1054
    %v1818 = vpop.f32.mrb[0].mxu0
    %v1819 = vadd.f32 %v291, %v1818
    %v1820 = vpop.f32.mrb[0].mxu0
    %v1821 = vpop.f32.mrb[0].mxu0
    %v1822 = vadd.f32 %v291, %v1821
    %v1823 = vpop.f32.mrb[0].mxu0
    %1824 = vmatprep.mubr.bf16.mxu0 0
    %1825 = vmatmul.mubr.bf16.gmra.mrb[0].mxu0 %v1057
    %v1826 = vpop.f32.mrb[0].mxu0
    %v1827 = vadd.f32 %v291, %v1826
    %v1828 = vpop.f32.mrb[0].mxu0
    %v1829 = vpop.f32.mrb[0].mxu0
    %v1830 = vadd.f32 %v291, %v1829
    %v1831 = vpop.f32.mrb[0].mxu0
    %1832 = vmatprep.mubr.bf16.mxu0 0
    %1833 = vmatmul.mubr.bf16.gmra.mrb[0].mxu0 %v1060
    %v1834 = vpop.f32.mrb[0].mxu0
    %v1835 = vadd.f32 %v291, %v1834
    %v1836 = vpop.f32.mrb[0].mxu0
    %v1837 = vpop.f32.mrb[0].mxu0
    %v1838 = vadd.f32 %v291, %v1837
    %v1839 = vpop.f32.mrb[0].mxu0
    %1840 = vmatprep.mubr.bf16.mxu0 0
    %1841 = vmatmul.mubr.bf16.gmra.mrb[0].mxu0 %v1063
    %v1842 = vpop.f32.mrb[0].mxu0
    %v1843 = vadd.f32 %v291, %v1842
    %v1844 = vpop.f32.mrb[0].mxu0
    %v1845 = vpop.f32.mrb[0].mxu0
    %v1846 = vadd.f32 %v291, %v1845
    %v1847 = vpop.f32.mrb[0].mxu0
    %1848 = vmatprep.mubr.bf16.mxu0 0
    %1849 = vmatmul.mubr.bf16.gmra.mrb[0].mxu0 %v1066
    %v1850 = vpop.f32.mrb[0].mxu0
    %v1851 = vadd.f32 %v291, %v1850
    %v1852 = vpop.f32.mrb[0].mxu0
    %v1853 = vpop.f32.mrb[0].mxu0
    %v1854 = vadd.f32 %v291, %v1853
    %v1855 = vpop.f32.mrb[0].mxu0
    %1856 = vmatprep.mubr.bf16.mxu0 0
    %1857 = vmatmul.mubr.bf16.gmra.mrb[0].mxu0 %v1069
    %v1858 = vpop.f32.mrb[0].mxu0
    %v1859 = vadd.f32 %v291, %v1858
    %v1860 = vpop.f32.mrb[0].mxu0
    %v1861 = vpop.f32.mrb[0].mxu0
    %v1862 = vadd.f32 %v291, %v1861
    %v1863 = vpop.f32.mrb[0].mxu0
    %1864 = vmatprep.mubr.bf16.mxu0 0
    %1865 = vmatmul.mubr.bf16.gmra.mrb[0].mxu0 %v1072
    %v1866 = vpop.f32.mrb[0].mxu0
    %v1867 = vadd.f32 %v291, %v1866
    %v1868 = vpop.f32.mrb[0].mxu0
    %v1869 = vpop.f32.mrb[0].mxu0
    %v1870 = vadd.f32 %v291, %v1869
    %v1871 = vpop.f32.mrb[0].mxu0
    %1872 = vmatprep.mubr.bf16.mxu0 0
    %1873 = vmatmul.mubr.bf16.gmra.mrb[0].mxu0 %v1075
    %v1874 = vpop.f32.mrb[0].mxu0
    %v1875 = vadd.f32 %v291, %v1874
    %v1876 = vpop.f32.mrb[0].mxu0
    %v1877 = vpop.f32.mrb[0].mxu0
    %v1878 = vadd.f32 %v291, %v1877
    %v1879 = vpop.f32.mrb[0].mxu0
    %1880 = vmatprep.mubr.bf16.mxu0 0
    %1881 = vmatmul.mubr.bf16.gmra.mrb[0].mxu0 %v1078
    %v1882 = vpop.f32.mrb[0].mxu0
    %v1883 = vadd.f32 %v291, %v1882
    %v1884 = vpop.f32.mrb[0].mxu0
    %v1885 = vpop.f32.mrb[0].mxu0
    %v1886 = vadd.f32 %v291, %v1885
    %v1887 = vpop.f32.mrb[0].mxu0
    %1888 = vmatprep.mubr.bf16.mxu0 0
    %1889 = vmatmul.mubr.bf16.gmra.mrb[0].mxu0 %v1081
    %v1890 = vpop.f32.mrb[0].mxu0
    %v1891 = vadd.f32 %v291, %v1890
    %v1892 = vpop.f32.mrb[0].mxu0
    %v1893 = vpop.f32.mrb[0].mxu0
    %v1894 = vadd.f32 %v291, %v1893
    %v1895 = vpop.f32.mrb[0].mxu0
    %1896 = vmatprep.mubr.bf16.mxu0 0
    %1897 = vmatmul.mubr.bf16.gmra.mrb[0].mxu0 %v1084
    %v1898 = vpop.f32.mrb[0].mxu0
    %v1899 = vadd.f32 %v291, %v1898
    %v1900 = vpop.f32.mrb[0].mxu0
    %v1901 = vpop.f32.mrb[0].mxu0
    %v1902 = vadd.f32 %v291, %v1901
    %v1903 = vpop.f32.mrb[0].mxu0
    %1904 = vmatprep.mubr.bf16.mxu0 0
    %1905 = vmatmul.mubr.bf16.gmra.mrb[0].mxu0 %v1087
    %v1906 = vpop.f32.mrb[0].mxu0
    %v1907 = vadd.f32 %v291, %v1906
    %v1908 = vpop.f32.mrb[0].mxu0
    %v1909 = vpop.f32.mrb[0].mxu0
    %v1910 = vadd.f32 %v291, %v1909
    %v1911 = vpop.f32.mrb[0].mxu0
    %1912 = vdwg.mxu0
    %v1913 = vmax.f32 %v1131, 0.0
    %v1914 = vmax.f32 %v1134, 0.0
    %v1915 = vmax.f32 %v1139, 0.0
    %v1916 = vmax.f32 %v1142, 0.0
    %v1917 = vmax.f32 %v1147, 0.0
    %v1918 = vmax.f32 %v1150, 0.0
    %v1919 = vmax.f32 %v1155, 0.0
    %v1920 = vmax.f32 %v1158, 0.0
    %v1921 = vmax.f32 %v1163, 0.0
    %v1922 = vmax.f32 %v1166, 0.0
    %v1923 = vmax.f32 %v1171, 0.0
    %v1924 = vmax.f32 %v1174, 0.0
    %v1925 = vmax.f32 %v1179, 0.0
    %v1926 = vmax.f32 %v1182, 0.0
    %v1927 = vmax.f32 %v1187, 0.0
    %v1928 = vmax.f32 %v1190, 0.0
    %v1929 = vmax.f32 %v1195, 0.0
    %v1930 = vmax.f32 %v1198, 0.0
    %v1931 = vmax.f32 %v1203, 0.0
    %v1932 = vmax.f32 %v1206, 0.0
    %v1933 = vmax.f32 %v1211, 0.0
    %v1934 = vmax.f32 %v1214, 0.0
    %v1935 = vmax.f32 %v1219, 0.0
    %v1936 = vmax.f32 %v1222, 0.0
    %v1937 = vmax.f32 %v1227, 0.0
    %v1938 = vmax.f32 %v1230, 0.0
    %v1939 = vmax.f32 %v1235, 0.0
    %v1940 = vmax.f32 %v1238, 0.0
    %v1941 = vmax.f32 %v1243, 0.0
    %v1942 = vmax.f32 %v1246, 0.0
    %v1943 = vmax.f32 %v1251, 0.0
    %v1944 = vmax.f32 %v1254, 0.0
    %v1945 = vmax.f32 %v1259, 0.0
    %v1946 = vmax.f32 %v1262, 0.0
    %v1947 = vmax.f32 %v1267, 0.0
    %v1948 = vmax.f32 %v1270, 0.0
    %v1949 = vmax.f32 %v1275, 0.0
    %v1950 = vmax.f32 %v1278, 0.0
    %v1951 = vmax.f32 %v1283, 0.0
    %v1952 = vmax.f32 %v1286, 0.0
    %v1953 = vmax.f32 %v1291, 0.0
    %v1954 = vmax.f32 %v1294, 0.0
    %v1955 = vmax.f32 %v1299, 0.0
    %v1956 = vmax.f32 %v1302, 0.0
    %v1957 = vmax.f32 %v1307, 0.0
    %v1958 = vmax.f32 %v1310, 0.0
    %v1959 = vmax.f32 %v1315, 0.0
    %v1960 = vmax.f32 %v1318, 0.0
    %v1961 = vmax.f32 %v1323, 0.0
    %v1962 = vmax.f32 %v1326, 0.0
    %v1963 = vmax.f32 %v1331, 0.0
    %v1964 = vmax.f32 %v1334, 0.0
    %v1965 = vmax.f32 %v1339, 0.0
    %v1966 = vmax.f32 %v1342, 0.0
    %v1967 = vmax.f32 %v1347, 0.0
    %v1968 = vmax.f32 %v1350, 0.0
    %v1969 = vmax.f32 %v1355, 0.0
    %v1970 = vmax.f32 %v1358, 0.0
    %v1971 = vmax.f32 %v1363, 0.0
    %v1972 = vmax.f32 %v1366, 0.0
    %v1973 = vmax.f32 %v1371, 0.0
    %v1974 = vmax.f32 %v1374, 0.0
    %v1975 = vmax.f32 %v1379, 0.0
    %v1976 = vmax.f32 %v1382, 0.0
    %v1977 = vmax.f32 %v1387, 0.0
    %v1978 = vmax.f32 %v1390, 0.0
    %v1979 = vmax.f32 %v1395, 0.0
    %v1980 = vmax.f32 %v1398, 0.0
    %v1981 = vmax.f32 %v1403, 0.0
    %v1982 = vmax.f32 %v1406, 0.0
    %v1983 = vmax.f32 %v1411, 0.0
    %v1984 = vmax.f32 %v1414, 0.0
    %v1985 = vmax.f32 %v1419, 0.0
    %v1986 = vmax.f32 %v1422, 0.0
    %v1987 = vmax.f32 %v1427, 0.0
    %v1988 = vmax.f32 %v1430, 0.0
    %v1989 = vmax.f32 %v1435, 0.0
    %v1990 = vmax.f32 %v1438, 0.0
    %v1991 = vmax.f32 %v1443, 0.0
    %v1992 = vmax.f32 %v1446, 0.0
    %v1993 = vmax.f32 %v1451, 0.0
    %v1994 = vmax.f32 %v1454, 0.0
    %v1995 = vmax.f32 %v1459, 0.0
    %v1996 = vmax.f32 %v1462, 0.0
    %v1997 = vmax.f32 %v1467, 0.0
    %v1998 = vmax.f32 %v1470, 0.0
    %v1999 = vmax.f32 %v1475, 0.0
    %v2000 = vmax.f32 %v1478, 0.0
    %v2001 = vmax.f32 %v1483, 0.0
    %v2002 = vmax.f32 %v1486, 0.0
    %v2003 = vmax.f32 %v1491, 0.0
    %v2004 = vmax.f32 %v1494, 0.0
    %v2005 = vmax.f32 %v1499, 0.0
    %v2006 = vmax.f32 %v1502, 0.0
    %v2007 = vmax.f32 %v1507, 0.0
    %v2008 = vmax.f32 %v1510, 0.0
    %v2009 = vmax.f32 %v1515, 0.0
    %v2010 = vmax.f32 %v1518, 0.0
    %v2011 = vmax.f32 %v1523, 0.0
    %v2012 = vmax.f32 %v1526, 0.0
    %v2013 = vmax.f32 %v1531, 0.0
    %v2014 = vmax.f32 %v1534, 0.0
    %v2015 = vmax.f32 %v1539, 0.0
    %v2016 = vmax.f32 %v1542, 0.0
    %v2017 = vmax.f32 %v1547, 0.0
    %v2018 = vmax.f32 %v1550, 0.0
    %v2019 = vmax.f32 %v1555, 0.0
    %v2020 = vmax.f32 %v1558, 0.0
    %v2021 = vmax.f32 %v1563, 0.0
    %v2022 = vmax.f32 %v1566, 0.0
    %v2023 = vmax.f32 %v1571, 0.0
    %v2024 = vmax.f32 %v1574, 0.0
    %v2025 = vmax.f32 %v1579, 0.0
    %v2026 = vmax.f32 %v1582, 0.0
    %v2027 = vmax.f32 %v1587, 0.0
    %v2028 = vmax.f32 %v1590, 0.0
    %v2029 = vmax.f32 %v1595, 0.0
    %v2030 = vmax.f32 %v1598, 0.0
    %v2031 = vmax.f32 %v1603, 0.0
    %v2032 = vmax.f32 %v1606, 0.0
    %v2033 = vmax.f32 %v1611, 0.0
    %v2034 = vmax.f32 %v1614, 0.0
    %v2035 = vmax.f32 %v1619, 0.0
    %v2036 = vmax.f32 %v1622, 0.0
    %v2037 = vmax.f32 %v1627, 0.0
    %v2038 = vmax.f32 %v1630, 0.0
    %v2039 = vmax.f32 %v1635, 0.0
    %v2040 = vmax.f32 %v1638, 0.0
    %v2041 = vmax.f32 %v1643, 0.0
    %v2042 = vmax.f32 %v1646, 0.0
    %v2043 = vmax.f32 %v1651, 0.0
    %v2044 = vmax.f32 %v1654, 0.0
    %v2045 = vmax.f32 %v1659, 0.0
    %v2046 = vmax.f32 %v1662, 0.0
    %v2047 = vmax.f32 %v1667, 0.0
    %v2048 = vmax.f32 %v1670, 0.0
    %v2049 = vmax.f32 %v1675, 0.0
    %v2050 = vmax.f32 %v1678, 0.0
    %v2051 = vmax.f32 %v1683, 0.0
    %v2052 = vmax.f32 %v1686, 0.0
    %v2053 = vmax.f32 %v1691, 0.0
    %v2054 = vmax.f32 %v1694, 0.0
    %v2055 = vmax.f32 %v1699, 0.0
    %v2056 = vmax.f32 %v1702, 0.0
    %v2057 = vmax.f32 %v1707, 0.0
    %v2058 = vmax.f32 %v1710, 0.0
    %v2059 = vmax.f32 %v1715, 0.0
    %v2060 = vmax.f32 %v1718, 0.0
    %v2061 = vmax.f32 %v1723, 0.0
    %v2062 = vmax.f32 %v1726, 0.0
    %v2063 = vmax.f32 %v1731, 0.0
    %v2064 = vmax.f32 %v1734, 0.0
    %v2065 = vmax.f32 %v1739, 0.0
    %v2066 = vmax.f32 %v1742, 0.0
    %v2067 = vmax.f32 %v1747, 0.0
    %v2068 = vmax.f32 %v1750, 0.0
    %v2069 = vmax.f32 %v1755, 0.0
    %v2070 = vmax.f32 %v1758, 0.0
    %v2071 = vmax.f32 %v1763, 0.0
    %v2072 = vmax.f32 %v1766, 0.0
    %v2073 = vmax.f32 %v1771, 0.0
    %v2074 = vmax.f32 %v1774, 0.0
    %v2075 = vmax.f32 %v1779, 0.0
    %v2076 = vmax.f32 %v1782, 0.0
    %v2077 = vmax.f32 %v1787, 0.0
    %v2078 = vmax.f32 %v1790, 0.0
    %v2079 = vmax.f32 %v1795, 0.0
    %v2080 = vmax.f32 %v1798, 0.0
    %v2081 = vmax.f32 %v1803, 0.0
    %v2082 = vmax.f32 %v1806, 0.0
    %v2083 = vmax.f32 %v1811, 0.0
    %v2084 = vmax.f32 %v1814, 0.0
    %v2085 = vmax.f32 %v1819, 0.0
    %v2086 = vmax.f32 %v1822, 0.0
    %v2087 = vmax.f32 %v1827, 0.0
    %v2088 = vmax.f32 %v1830, 0.0
    %v2089 = vmax.f32 %v1835, 0.0
    %v2090 = vmax.f32 %v1838, 0.0
    %v2091 = vmax.f32 %v1843, 0.0
    %v2092 = vmax.f32 %v1846, 0.0
    %v2093 = vmax.f32 %v1851, 0.0
    %v2094 = vmax.f32 %v1854, 0.0
    %v2095 = vmax.f32 %v1859, 0.0
    %v2096 = vmax.f32 %v1862, 0.0
    %v2097 = vmax.f32 %v1867, 0.0
    %v2098 = vmax.f32 %v1870, 0.0
    %v2099 = vmax.f32 %v1875, 0.0
    %v2100 = vmax.f32 %v1878, 0.0
    %v2101 = vmax.f32 %v1883, 0.0
    %v2102 = vmax.f32 %v1886, 0.0
    %v2103 = vmax.f32 %v1891, 0.0
    %v2104 = vmax.f32 %v1894, 0.0
    %v2105 = vmax.f32 %v1899, 0.0
    %v2106 = vmax.f32 %v1902, 0.0
    %v2107 = vmax.f32 %v1907, 0.0
    %v2108 = vmax.f32 %v1910, 0.0
    %vm2109 = vcmask 48128
    %v2110 = vsel %vm2109, %v1913, 0.0
    %v2111 = vsel %vm2109, %v1914, 0.0
    %v2112 = vadd.f32 %v2110, %v2111
    %v2113 = vsel %vm2109, %v1915, 0.0
    %v2114 = vadd.f32 %v2112, %v2113
    %v2115 = vsel %vm2109, %v1916, 0.0
    %v2116 = vadd.f32 %v2114, %v2115
    %v2117 = vsel %vm2109, %v1917, 0.0
    %v2118 = vadd.f32 %v2116, %v2117
    %v2119 = vsel %vm2109, %v1918, 0.0
    %v2120 = vadd.f32 %v2118, %v2119
    %v2121 = vsel %vm2109, %v1919, 0.0
    %v2122 = vadd.f32 %v2120, %v2121
    %v2123 = vsel %vm2109, %v1920, 0.0
    %v2124 = vadd.f32 %v2122, %v2123
    %v2125 = vsel %vm2109, %v1921, 0.0
    %v2126 = vadd.f32 %v2124, %v2125
    %v2127 = vsel %vm2109, %v1922, 0.0
    %v2128 = vadd.f32 %v2126, %v2127
    %v2129 = vsel %vm2109, %v1923, 0.0
    %v2130 = vadd.f32 %v2128, %v2129
    %v2131 = vsel %vm2109, %v1924, 0.0
    %v2132 = vadd.f32 %v2130, %v2131
    %v2133 = vsel %vm2109, %v1925, 0.0
    %v2134 = vadd.f32 %v2132, %v2133
    %v2135 = vsel %vm2109, %v1926, 0.0
    %v2136 = vadd.f32 %v2134, %v2135
    %v2137 = vsel %vm2109, %v1927, 0.0
    %v2138 = vadd.f32 %v2136, %v2137
    %v2139 = vsel %vm2109, %v1928, 0.0
    %v2140 = vadd.f32 %v2138, %v2139
    %v2141 = vsel %vm2109, %v1929, 0.0
    %v2142 = vadd.f32 %v2140, %v2141
    %v2143 = vsel %vm2109, %v1930, 0.0
    %v2144 = vadd.f32 %v2142, %v2143
    %v2145 = vsel %vm2109, %v1931, 0.0
    %v2146 = vadd.f32 %v2144, %v2145
    %v2147 = vsel %vm2109, %v1932, 0.0
    %v2148 = vadd.f32 %v2146, %v2147
    %v2149 = vsel %vm2109, %v1933, 0.0
    %v2150 = vadd.f32 %v2148, %v2149
    %v2151 = vsel %vm2109, %v1934, 0.0
    %v2152 = vadd.f32 %v2150, %v2151
    %v2153 = vsel %vm2109, %v1935, 0.0
    %v2154 = vadd.f32 %v2152, %v2153
    %v2155 = vsel %vm2109, %v1936, 0.0
    %v2156 = vadd.f32 %v2154, %v2155
    %v2157 = vsel %vm2109, %v1937, 0.0
    %v2158 = vadd.f32 %v2156, %v2157
    %v2159 = vsel %vm2109, %v1938, 0.0
    %v2160 = vadd.f32 %v2158, %v2159
    %v2161 = vsel %vm2109, %v1939, 0.0
    %v2162 = vadd.f32 %v2160, %v2161
    %v2163 = vsel %vm2109, %v1940, 0.0
    %v2164 = vadd.f32 %v2162, %v2163
    %v2165 = vsel %vm2109, %v1941, 0.0
    %v2166 = vadd.f32 %v2164, %v2165
    %v2167 = vsel %vm2109, %v1942, 0.0
    %v2168 = vadd.f32 %v2166, %v2167
    %v2169 = vsel %vm2109, %v1943, 0.0
    %v2170 = vadd.f32 %v2168, %v2169
    %v2171 = vsel %vm2109, %v1944, 0.0
    %v2172 = vadd.f32 %v2170, %v2171
    %v2173 = vsel %vm2109, %v1945, 0.0
    %v2174 = vadd.f32 %v2172, %v2173
    %v2175 = vsel %vm2109, %v1946, 0.0
    %v2176 = vadd.f32 %v2174, %v2175
    %v2177 = vsel %vm2109, %v1947, 0.0
    %v2178 = vadd.f32 %v2176, %v2177
    %v2179 = vsel %vm2109, %v1948, 0.0
    %v2180 = vadd.f32 %v2178, %v2179
    %v2181 = vsel %vm2109, %v1949, 0.0
    %v2182 = vadd.f32 %v2180, %v2181
    %v2183 = vsel %vm2109, %v1950, 0.0
    %v2184 = vadd.f32 %v2182, %v2183
    %v2185 = vsel %vm2109, %v1951, 0.0
    %v2186 = vadd.f32 %v2184, %v2185
    %v2187 = vsel %vm2109, %v1952, 0.0
    %v2188 = vadd.f32 %v2186, %v2187
    %v2189 = vsel %vm2109, %v1953, 0.0
    %v2190 = vadd.f32 %v2188, %v2189
    %v2191 = vsel %vm2109, %v1954, 0.0
    %v2192 = vadd.f32 %v2190, %v2191
    %v2193 = vsel %vm2109, %v1955, 0.0
    %v2194 = vadd.f32 %v2192, %v2193
    %v2195 = vsel %vm2109, %v1956, 0.0
    %v2196 = vadd.f32 %v2194, %v2195
    %v2197 = vsel %vm2109, %v1957, 0.0
    %v2198 = vadd.f32 %v2196, %v2197
    %v2199 = vsel %vm2109, %v1958, 0.0
    %v2200 = vadd.f32 %v2198, %v2199
    %v2201 = vsel %vm2109, %v1959, 0.0
    %v2202 = vadd.f32 %v2200, %v2201
    %v2203 = vsel %vm2109, %v1960, 0.0
    %v2204 = vadd.f32 %v2202, %v2203
    %v2205 = vsel %vm2109, %v1961, 0.0
    %v2206 = vadd.f32 %v2204, %v2205
    %v2207 = vsel %vm2109, %v1962, 0.0
    %v2208 = vadd.f32 %v2206, %v2207
    %v2209 = vsel %vm2109, %v1963, 0.0
    %v2210 = vadd.f32 %v2208, %v2209
    %v2211 = vsel %vm2109, %v1964, 0.0
    %v2212 = vadd.f32 %v2210, %v2211
    %v2213 = vsel %vm2109, %v1965, 0.0
    %v2214 = vadd.f32 %v2212, %v2213
    %v2215 = vsel %vm2109, %v1966, 0.0
    %v2216 = vadd.f32 %v2214, %v2215
    %v2217 = vsel %vm2109, %v1967, 0.0
    %v2218 = vadd.f32 %v2216, %v2217
    %v2219 = vsel %vm2109, %v1968, 0.0
    %v2220 = vadd.f32 %v2218, %v2219
    %v2221 = vsel %vm2109, %v1969, 0.0
    %v2222 = vadd.f32 %v2220, %v2221
    %v2223 = vsel %vm2109, %v1970, 0.0
    %v2224 = vadd.f32 %v2222, %v2223
    %v2225 = vsel %vm2109, %v1971, 0.0
    %v2226 = vadd.f32 %v2224, %v2225
    %v2227 = vsel %vm2109, %v1972, 0.0
    %v2228 = vadd.f32 %v2226, %v2227
    %v2229 = vsel %vm2109, %v1973, 0.0
    %v2230 = vadd.f32 %v2228, %v2229
    %v2231 = vsel %vm2109, %v1974, 0.0
    %v2232 = vadd.f32 %v2230, %v2231
    %v2233 = vsel %vm2109, %v1975, 0.0
    %v2234 = vadd.f32 %v2232, %v2233
    %v2235 = vsel %vm2109, %v1976, 0.0
    %v2236 = vadd.f32 %v2234, %v2235
    %v2237 = vsel %vm2109, %v1977, 0.0
    %v2238 = vadd.f32 %v2236, %v2237
    %v2239 = vsel %vm2109, %v1978, 0.0
    %v2240 = vadd.f32 %v2238, %v2239
    %v2241 = vsel %vm2109, %v1979, 0.0
    %v2242 = vadd.f32 %v2240, %v2241
    %v2243 = vsel %vm2109, %v1980, 0.0
    %v2244 = vadd.f32 %v2242, %v2243
    %v2245 = vsel %vm2109, %v1981, 0.0
    %v2246 = vadd.f32 %v2244, %v2245
    %v2247 = vsel %vm2109, %v1982, 0.0
    %v2248 = vadd.f32 %v2246, %v2247
    %v2249 = vsel %vm2109, %v1983, 0.0
    %v2250 = vadd.f32 %v2248, %v2249
    %v2251 = vsel %vm2109, %v1984, 0.0
    %v2252 = vadd.f32 %v2250, %v2251
    %v2253 = vsel %vm2109, %v1985, 0.0
    %v2254 = vadd.f32 %v2252, %v2253
    %v2255 = vsel %vm2109, %v1986, 0.0
    %v2256 = vadd.f32 %v2254, %v2255
    %v2257 = vsel %vm2109, %v1987, 0.0
    %v2258 = vadd.f32 %v2256, %v2257
    %v2259 = vsel %vm2109, %v1988, 0.0
    %v2260 = vadd.f32 %v2258, %v2259
    %v2261 = vsel %vm2109, %v1989, 0.0
    %v2262 = vadd.f32 %v2260, %v2261
    %v2263 = vsel %vm2109, %v1990, 0.0
    %v2264 = vadd.f32 %v2262, %v2263
    %v2265 = vsel %vm2109, %v1991, 0.0
    %v2266 = vadd.f32 %v2264, %v2265
    %v2267 = vsel %vm2109, %v1992, 0.0
    %v2268 = vadd.f32 %v2266, %v2267
    %v2269 = vsel %vm2109, %v1993, 0.0
    %v2270 = vadd.f32 %v2268, %v2269
    %v2271 = vsel %vm2109, %v1994, 0.0
    %v2272 = vadd.f32 %v2270, %v2271
    %v2273 = vsel %vm2109, %v1995, 0.0
    %v2274 = vadd.f32 %v2272, %v2273
    %v2275 = vsel %vm2109, %v1996, 0.0
    %v2276 = vadd.f32 %v2274, %v2275
    %v2277 = vsel %vm2109, %v1997, 0.0
    %v2278 = vadd.f32 %v2276, %v2277
    %v2279 = vsel %vm2109, %v1998, 0.0
    %v2280 = vadd.f32 %v2278, %v2279
    %v2281 = vsel %vm2109, %v1999, 0.0
    %v2282 = vadd.f32 %v2280, %v2281
    %v2283 = vsel %vm2109, %v2000, 0.0
    %v2284 = vadd.f32 %v2282, %v2283
    %v2285 = vsel %vm2109, %v2001, 0.0
    %v2286 = vadd.f32 %v2284, %v2285
    %v2287 = vsel %vm2109, %v2002, 0.0
    %v2288 = vadd.f32 %v2286, %v2287
    %v2289 = vsel %vm2109, %v2003, 0.0
    %v2290 = vadd.f32 %v2288, %v2289
    %v2291 = vsel %vm2109, %v2004, 0.0
    %v2292 = vadd.f32 %v2290, %v2291
    %v2293 = vsel %vm2109, %v2005, 0.0
    %v2294 = vadd.f32 %v2292, %v2293
    %v2295 = vsel %vm2109, %v2006, 0.0
    %v2296 = vadd.f32 %v2294, %v2295
    %v2297 = vsel %vm2109, %v2007, 0.0
    %v2298 = vadd.f32 %v2296, %v2297
    %v2299 = vsel %vm2109, %v2008, 0.0
    %v2300 = vadd.f32 %v2298, %v2299
    %v2301 = vsel %vm2109, %v2009, 0.0
    %v2302 = vadd.f32 %v2300, %v2301
    %v2303 = vsel %vm2109, %v2010, 0.0
    %v2304 = vadd.f32 %v2302, %v2303
    %v2305 = vsel %vm2109, %v2011, 0.0
    %v2306 = vadd.f32 %v2304, %v2305
    %v2307 = vsel %vm2109, %v2012, 0.0
    %v2308 = vadd.f32 %v2306, %v2307
    %v2309 = vsel %vm2109, %v2013, 0.0
    %v2310 = vadd.f32 %v2308, %v2309
    %v2311 = vsel %vm2109, %v2014, 0.0
    %v2312 = vadd.f32 %v2310, %v2311
    %v2313 = vsel %vm2109, %v2015, 0.0
    %v2314 = vadd.f32 %v2312, %v2313
    %v2315 = vsel %vm2109, %v2016, 0.0
    %v2316 = vadd.f32 %v2314, %v2315
    %v2317 = vsel %vm2109, %v2017, 0.0
    %v2318 = vadd.f32 %v2316, %v2317
    %v2319 = vsel %vm2109, %v2018, 0.0
    %v2320 = vadd.f32 %v2318, %v2319
    %v2321 = vsel %vm2109, %v2019, 0.0
    %v2322 = vadd.f32 %v2320, %v2321
    %v2323 = vsel %vm2109, %v2020, 0.0
    %v2324 = vadd.f32 %v2322, %v2323
    %v2325 = vsel %vm2109, %v2021, 0.0
    %v2326 = vadd.f32 %v2324, %v2325
    %v2327 = vsel %vm2109, %v2022, 0.0
    %v2328 = vadd.f32 %v2326, %v2327
    %v2329 = vsel %vm2109, %v2023, 0.0
    %v2330 = vadd.f32 %v2328, %v2329
    %v2331 = vsel %vm2109, %v2024, 0.0
    %v2332 = vadd.f32 %v2330, %v2331
    %v2333 = vsel %vm2109, %v2025, 0.0
    %v2334 = vadd.f32 %v2332, %v2333
    %v2335 = vsel %vm2109, %v2026, 0.0
    %v2336 = vadd.f32 %v2334, %v2335
    %v2337 = vsel %vm2109, %v2027, 0.0
    %v2338 = vadd.f32 %v2336, %v2337
    %v2339 = vsel %vm2109, %v2028, 0.0
    %v2340 = vadd.f32 %v2338, %v2339
    %v2341 = vsel %vm2109, %v2029, 0.0
    %v2342 = vadd.f32 %v2340, %v2341
    %v2343 = vsel %vm2109, %v2030, 0.0
    %v2344 = vadd.f32 %v2342, %v2343
    %v2345 = vsel %vm2109, %v2031, 0.0
    %v2346 = vadd.f32 %v2344, %v2345
    %v2347 = vsel %vm2109, %v2032, 0.0
    %v2348 = vadd.f32 %v2346, %v2347
    %v2349 = vsel %vm2109, %v2033, 0.0
    %v2350 = vadd.f32 %v2348, %v2349
    %v2351 = vsel %vm2109, %v2034, 0.0
    %v2352 = vadd.f32 %v2350, %v2351
    %v2353 = vsel %vm2109, %v2035, 0.0
    %v2354 = vadd.f32 %v2352, %v2353
    %v2355 = vsel %vm2109, %v2036, 0.0
    %v2356 = vadd.f32 %v2354, %v2355
    %v2357 = vsel %vm2109, %v2037, 0.0
    %v2358 = vadd.f32 %v2356, %v2357
    %v2359 = vsel %vm2109, %v2038, 0.0
    %v2360 = vadd.f32 %v2358, %v2359
    %v2361 = vsel %vm2109, %v2039, 0.0
    %v2362 = vadd.f32 %v2360, %v2361
    %v2363 = vsel %vm2109, %v2040, 0.0
    %v2364 = vadd.f32 %v2362, %v2363
    %v2365 = vsel %vm2109, %v2041, 0.0
    %v2366 = vadd.f32 %v2364, %v2365
    %v2367 = vsel %vm2109, %v2042, 0.0
    %v2368 = vadd.f32 %v2366, %v2367
    %v2369 = vsel %vm2109, %v2043, 0.0
    %v2370 = vadd.f32 %v2368, %v2369
    %v2371 = vsel %vm2109, %v2044, 0.0
    %v2372 = vadd.f32 %v2370, %v2371
    %v2373 = vsel %vm2109, %v2045, 0.0
    %v2374 = vadd.f32 %v2372, %v2373
    %v2375 = vsel %vm2109, %v2046, 0.0
    %v2376 = vadd.f32 %v2374, %v2375
    %v2377 = vsel %vm2109, %v2047, 0.0
    %v2378 = vadd.f32 %v2376, %v2377
    %v2379 = vsel %vm2109, %v2048, 0.0
    %v2380 = vadd.f32 %v2378, %v2379
    %v2381 = vsel %vm2109, %v2049, 0.0
    %v2382 = vadd.f32 %v2380, %v2381
    %v2383 = vsel %vm2109, %v2050, 0.0
    %v2384 = vadd.f32 %v2382, %v2383
    %v2385 = vsel %vm2109, %v2051, 0.0
    %v2386 = vadd.f32 %v2384, %v2385
    %v2387 = vsel %vm2109, %v2052, 0.0
    %v2388 = vadd.f32 %v2386, %v2387
    %v2389 = vsel %vm2109, %v2053, 0.0
    %v2390 = vadd.f32 %v2388, %v2389
    %v2391 = vsel %vm2109, %v2054, 0.0
    %v2392 = vadd.f32 %v2390, %v2391
    %v2393 = vsel %vm2109, %v2055, 0.0
    %v2394 = vadd.f32 %v2392, %v2393
    %v2395 = vsel %vm2109, %v2056, 0.0
    %v2396 = vadd.f32 %v2394, %v2395
    %v2397 = vsel %vm2109, %v2057, 0.0
    %v2398 = vadd.f32 %v2396, %v2397
    %v2399 = vsel %vm2109, %v2058, 0.0
    %v2400 = vadd.f32 %v2398, %v2399
    %v2401 = vsel %vm2109, %v2059, 0.0
    %v2402 = vadd.f32 %v2400, %v2401
    %v2403 = vsel %vm2109, %v2060, 0.0
    %v2404 = vadd.f32 %v2402, %v2403
    %v2405 = vsel %vm2109, %v2061, 0.0
    %v2406 = vadd.f32 %v2404, %v2405
    %v2407 = vsel %vm2109, %v2062, 0.0
    %v2408 = vadd.f32 %v2406, %v2407
    %v2409 = vsel %vm2109, %v2063, 0.0
    %v2410 = vadd.f32 %v2408, %v2409
    %v2411 = vsel %vm2109, %v2064, 0.0
    %v2412 = vadd.f32 %v2410, %v2411
    %v2413 = vsel %vm2109, %v2065, 0.0
    %v2414 = vadd.f32 %v2412, %v2413
    %v2415 = vsel %vm2109, %v2066, 0.0
    %v2416 = vadd.f32 %v2414, %v2415
    %v2417 = vsel %vm2109, %v2067, 0.0
    %v2418 = vadd.f32 %v2416, %v2417
    %v2419 = vsel %vm2109, %v2068, 0.0
    %v2420 = vadd.f32 %v2418, %v2419
    %v2421 = vsel %vm2109, %v2069, 0.0
    %v2422 = vadd.f32 %v2420, %v2421
    %v2423 = vsel %vm2109, %v2070, 0.0
    %v2424 = vadd.f32 %v2422, %v2423
    %v2425 = vsel %vm2109, %v2071, 0.0
    %v2426 = vadd.f32 %v2424, %v2425
    %v2427 = vsel %vm2109, %v2072, 0.0
    %v2428 = vadd.f32 %v2426, %v2427
    %v2429 = vsel %vm2109, %v2073, 0.0
    %v2430 = vadd.f32 %v2428, %v2429
    %v2431 = vsel %vm2109, %v2074, 0.0
    %v2432 = vadd.f32 %v2430, %v2431
    %v2433 = vsel %vm2109, %v2075, 0.0
    %v2434 = vadd.f32 %v2432, %v2433
    %v2435 = vsel %vm2109, %v2076, 0.0
    %v2436 = vadd.f32 %v2434, %v2435
    %v2437 = vsel %vm2109, %v2077, 0.0
    %v2438 = vadd.f32 %v2436, %v2437
    %v2439 = vsel %vm2109, %v2078, 0.0
    %v2440 = vadd.f32 %v2438, %v2439
    %v2441 = vsel %vm2109, %v2079, 0.0
    %v2442 = vadd.f32 %v2440, %v2441
    %v2443 = vsel %vm2109, %v2080, 0.0
    %v2444 = vadd.f32 %v2442, %v2443
    %v2445 = vsel %vm2109, %v2081, 0.0
    %v2446 = vadd.f32 %v2444, %v2445
    %v2447 = vsel %vm2109, %v2082, 0.0
    %v2448 = vadd.f32 %v2446, %v2447
    %v2449 = vsel %vm2109, %v2083, 0.0
    %v2450 = vadd.f32 %v2448, %v2449
    %v2451 = vsel %vm2109, %v2084, 0.0
    %v2452 = vadd.f32 %v2450, %v2451
    %v2453 = vsel %vm2109, %v2085, 0.0
    %v2454 = vadd.f32 %v2452, %v2453
    %v2455 = vsel %vm2109, %v2086, 0.0
    %v2456 = vadd.f32 %v2454, %v2455
    %v2457 = vsel %vm2109, %v2087, 0.0
    %v2458 = vadd.f32 %v2456, %v2457
    %v2459 = vsel %vm2109, %v2088, 0.0
    %v2460 = vadd.f32 %v2458, %v2459
    %v2461 = vsel %vm2109, %v2089, 0.0
    %v2462 = vadd.f32 %v2460, %v2461
    %v2463 = vsel %vm2109, %v2090, 0.0
    %v2464 = vadd.f32 %v2462, %v2463
    %v2465 = vsel %vm2109, %v2091, 0.0
    %v2466 = vadd.f32 %v2464, %v2465
    %v2467 = vsel %vm2109, %v2092, 0.0
    %v2468 = vadd.f32 %v2466, %v2467
    %v2469 = vsel %vm2109, %v2093, 0.0
    %v2470 = vadd.f32 %v2468, %v2469
    %v2471 = vsel %vm2109, %v2094, 0.0
    %v2472 = vadd.f32 %v2470, %v2471
    %v2473 = vsel %vm2109, %v2095, 0.0
    %v2474 = vadd.f32 %v2472, %v2473
    %v2475 = vsel %vm2109, %v2096, 0.0
    %v2476 = vadd.f32 %v2474, %v2475
    %v2477 = vsel %vm2109, %v2097, 0.0
    %v2478 = vadd.f32 %v2476, %v2477
    %v2479 = vsel %vm2109, %v2098, 0.0
    %v2480 = vadd.f32 %v2478, %v2479
    %v2481 = vsel %vm2109, %v2099, 0.0
    %v2482 = vadd.f32 %v2480, %v2481
    %v2483 = vsel %vm2109, %v2100, 0.0
    %v2484 = vadd.f32 %v2482, %v2483
    %v2485 = vsel %vm2109, %v2101, 0.0
    %v2486 = vadd.f32 %v2484, %v2485
    %v2487 = vsel %vm2109, %v2102, 0.0
    %v2488 = vadd.f32 %v2486, %v2487
    %v2489 = vsel %vm2109, %v2103, 0.0
    %v2490 = vadd.f32 %v2488, %v2489
    %v2491 = vsel %vm2109, %v2104, 0.0
    %v2492 = vadd.f32 %v2490, %v2491
    %v2493 = vsel %vm2109, %v2105, 0.0
    %v2494 = vadd.f32 %v2492, %v2493
    %v2495 = vsel %vm2109, %v2106, 0.0
    %v2496 = vadd.f32 %v2494, %v2495
    %v2497 = vsel %vm2109, %v2107, 0.0
    %v2498 = vadd.f32 %v2496, %v2497
    %v2499 = vsel %vm2109, %v2108, 0.0
    %v2500 = vadd.f32 %v2498, %v2499
    %v2501 = vrot.slane %v2500, 4
    %v2502 = vadd.f32 %v2500, %v2501
    %v2503 = vrot.slane %v2502, 2
    %v2504 = vadd.f32 %v2502, %v2503
    %v2505 = vrot.slane %v2504, 1
    %v2506 = vadd.f32 %v2504, %v2505
    %v2507 = vmul.f32 %v2506, 0.0006377551
    %v2508 = vmul.f32 %v1913, %v1913
    %v2509 = vmul.f32 %v1914, %v1914
    %v2510 = vmul.f32 %v1915, %v1915
    %v2511 = vmul.f32 %v1916, %v1916
    %v2512 = vmul.f32 %v1917, %v1917
    %v2513 = vmul.f32 %v1918, %v1918
    %v2514 = vmul.f32 %v1919, %v1919
    %v2515 = vmul.f32 %v1920, %v1920
    %v2516 = vmul.f32 %v1921, %v1921
    %v2517 = vmul.f32 %v1922, %v1922
    %v2518 = vmul.f32 %v1923, %v1923
    %v2519 = vmul.f32 %v1924, %v1924
    %v2520 = vmul.f32 %v1925, %v1925
    %v2521 = vmul.f32 %v1926, %v1926
    %v2522 = vmul.f32 %v1927, %v1927
    %v2523 = vmul.f32 %v1928, %v1928
    %v2524 = vmul.f32 %v1929, %v1929
    %v2525 = vmul.f32 %v1930, %v1930
    %v2526 = vmul.f32 %v1931, %v1931
    %v2527 = vmul.f32 %v1932, %v1932
    %v2528 = vmul.f32 %v1933, %v1933
    %v2529 = vmul.f32 %v1934, %v1934
    %v2530 = vmul.f32 %v1935, %v1935
    %v2531 = vmul.f32 %v1936, %v1936
    %v2532 = vmul.f32 %v1937, %v1937
    %v2533 = vmul.f32 %v1938, %v1938
    %v2534 = vmul.f32 %v1939, %v1939
    %v2535 = vmul.f32 %v1940, %v1940
    %v2536 = vmul.f32 %v1941, %v1941
    %v2537 = vmul.f32 %v1942, %v1942
    %v2538 = vmul.f32 %v1943, %v1943
    %v2539 = vmul.f32 %v1944, %v1944
    %v2540 = vmul.f32 %v1945, %v1945
    %v2541 = vmul.f32 %v1946, %v1946
    %v2542 = vmul.f32 %v1947, %v1947
    %v2543 = vmul.f32 %v1948, %v1948
    %v2544 = vmul.f32 %v1949, %v1949
    %v2545 = vmul.f32 %v1950, %v1950
    %v2546 = vmul.f32 %v1951, %v1951
    %v2547 = vmul.f32 %v1952, %v1952
    %v2548 = vmul.f32 %v1953, %v1953
    %v2549 = vmul.f32 %v1954, %v1954
    %v2550 = vmul.f32 %v1955, %v1955
    %v2551 = vmul.f32 %v1956, %v1956
    %v2552 = vmul.f32 %v1957, %v1957
    %v2553 = vmul.f32 %v1958, %v1958
    %v2554 = vmul.f32 %v1959, %v1959
    %v2555 = vmul.f32 %v1960, %v1960
    %v2556 = vmul.f32 %v1961, %v1961
    %v2557 = vmul.f32 %v1962, %v1962
    %v2558 = vmul.f32 %v1963, %v1963
    %v2559 = vmul.f32 %v1964, %v1964
    %v2560 = vmul.f32 %v1965, %v1965
    %v2561 = vmul.f32 %v1966, %v1966
    %v2562 = vmul.f32 %v1967, %v1967
    %v2563 = vmul.f32 %v1968, %v1968
    %v2564 = vmul.f32 %v1969, %v1969
    %v2565 = vmul.f32 %v1970, %v1970
    %v2566 = vmul.f32 %v1971, %v1971
    %v2567 = vmul.f32 %v1972, %v1972
    %v2568 = vmul.f32 %v1973, %v1973
    %v2569 = vmul.f32 %v1974, %v1974
    %v2570 = vmul.f32 %v1975, %v1975
    %v2571 = vmul.f32 %v1976, %v1976
    %v2572 = vmul.f32 %v1977, %v1977
    %v2573 = vmul.f32 %v1978, %v1978
    %v2574 = vmul.f32 %v1979, %v1979
    %v2575 = vmul.f32 %v1980, %v1980
    %v2576 = vmul.f32 %v1981, %v1981
    %v2577 = vmul.f32 %v1982, %v1982
    %v2578 = vmul.f32 %v1983, %v1983
    %v2579 = vmul.f32 %v1984, %v1984
    %v2580 = vmul.f32 %v1985, %v1985
    %v2581 = vmul.f32 %v1986, %v1986
    %v2582 = vmul.f32 %v1987, %v1987
    %v2583 = vmul.f32 %v1988, %v1988
    %v2584 = vmul.f32 %v1989, %v1989
    %v2585 = vmul.f32 %v1990, %v1990
    %v2586 = vmul.f32 %v1991, %v1991
    %v2587 = vmul.f32 %v1992, %v1992
    %v2588 = vmul.f32 %v1993, %v1993
    %v2589 = vmul.f32 %v1994, %v1994
    %v2590 = vmul.f32 %v1995, %v1995
    %v2591 = vmul.f32 %v1996, %v1996
    %v2592 = vmul.f32 %v1997, %v1997
    %v2593 = vmul.f32 %v1998, %v1998
    %v2594 = vmul.f32 %v1999, %v1999
    %v2595 = vmul.f32 %v2000, %v2000
    %v2596 = vmul.f32 %v2001, %v2001
    %v2597 = vmul.f32 %v2002, %v2002
    %v2598 = vmul.f32 %v2003, %v2003
    %v2599 = vmul.f32 %v2004, %v2004
    %v2600 = vmul.f32 %v2005, %v2005
    %v2601 = vmul.f32 %v2006, %v2006
    %v2602 = vmul.f32 %v2007, %v2007
    %v2603 = vmul.f32 %v2008, %v2008
    %v2604 = vmul.f32 %v2009, %v2009
    %v2605 = vmul.f32 %v2010, %v2010
    %v2606 = vmul.f32 %v2011, %v2011
    %v2607 = vmul.f32 %v2012, %v2012
    %v2608 = vmul.f32 %v2013, %v2013
    %v2609 = vmul.f32 %v2014, %v2014
    %v2610 = vmul.f32 %v2015, %v2015
    %v2611 = vmul.f32 %v2016, %v2016
    %v2612 = vmul.f32 %v2017, %v2017
    %v2613 = vmul.f32 %v2018, %v2018
    %v2614 = vmul.f32 %v2019, %v2019
    %v2615 = vmul.f32 %v2020, %v2020
    %v2616 = vmul.f32 %v2021, %v2021
    %v2617 = vmul.f32 %v2022, %v2022
    %v2618 = vmul.f32 %v2023, %v2023
    %v2619 = vmul.f32 %v2024, %v2024
    %v2620 = vmul.f32 %v2025, %v2025
    %v2621 = vmul.f32 %v2026, %v2026
    %v2622 = vmul.f32 %v2027, %v2027
    %v2623 = vmul.f32 %v2028, %v2028
    %v2624 = vmul.f32 %v2029, %v2029
    %v2625 = vmul.f32 %v2030, %v2030
    %v2626 = vmul.f32 %v2031, %v2031
    %v2627 = vmul.f32 %v2032, %v2032
    %v2628 = vmul.f32 %v2033, %v2033
    %v2629 = vmul.f32 %v2034, %v2034
    %v2630 = vmul.f32 %v2035, %v2035
    %v2631 = vmul.f32 %v2036, %v2036
    %v2632 = vmul.f32 %v2037, %v2037
    %v2633 = vmul.f32 %v2038, %v2038
    %v2634 = vmul.f32 %v2039, %v2039
    %v2635 = vmul.f32 %v2040, %v2040
    %v2636 = vmul.f32 %v2041, %v2041
    %v2637 = vmul.f32 %v2042, %v2042
    %v2638 = vmul.f32 %v2043, %v2043
    %v2639 = vmul.f32 %v2044, %v2044
    %v2640 = vmul.f32 %v2045, %v2045
    %v2641 = vmul.f32 %v2046, %v2046
    %v2642 = vmul.f32 %v2047, %v2047
    %v2643 = vmul.f32 %v2048, %v2048
    %v2644 = vmul.f32 %v2049, %v2049
    %v2645 = vmul.f32 %v2050, %v2050
    %v2646 = vmul.f32 %v2051, %v2051
    %v2647 = vmul.f32 %v2052, %v2052
    %v2648 = vmul.f32 %v2053, %v2053
    %v2649 = vmul.f32 %v2054, %v2054
    %v2650 = vmul.f32 %v2055, %v2055
    %v2651 = vmul.f32 %v2056, %v2056
    %v2652 = vmul.f32 %v2057, %v2057
    %v2653 = vmul.f32 %v2058, %v2058
    %v2654 = vmul.f32 %v2059, %v2059
    %v2655 = vmul.f32 %v2060, %v2060
    %v2656 = vmul.f32 %v2061, %v2061
    %v2657 = vmul.f32 %v2062, %v2062
    %v2658 = vmul.f32 %v2063, %v2063
    %v2659 = vmul.f32 %v2064, %v2064
    %v2660 = vmul.f32 %v2065, %v2065
    %v2661 = vmul.f32 %v2066, %v2066
    %v2662 = vmul.f32 %v2067, %v2067
    %v2663 = vmul.f32 %v2068, %v2068
    %v2664 = vmul.f32 %v2069, %v2069
    %v2665 = vmul.f32 %v2070, %v2070
    %v2666 = vmul.f32 %v2071, %v2071
    %v2667 = vmul.f32 %v2072, %v2072
    %v2668 = vmul.f32 %v2073, %v2073
    %v2669 = vmul.f32 %v2074, %v2074
    %v2670 = vmul.f32 %v2075, %v2075
    %v2671 = vmul.f32 %v2076, %v2076
    %v2672 = vmul.f32 %v2077, %v2077
    %v2673 = vmul.f32 %v2078, %v2078
    %v2674 = vmul.f32 %v2079, %v2079
    %v2675 = vmul.f32 %v2080, %v2080
    %v2676 = vmul.f32 %v2081, %v2081
    %v2677 = vmul.f32 %v2082, %v2082
    %v2678 = vmul.f32 %v2083, %v2083
    %v2679 = vmul.f32 %v2084, %v2084
    %v2680 = vmul.f32 %v2085, %v2085
    %v2681 = vmul.f32 %v2086, %v2086
    %v2682 = vmul.f32 %v2087, %v2087
    %v2683 = vmul.f32 %v2088, %v2088
    %v2684 = vmul.f32 %v2089, %v2089
    %v2685 = vmul.f32 %v2090, %v2090
    %v2686 = vmul.f32 %v2091, %v2091
    %v2687 = vmul.f32 %v2092, %v2092
    %v2688 = vmul.f32 %v2093, %v2093
    %v2689 = vmul.f32 %v2094, %v2094
    %v2690 = vmul.f32 %v2095, %v2095
    %v2691 = vmul.f32 %v2096, %v2096
    %v2692 = vmul.f32 %v2097, %v2097
    %v2693 = vmul.f32 %v2098, %v2098
    %v2694 = vmul.f32 %v2099, %v2099
    %v2695 = vmul.f32 %v2100, %v2100
    %v2696 = vmul.f32 %v2101, %v2101
    %v2697 = vmul.f32 %v2102, %v2102
    %v2698 = vmul.f32 %v2103, %v2103
    %v2699 = vmul.f32 %v2104, %v2104
    %v2700 = vmul.f32 %v2105, %v2105
    %v2701 = vmul.f32 %v2106, %v2106
    %v2702 = vmul.f32 %v2107, %v2107
    %v2703 = vmul.f32 %v2108, %v2108
    %v2704 = vsel %vm2109, %v2508, 0.0
    %v2705 = vsel %vm2109, %v2509, 0.0
    %v2706 = vadd.f32 %v2704, %v2705
    %v2707 = vsel %vm2109, %v2510, 0.0
    %v2708 = vadd.f32 %v2706, %v2707
    %v2709 = vsel %vm2109, %v2511, 0.0
    %v2710 = vadd.f32 %v2708, %v2709
    %v2711 = vsel %vm2109, %v2512, 0.0
    %v2712 = vadd.f32 %v2710, %v2711
    %v2713 = vsel %vm2109, %v2513, 0.0
    %v2714 = vadd.f32 %v2712, %v2713
    %v2715 = vsel %vm2109, %v2514, 0.0
    %v2716 = vadd.f32 %v2714, %v2715
    %v2717 = vsel %vm2109, %v2515, 0.0
    %v2718 = vadd.f32 %v2716, %v2717
    %v2719 = vsel %vm2109, %v2516, 0.0
    %v2720 = vadd.f32 %v2718, %v2719
    %v2721 = vsel %vm2109, %v2517, 0.0
    %v2722 = vadd.f32 %v2720, %v2721
    %v2723 = vsel %vm2109, %v2518, 0.0
    %v2724 = vadd.f32 %v2722, %v2723
    %v2725 = vsel %vm2109, %v2519, 0.0
    %v2726 = vadd.f32 %v2724, %v2725
    %v2727 = vsel %vm2109, %v2520, 0.0
    %v2728 = vadd.f32 %v2726, %v2727
    %v2729 = vsel %vm2109, %v2521, 0.0
    %v2730 = vadd.f32 %v2728, %v2729
    %v2731 = vsel %vm2109, %v2522, 0.0
    %v2732 = vadd.f32 %v2730, %v2731
    %v2733 = vsel %vm2109, %v2523, 0.0
    %v2734 = vadd.f32 %v2732, %v2733
    %v2735 = vsel %vm2109, %v2524, 0.0
    %v2736 = vadd.f32 %v2734, %v2735
    %v2737 = vsel %vm2109, %v2525, 0.0
    %v2738 = vadd.f32 %v2736, %v2737
    %v2739 = vsel %vm2109, %v2526, 0.0
    %v2740 = vadd.f32 %v2738, %v2739
    %v2741 = vsel %vm2109, %v2527, 0.0
    %v2742 = vadd.f32 %v2740, %v2741
    %v2743 = vsel %vm2109, %v2528, 0.0
    %v2744 = vadd.f32 %v2742, %v2743
    %v2745 = vsel %vm2109, %v2529, 0.0
    %v2746 = vadd.f32 %v2744, %v2745
    %v2747 = vsel %vm2109, %v2530, 0.0
    %v2748 = vadd.f32 %v2746, %v2747
    %v2749 = vsel %vm2109, %v2531, 0.0
    %v2750 = vadd.f32 %v2748, %v2749
    %v2751 = vsel %vm2109, %v2532, 0.0
    %v2752 = vadd.f32 %v2750, %v2751
    %v2753 = vsel %vm2109, %v2533, 0.0
    %v2754 = vadd.f32 %v2752, %v2753
    %v2755 = vsel %vm2109, %v2534, 0.0
    %v2756 = vadd.f32 %v2754, %v2755
    %v2757 = vsel %vm2109, %v2535, 0.0
    %v2758 = vadd.f32 %v2756, %v2757
    %v2759 = vsel %vm2109, %v2536, 0.0
    %v2760 = vadd.f32 %v2758, %v2759
    %v2761 = vsel %vm2109, %v2537, 0.0
    %v2762 = vadd.f32 %v2760, %v2761
    %v2763 = vsel %vm2109, %v2538, 0.0
    %v2764 = vadd.f32 %v2762, %v2763
    %v2765 = vsel %vm2109, %v2539, 0.0
    %v2766 = vadd.f32 %v2764, %v2765
    %v2767 = vsel %vm2109, %v2540, 0.0
    %v2768 = vadd.f32 %v2766, %v2767
    %v2769 = vsel %vm2109, %v2541, 0.0
    %v2770 = vadd.f32 %v2768, %v2769
    %v2771 = vsel %vm2109, %v2542, 0.0
    %v2772 = vadd.f32 %v2770, %v2771
    %v2773 = vsel %vm2109, %v2543, 0.0
    %v2774 = vadd.f32 %v2772, %v2773
    %v2775 = vsel %vm2109, %v2544, 0.0
    %v2776 = vadd.f32 %v2774, %v2775
    %v2777 = vsel %vm2109, %v2545, 0.0
    %v2778 = vadd.f32 %v2776, %v2777
    %v2779 = vsel %vm2109, %v2546, 0.0
    %v2780 = vadd.f32 %v2778, %v2779
    %v2781 = vsel %vm2109, %v2547, 0.0
    %v2782 = vadd.f32 %v2780, %v2781
    %v2783 = vsel %vm2109, %v2548, 0.0
    %v2784 = vadd.f32 %v2782, %v2783
    %v2785 = vsel %vm2109, %v2549, 0.0
    %v2786 = vadd.f32 %v2784, %v2785
    %v2787 = vsel %vm2109, %v2550, 0.0
    %v2788 = vadd.f32 %v2786, %v2787
    %v2789 = vsel %vm2109, %v2551, 0.0
    %v2790 = vadd.f32 %v2788, %v2789
    %v2791 = vsel %vm2109, %v2552, 0.0
    %v2792 = vadd.f32 %v2790, %v2791
    %v2793 = vsel %vm2109, %v2553, 0.0
    %v2794 = vadd.f32 %v2792, %v2793
    %v2795 = vsel %vm2109, %v2554, 0.0
    %v2796 = vadd.f32 %v2794, %v2795
    %v2797 = vsel %vm2109, %v2555, 0.0
    %v2798 = vadd.f32 %v2796, %v2797
    %v2799 = vsel %vm2109, %v2556, 0.0
    %v2800 = vadd.f32 %v2798, %v2799
    %v2801 = vsel %vm2109, %v2557, 0.0
    %v2802 = vadd.f32 %v2800, %v2801
    %v2803 = vsel %vm2109, %v2558, 0.0
    %v2804 = vadd.f32 %v2802, %v2803
    %v2805 = vsel %vm2109, %v2559, 0.0
    %v2806 = vadd.f32 %v2804, %v2805
    %v2807 = vsel %vm2109, %v2560, 0.0
    %v2808 = vadd.f32 %v2806, %v2807
    %v2809 = vsel %vm2109, %v2561, 0.0
    %v2810 = vadd.f32 %v2808, %v2809
    %v2811 = vsel %vm2109, %v2562, 0.0
    %v2812 = vadd.f32 %v2810, %v2811
    %v2813 = vsel %vm2109, %v2563, 0.0
    %v2814 = vadd.f32 %v2812, %v2813
    %v2815 = vsel %vm2109, %v2564, 0.0
    %v2816 = vadd.f32 %v2814, %v2815
    %v2817 = vsel %vm2109, %v2565, 0.0
    %v2818 = vadd.f32 %v2816, %v2817
    %v2819 = vsel %vm2109, %v2566, 0.0
    %v2820 = vadd.f32 %v2818, %v2819
    %v2821 = vsel %vm2109, %v2567, 0.0
    %v2822 = vadd.f32 %v2820, %v2821
    %v2823 = vsel %vm2109, %v2568, 0.0
    %v2824 = vadd.f32 %v2822, %v2823
    %v2825 = vsel %vm2109, %v2569, 0.0
    %v2826 = vadd.f32 %v2824, %v2825
    %v2827 = vsel %vm2109, %v2570, 0.0
    %v2828 = vadd.f32 %v2826, %v2827
    %v2829 = vsel %vm2109, %v2571, 0.0
    %v2830 = vadd.f32 %v2828, %v2829
    %v2831 = vsel %vm2109, %v2572, 0.0
    %v2832 = vadd.f32 %v2830, %v2831
    %v2833 = vsel %vm2109, %v2573, 0.0
    %v2834 = vadd.f32 %v2832, %v2833
    %v2835 = vsel %vm2109, %v2574, 0.0
    %v2836 = vadd.f32 %v2834, %v2835
    %v2837 = vsel %vm2109, %v2575, 0.0
    %v2838 = vadd.f32 %v2836, %v2837
    %v2839 = vsel %vm2109, %v2576, 0.0
    %v2840 = vadd.f32 %v2838, %v2839
    %v2841 = vsel %vm2109, %v2577, 0.0
    %v2842 = vadd.f32 %v2840, %v2841
    %v2843 = vsel %vm2109, %v2578, 0.0
    %v2844 = vadd.f32 %v2842, %v2843
    %v2845 = vsel %vm2109, %v2579, 0.0
    %v2846 = vadd.f32 %v2844, %v2845
    %v2847 = vsel %vm2109, %v2580, 0.0
    %v2848 = vadd.f32 %v2846, %v2847
    %v2849 = vsel %vm2109, %v2581, 0.0
    %v2850 = vadd.f32 %v2848, %v2849
    %v2851 = vsel %vm2109, %v2582, 0.0
    %v2852 = vadd.f32 %v2850, %v2851
    %v2853 = vsel %vm2109, %v2583, 0.0
    %v2854 = vadd.f32 %v2852, %v2853
    %v2855 = vsel %vm2109, %v2584, 0.0
    %v2856 = vadd.f32 %v2854, %v2855
    %v2857 = vsel %vm2109, %v2585, 0.0
    %v2858 = vadd.f32 %v2856, %v2857
    %v2859 = vsel %vm2109, %v2586, 0.0
    %v2860 = vadd.f32 %v2858, %v2859
    %v2861 = vsel %vm2109, %v2587, 0.0
    %v2862 = vadd.f32 %v2860, %v2861
    %v2863 = vsel %vm2109, %v2588, 0.0
    %v2864 = vadd.f32 %v2862, %v2863
    %v2865 = vsel %vm2109, %v2589, 0.0
    %v2866 = vadd.f32 %v2864, %v2865
    %v2867 = vsel %vm2109, %v2590, 0.0
    %v2868 = vadd.f32 %v2866, %v2867
    %v2869 = vsel %vm2109, %v2591, 0.0
    %v2870 = vadd.f32 %v2868, %v2869
    %v2871 = vsel %vm2109, %v2592, 0.0
    %v2872 = vadd.f32 %v2870, %v2871
    %v2873 = vsel %vm2109, %v2593, 0.0
    %v2874 = vadd.f32 %v2872, %v2873
    %v2875 = vsel %vm2109, %v2594, 0.0
    %v2876 = vadd.f32 %v2874, %v2875
    %v2877 = vsel %vm2109, %v2595, 0.0
    %v2878 = vadd.f32 %v2876, %v2877
    %v2879 = vsel %vm2109, %v2596, 0.0
    %v2880 = vadd.f32 %v2878, %v2879
    %v2881 = vsel %vm2109, %v2597, 0.0
    %v2882 = vadd.f32 %v2880, %v2881
    %v2883 = vsel %vm2109, %v2598, 0.0
    %v2884 = vadd.f32 %v2882, %v2883
    %v2885 = vsel %vm2109, %v2599, 0.0
    %v2886 = vadd.f32 %v2884, %v2885
    %v2887 = vsel %vm2109, %v2600, 0.0
    %v2888 = vadd.f32 %v2886, %v2887
    %v2889 = vsel %vm2109, %v2601, 0.0
    %v2890 = vadd.f32 %v2888, %v2889
    %v2891 = vsel %vm2109, %v2602, 0.0
    %v2892 = vadd.f32 %v2890, %v2891
    %v2893 = vsel %vm2109, %v2603, 0.0
    %v2894 = vadd.f32 %v2892, %v2893
    %v2895 = vsel %vm2109, %v2604, 0.0
    %v2896 = vadd.f32 %v2894, %v2895
    %v2897 = vsel %vm2109, %v2605, 0.0
    %v2898 = vadd.f32 %v2896, %v2897
    %v2899 = vsel %vm2109, %v2606, 0.0
    %v2900 = vadd.f32 %v2898, %v2899
    %v2901 = vsel %vm2109, %v2607, 0.0
    %v2902 = vadd.f32 %v2900, %v2901
    %v2903 = vsel %vm2109, %v2608, 0.0
    %v2904 = vadd.f32 %v2902, %v2903
    %v2905 = vsel %vm2109, %v2609, 0.0
    %v2906 = vadd.f32 %v2904, %v2905
    %v2907 = vsel %vm2109, %v2610, 0.0
    %v2908 = vadd.f32 %v2906, %v2907
    %v2909 = vsel %vm2109, %v2611, 0.0
    %v2910 = vadd.f32 %v2908, %v2909
    %v2911 = vsel %vm2109, %v2612, 0.0
    %v2912 = vadd.f32 %v2910, %v2911
    %v2913 = vsel %vm2109, %v2613, 0.0
    %v2914 = vadd.f32 %v2912, %v2913
    %v2915 = vsel %vm2109, %v2614, 0.0
    %v2916 = vadd.f32 %v2914, %v2915
    %v2917 = vsel %vm2109, %v2615, 0.0
    %v2918 = vadd.f32 %v2916, %v2917
    %v2919 = vsel %vm2109, %v2616, 0.0
    %v2920 = vadd.f32 %v2918, %v2919
    %v2921 = vsel %vm2109, %v2617, 0.0
    %v2922 = vadd.f32 %v2920, %v2921
    %v2923 = vsel %vm2109, %v2618, 0.0
    %v2924 = vadd.f32 %v2922, %v2923
    %v2925 = vsel %vm2109, %v2619, 0.0
    %v2926 = vadd.f32 %v2924, %v2925
    %v2927 = vsel %vm2109, %v2620, 0.0
    %v2928 = vadd.f32 %v2926, %v2927
    %v2929 = vsel %vm2109, %v2621, 0.0
    %v2930 = vadd.f32 %v2928, %v2929
    %v2931 = vsel %vm2109, %v2622, 0.0
    %v2932 = vadd.f32 %v2930, %v2931
    %v2933 = vsel %vm2109, %v2623, 0.0
    %v2934 = vadd.f32 %v2932, %v2933
    %v2935 = vsel %vm2109, %v2624, 0.0
    %v2936 = vadd.f32 %v2934, %v2935
    %v2937 = vsel %vm2109, %v2625, 0.0
    %v2938 = vadd.f32 %v2936, %v2937
    %v2939 = vsel %vm2109, %v2626, 0.0
    %v2940 = vadd.f32 %v2938, %v2939
    %v2941 = vsel %vm2109, %v2627, 0.0
    %v2942 = vadd.f32 %v2940, %v2941
    %v2943 = vsel %vm2109, %v2628, 0.0
    %v2944 = vadd.f32 %v2942, %v2943
    %v2945 = vsel %vm2109, %v2629, 0.0
    %v2946 = vadd.f32 %v2944, %v2945
    %v2947 = vsel %vm2109, %v2630, 0.0
    %v2948 = vadd.f32 %v2946, %v2947
    %v2949 = vsel %vm2109, %v2631, 0.0
    %v2950 = vadd.f32 %v2948, %v2949
    %v2951 = vsel %vm2109, %v2632, 0.0
    %v2952 = vadd.f32 %v2950, %v2951
    %v2953 = vsel %vm2109, %v2633, 0.0
    %v2954 = vadd.f32 %v2952, %v2953
    %v2955 = vsel %vm2109, %v2634, 0.0
    %v2956 = vadd.f32 %v2954, %v2955
    %v2957 = vsel %vm2109, %v2635, 0.0
    %v2958 = vadd.f32 %v2956, %v2957
    %v2959 = vsel %vm2109, %v2636, 0.0
    %v2960 = vadd.f32 %v2958, %v2959
    %v2961 = vsel %vm2109, %v2637, 0.0
    %v2962 = vadd.f32 %v2960, %v2961
    %v2963 = vsel %vm2109, %v2638, 0.0
    %v2964 = vadd.f32 %v2962, %v2963
    %v2965 = vsel %vm2109, %v2639, 0.0
    %v2966 = vadd.f32 %v2964, %v2965
    %v2967 = vsel %vm2109, %v2640, 0.0
    %v2968 = vadd.f32 %v2966, %v2967
    %v2969 = vsel %vm2109, %v2641, 0.0
    %v2970 = vadd.f32 %v2968, %v2969
    %v2971 = vsel %vm2109, %v2642, 0.0
    %v2972 = vadd.f32 %v2970, %v2971
    %v2973 = vsel %vm2109, %v2643, 0.0
    %v2974 = vadd.f32 %v2972, %v2973
    %v2975 = vsel %vm2109, %v2644, 0.0
    %v2976 = vadd.f32 %v2974, %v2975
    %v2977 = vsel %vm2109, %v2645, 0.0
    %v2978 = vadd.f32 %v2976, %v2977
    %v2979 = vsel %vm2109, %v2646, 0.0
    %v2980 = vadd.f32 %v2978, %v2979
    %v2981 = vsel %vm2109, %v2647, 0.0
    %v2982 = vadd.f32 %v2980, %v2981
    %v2983 = vsel %vm2109, %v2648, 0.0
    %v2984 = vadd.f32 %v2982, %v2983
    %v2985 = vsel %vm2109, %v2649, 0.0
    %v2986 = vadd.f32 %v2984, %v2985
    %v2987 = vsel %vm2109, %v2650, 0.0
    %v2988 = vadd.f32 %v2986, %v2987
    %v2989 = vsel %vm2109, %v2651, 0.0
    %v2990 = vadd.f32 %v2988, %v2989
    %v2991 = vsel %vm2109, %v2652, 0.0
    %v2992 = vadd.f32 %v2990, %v2991
    %v2993 = vsel %vm2109, %v2653, 0.0
    %v2994 = vadd.f32 %v2992, %v2993
    %v2995 = vsel %vm2109, %v2654, 0.0
    %v2996 = vadd.f32 %v2994, %v2995
    %v2997 = vsel %vm2109, %v2655, 0.0
    %v2998 = vadd.f32 %v2996, %v2997
    %v2999 = vsel %vm2109, %v2656, 0.0
    %v3000 = vadd.f32 %v2998, %v2999
    %v3001 = vsel %vm2109, %v2657, 0.0
    %v3002 = vadd.f32 %v3000, %v3001
    %v3003 = vsel %vm2109, %v2658, 0.0
    %v3004 = vadd.f32 %v3002, %v3003
    %v3005 = vsel %vm2109, %v2659, 0.0
    %v3006 = vadd.f32 %v3004, %v3005
    %v3007 = vsel %vm2109, %v2660, 0.0
    %v3008 = vadd.f32 %v3006, %v3007
    %v3009 = vsel %vm2109, %v2661, 0.0
    %v3010 = vadd.f32 %v3008, %v3009
    %v3011 = vsel %vm2109, %v2662, 0.0
    %v3012 = vadd.f32 %v3010, %v3011
    %v3013 = vsel %vm2109, %v2663, 0.0
    %v3014 = vadd.f32 %v3012, %v3013
    %v3015 = vsel %vm2109, %v2664, 0.0
    %v3016 = vadd.f32 %v3014, %v3015
    %v3017 = vsel %vm2109, %v2665, 0.0
    %v3018 = vadd.f32 %v3016, %v3017
    %v3019 = vsel %vm2109, %v2666, 0.0
    %v3020 = vadd.f32 %v3018, %v3019
    %v3021 = vsel %vm2109, %v2667, 0.0
    %v3022 = vadd.f32 %v3020, %v3021
    %v3023 = vsel %vm2109, %v2668, 0.0
    %v3024 = vadd.f32 %v3022, %v3023
    %v3025 = vsel %vm2109, %v2669, 0.0
    %v3026 = vadd.f32 %v3024, %v3025
    %v3027 = vsel %vm2109, %v2670, 0.0
    %v3028 = vadd.f32 %v3026, %v3027
    %v3029 = vsel %vm2109, %v2671, 0.0
    %v3030 = vadd.f32 %v3028, %v3029
    %v3031 = vsel %vm2109, %v2672, 0.0
    %v3032 = vadd.f32 %v3030, %v3031
    %v3033 = vsel %vm2109, %v2673, 0.0
    %v3034 = vadd.f32 %v3032, %v3033
    %v3035 = vsel %vm2109, %v2674, 0.0
    %v3036 = vadd.f32 %v3034, %v3035
    %v3037 = vsel %vm2109, %v2675, 0.0
    %v3038 = vadd.f32 %v3036, %v3037
    %v3039 = vsel %vm2109, %v2676, 0.0
    %v3040 = vadd.f32 %v3038, %v3039
    %v3041 = vsel %vm2109, %v2677, 0.0
    %v3042 = vadd.f32 %v3040, %v3041
    %v3043 = vsel %vm2109, %v2678, 0.0
    %v3044 = vadd.f32 %v3042, %v3043
    %v3045 = vsel %vm2109, %v2679, 0.0
    %v3046 = vadd.f32 %v3044, %v3045
    %v3047 = vsel %vm2109, %v2680, 0.0
    %v3048 = vadd.f32 %v3046, %v3047
    %v3049 = vsel %vm2109, %v2681, 0.0
    %v3050 = vadd.f32 %v3048, %v3049
    %v3051 = vsel %vm2109, %v2682, 0.0
    %v3052 = vadd.f32 %v3050, %v3051
    %v3053 = vsel %vm2109, %v2683, 0.0
    %v3054 = vadd.f32 %v3052, %v3053
    %v3055 = vsel %vm2109, %v2684, 0.0
    %v3056 = vadd.f32 %v3054, %v3055
    %v3057 = vsel %vm2109, %v2685, 0.0
    %v3058 = vadd.f32 %v3056, %v3057
    %v3059 = vsel %vm2109, %v2686, 0.0
    %v3060 = vadd.f32 %v3058, %v3059
    %v3061 = vsel %vm2109, %v2687, 0.0
    %v3062 = vadd.f32 %v3060, %v3061
    %v3063 = vsel %vm2109, %v2688, 0.0
    %v3064 = vadd.f32 %v3062, %v3063
    %v3065 = vsel %vm2109, %v2689, 0.0
    %v3066 = vadd.f32 %v3064, %v3065
    %v3067 = vsel %vm2109, %v2690, 0.0
    %v3068 = vadd.f32 %v3066, %v3067
    %v3069 = vsel %vm2109, %v2691, 0.0
    %v3070 = vadd.f32 %v3068, %v3069
    %v3071 = vsel %vm2109, %v2692, 0.0
    %v3072 = vadd.f32 %v3070, %v3071
    %v3073 = vsel %vm2109, %v2693, 0.0
    %v3074 = vadd.f32 %v3072, %v3073
    %v3075 = vsel %vm2109, %v2694, 0.0
    %v3076 = vadd.f32 %v3074, %v3075
    %v3077 = vsel %vm2109, %v2695, 0.0
    %v3078 = vadd.f32 %v3076, %v3077
    %v3079 = vsel %vm2109, %v2696, 0.0
    %v3080 = vadd.f32 %v3078, %v3079
    %v3081 = vsel %vm2109, %v2697, 0.0
    %v3082 = vadd.f32 %v3080, %v3081
    %v3083 = vsel %vm2109, %v2698, 0.0
    %v3084 = vadd.f32 %v3082, %v3083
    %v3085 = vsel %vm2109, %v2699, 0.0
    %v3086 = vadd.f32 %v3084, %v3085
    %v3087 = vsel %vm2109, %v2700, 0.0
    %v3088 = vadd.f32 %v3086, %v3087
    %v3089 = vsel %vm2109, %v2701, 0.0
    %v3090 = vadd.f32 %v3088, %v3089
    %v3091 = vsel %vm2109, %v2702, 0.0
    %v3092 = vadd.f32 %v3090, %v3091
    %v3093 = vsel %vm2109, %v2703, 0.0
    %v3094 = vadd.f32 %v3092, %v3093
    %v3095 = vrot.slane %v3094, 4
    %v3096 = vadd.f32 %v3094, %v3095
    %v3097 = vrot.slane %v3096, 2
    %v3098 = vadd.f32 %v3096, %v3097
    %v3099 = vrot.slane %v3098, 1
    %v3100 = vadd.f32 %v3098, %v3099
    %v3101 = vmul.f32 %v3100, 0.0006377551
    %v3102 = vmul.f32 %v2507, %v2507
    %v3103 = vsub.f32 %v3101, %v3102
    %v3104 = vmax.f32 %v3103, 0.0
    %v3105 = vadd.f32 %v3104, 1e-05
    %v3106 = vrsqrt.pop %v3105
    %v3107 = vmul.f32 %v3106, %v285
    %v3108 = vmul.f32 %v2507, %v3107
    %v3109 = vsub.f32 %v286, %v3108
    %v3110 = vadd.f32 %v1913, %v1962
    %v3111 = vadd.f32 %v1914, %v1963
    %v3112 = vadd.f32 %v1915, %v1964
    %v3113 = vadd.f32 %v1916, %v1965
    %v3114 = vadd.f32 %v1917, %v1966
    %v3115 = vadd.f32 %v1918, %v1967
    %v3116 = vadd.f32 %v1919, %v1968
    %v3117 = vadd.f32 %v1920, %v1969
    %v3118 = vadd.f32 %v1921, %v1970
    %v3119 = vadd.f32 %v1922, %v1971
    %v3120 = vadd.f32 %v1923, %v1972
    %v3121 = vadd.f32 %v1924, %v1973
    %v3122 = vadd.f32 %v1925, %v1974
    %v3123 = vadd.f32 %v1926, %v1975
    %v3124 = vadd.f32 %v1927, %v1976
    %v3125 = vadd.f32 %v1928, %v1977
    %v3126 = vadd.f32 %v1929, %v1978
    %v3127 = vadd.f32 %v1930, %v1979
    %v3128 = vadd.f32 %v1931, %v1980
    %v3129 = vadd.f32 %v1932, %v1981
    %v3130 = vadd.f32 %v1933, %v1982
    %v3131 = vadd.f32 %v1934, %v1983
    %v3132 = vadd.f32 %v1935, %v1984
    %v3133 = vadd.f32 %v1936, %v1985
    %v3134 = vadd.f32 %v1937, %v1986
    %v3135 = vadd.f32 %v1938, %v1987
    %v3136 = vadd.f32 %v1939, %v1988
    %v3137 = vadd.f32 %v1940, %v1989
    %v3138 = vadd.f32 %v1941, %v1990
    %v3139 = vadd.f32 %v1942, %v1991
    %v3140 = vadd.f32 %v1943, %v1992
    %v3141 = vadd.f32 %v1944, %v1993
    %v3142 = vadd.f32 %v1945, %v1994
    %v3143 = vadd.f32 %v1946, %v1995
    %v3144 = vadd.f32 %v1947, %v1996
    %v3145 = vadd.f32 %v1948, %v1997
    %v3146 = vadd.f32 %v1949, %v1998
    %v3147 = vadd.f32 %v1950, %v1999
    %v3148 = vadd.f32 %v1951, %v2000
    %v3149 = vadd.f32 %v1952, %v2001
    %v3150 = vadd.f32 %v1953, %v2002
    %v3151 = vadd.f32 %v1954, %v2003
    %v3152 = vadd.f32 %v1955, %v2004
    %v3153 = vadd.f32 %v1956, %v2005
    %v3154 = vadd.f32 %v1957, %v2006
    %v3155 = vadd.f32 %v1958, %v2007
    %v3156 = vadd.f32 %v1959, %v2008
    %v3157 = vadd.f32 %v1960, %v2009
    %v3158 = vadd.f32 %v1961, %v2010
    %v3159 = vadd.f32 %v3110, %v2011
    %v3160 = vadd.f32 %v3111, %v2012
    %v3161 = vadd.f32 %v3112, %v2013
    %v3162 = vadd.f32 %v3113, %v2014
    %v3163 = vadd.f32 %v3114, %v2015
    %v3164 = vadd.f32 %v3115, %v2016
    %v3165 = vadd.f32 %v3116, %v2017
    %v3166 = vadd.f32 %v3117, %v2018
    %v3167 = vadd.f32 %v3118, %v2019
    %v3168 = vadd.f32 %v3119, %v2020
    %v3169 = vadd.f32 %v3120, %v2021
    %v3170 = vadd.f32 %v3121, %v2022
    %v3171 = vadd.f32 %v3122, %v2023
    %v3172 = vadd.f32 %v3123, %v2024
    %v3173 = vadd.f32 %v3124, %v2025
    %v3174 = vadd.f32 %v3125, %v2026
    %v3175 = vadd.f32 %v3126, %v2027
    %v3176 = vadd.f32 %v3127, %v2028
    %v3177 = vadd.f32 %v3128, %v2029
    %v3178 = vadd.f32 %v3129, %v2030
    %v3179 = vadd.f32 %v3130, %v2031
    %v3180 = vadd.f32 %v3131, %v2032
    %v3181 = vadd.f32 %v3132, %v2033
    %v3182 = vadd.f32 %v3133, %v2034
    %v3183 = vadd.f32 %v3134, %v2035
    %v3184 = vadd.f32 %v3135, %v2036
    %v3185 = vadd.f32 %v3136, %v2037
    %v3186 = vadd.f32 %v3137, %v2038
    %v3187 = vadd.f32 %v3138, %v2039
    %v3188 = vadd.f32 %v3139, %v2040
    %v3189 = vadd.f32 %v3140, %v2041
    %v3190 = vadd.f32 %v3141, %v2042
    %v3191 = vadd.f32 %v3142, %v2043
    %v3192 = vadd.f32 %v3143, %v2044
    %v3193 = vadd.f32 %v3144, %v2045
    %v3194 = vadd.f32 %v3145, %v2046
    %v3195 = vadd.f32 %v3146, %v2047
    %v3196 = vadd.f32 %v3147, %v2048
    %v3197 = vadd.f32 %v3148, %v2049
    %v3198 = vadd.f32 %v3149, %v2050
    %v3199 = vadd.f32 %v3150, %v2051
    %v3200 = vadd.f32 %v3151, %v2052
    %v3201 = vadd.f32 %v3152, %v2053
    %v3202 = vadd.f32 %v3153, %v2054
    %v3203 = vadd.f32 %v3154, %v2055
    %v3204 = vadd.f32 %v3155, %v2056
    %v3205 = vadd.f32 %v3156, %v2057
    %v3206 = vadd.f32 %v3157, %v2058
    %v3207 = vadd.f32 %v3158, %v2059
    %v3208 = vadd.f32 %v3159, %v2060
    %v3209 = vadd.f32 %v3160, %v2061
    %v3210 = vadd.f32 %v3161, %v2062
    %v3211 = vadd.f32 %v3162, %v2063
    %v3212 = vadd.f32 %v3163, %v2064
    %v3213 = vadd.f32 %v3164, %v2065
    %v3214 = vadd.f32 %v3165, %v2066
    %v3215 = vadd.f32 %v3166, %v2067
    %v3216 = vadd.f32 %v3167, %v2068
    %v3217 = vadd.f32 %v3168, %v2069
    %v3218 = vadd.f32 %v3169, %v2070
    %v3219 = vadd.f32 %v3170, %v2071
    %v3220 = vadd.f32 %v3171, %v2072
    %v3221 = vadd.f32 %v3172, %v2073
    %v3222 = vadd.f32 %v3173, %v2074
    %v3223 = vadd.f32 %v3174, %v2075
    %v3224 = vadd.f32 %v3175, %v2076
    %v3225 = vadd.f32 %v3176, %v2077
    %v3226 = vadd.f32 %v3177, %v2078
    %v3227 = vadd.f32 %v3178, %v2079
    %v3228 = vadd.f32 %v3179, %v2080
    %v3229 = vadd.f32 %v3180, %v2081
    %v3230 = vadd.f32 %v3181, %v2082
    %v3231 = vadd.f32 %v3182, %v2083
    %v3232 = vadd.f32 %v3183, %v2084
    %v3233 = vadd.f32 %v3184, %v2085
    %v3234 = vadd.f32 %v3185, %v2086
    %v3235 = vadd.f32 %v3186, %v2087
    %v3236 = vadd.f32 %v3187, %v2088
    %v3237 = vadd.f32 %v3188, %v2089
    %v3238 = vadd.f32 %v3189, %v2090
    %v3239 = vadd.f32 %v3190, %v2091
    %v3240 = vadd.f32 %v3191, %v2092
    %v3241 = vadd.f32 %v3192, %v2093
    %v3242 = vadd.f32 %v3193, %v2094
    %v3243 = vadd.f32 %v3194, %v2095
    %v3244 = vadd.f32 %v3195, %v2096
    %v3245 = vadd.f32 %v3196, %v2097
    %v3246 = vadd.f32 %v3197, %v2098
    %v3247 = vadd.f32 %v3198, %v2099
    %v3248 = vadd.f32 %v3199, %v2100
    %v3249 = vadd.f32 %v3200, %v2101
    %v3250 = vadd.f32 %v3201, %v2102
    %v3251 = vadd.f32 %v3202, %v2103
    %v3252 = vadd.f32 %v3203, %v2104
    %v3253 = vadd.f32 %v3204, %v2105
    %v3254 = vadd.f32 %v3205, %v2106
    %v3255 = vadd.f32 %v3206, %v2107
    %v3256 = vadd.f32 %v3207, %v2108
    %v3257 = vmul.f32 %v3208, 0.25
    %v3258 = vmul.f32 %v3209, 0.25
    %v3259 = vmul.f32 %v3210, 0.25
    %v3260 = vmul.f32 %v3211, 0.25
    %v3261 = vmul.f32 %v3212, 0.25
    %v3262 = vmul.f32 %v3213, 0.25
    %v3263 = vmul.f32 %v3214, 0.25
    %v3264 = vmul.f32 %v3215, 0.25
    %v3265 = vmul.f32 %v3216, 0.25
    %v3266 = vmul.f32 %v3217, 0.25
    %v3267 = vmul.f32 %v3218, 0.25
    %v3268 = vmul.f32 %v3219, 0.25
    %v3269 = vmul.f32 %v3220, 0.25
    %v3270 = vmul.f32 %v3221, 0.25
    %v3271 = vmul.f32 %v3222, 0.25
    %v3272 = vmul.f32 %v3223, 0.25
    %v3273 = vmul.f32 %v3224, 0.25
    %v3274 = vmul.f32 %v3225, 0.25
    %v3275 = vmul.f32 %v3226, 0.25
    %v3276 = vmul.f32 %v3227, 0.25
    %v3277 = vmul.f32 %v3228, 0.25
    %v3278 = vmul.f32 %v3229, 0.25
    %v3279 = vmul.f32 %v3230, 0.25
    %v3280 = vmul.f32 %v3231, 0.25
    %v3281 = vmul.f32 %v3232, 0.25
    %v3282 = vmul.f32 %v3233, 0.25
    %v3283 = vmul.f32 %v3234, 0.25
    %v3284 = vmul.f32 %v3235, 0.25
    %v3285 = vmul.f32 %v3236, 0.25
    %v3286 = vmul.f32 %v3237, 0.25
    %v3287 = vmul.f32 %v3238, 0.25
    %v3288 = vmul.f32 %v3239, 0.25
    %v3289 = vmul.f32 %v3240, 0.25
    %v3290 = vmul.f32 %v3241, 0.25
    %v3291 = vmul.f32 %v3242, 0.25
    %v3292 = vmul.f32 %v3243, 0.25
    %v3293 = vmul.f32 %v3244, 0.25
    %v3294 = vmul.f32 %v3245, 0.25
    %v3295 = vmul.f32 %v3246, 0.25
    %v3296 = vmul.f32 %v3247, 0.25
    %v3297 = vmul.f32 %v3248, 0.25
    %v3298 = vmul.f32 %v3249, 0.25
    %v3299 = vmul.f32 %v3250, 0.25
    %v3300 = vmul.f32 %v3251, 0.25
    %v3301 = vmul.f32 %v3252, 0.25
    %v3302 = vmul.f32 %v3253, 0.25
    %v3303 = vmul.f32 %v3254, 0.25
    %v3304 = vmul.f32 %v3255, 0.25
    %v3305 = vmul.f32 %v3256, 0.25
    %v3306 = vlaneseq
    %v3307 = vshrl.u32 %v3306, 7
    %v3308 = vsub.s32 0, %v3307
    %v3309 = vrot.slane %v3107, %v3308
    %v3310 = vmul.f32 %v3257, %v3309
    %v3311 = vmul.f32 %v3258, %v3309
    %v3312 = vmul.f32 %v3259, %v3309
    %v3313 = vmul.f32 %v3260, %v3309
    %v3314 = vmul.f32 %v3261, %v3309
    %v3315 = vmul.f32 %v3262, %v3309
    %v3316 = vmul.f32 %v3263, %v3309
    %v3317 = vmul.f32 %v3264, %v3309
    %v3318 = vmul.f32 %v3265, %v3309
    %v3319 = vmul.f32 %v3266, %v3309
    %v3320 = vmul.f32 %v3267, %v3309
    %v3321 = vmul.f32 %v3268, %v3309
    %v3322 = vmul.f32 %v3269, %v3309
    %v3323 = vmul.f32 %v3270, %v3309
    %v3324 = vmul.f32 %v3271, %v3309
    %v3325 = vmul.f32 %v3272, %v3309
    %v3326 = vmul.f32 %v3273, %v3309
    %v3327 = vmul.f32 %v3274, %v3309
    %v3328 = vmul.f32 %v3275, %v3309
    %v3329 = vmul.f32 %v3276, %v3309
    %v3330 = vmul.f32 %v3277, %v3309
    %v3331 = vmul.f32 %v3278, %v3309
    %v3332 = vmul.f32 %v3279, %v3309
    %v3333 = vmul.f32 %v3280, %v3309
    %v3334 = vmul.f32 %v3281, %v3309
    %v3335 = vmul.f32 %v3282, %v3309
    %v3336 = vmul.f32 %v3283, %v3309
    %v3337 = vmul.f32 %v3284, %v3309
    %v3338 = vmul.f32 %v3285, %v3309
    %v3339 = vmul.f32 %v3286, %v3309
    %v3340 = vmul.f32 %v3287, %v3309
    %v3341 = vmul.f32 %v3288, %v3309
    %v3342 = vmul.f32 %v3289, %v3309
    %v3343 = vmul.f32 %v3290, %v3309
    %v3344 = vmul.f32 %v3291, %v3309
    %v3345 = vmul.f32 %v3292, %v3309
    %v3346 = vmul.f32 %v3293, %v3309
    %v3347 = vmul.f32 %v3294, %v3309
    %v3348 = vmul.f32 %v3295, %v3309
    %v3349 = vmul.f32 %v3296, %v3309
    %v3350 = vmul.f32 %v3297, %v3309
    %v3351 = vmul.f32 %v3298, %v3309
    %v3352 = vmul.f32 %v3299, %v3309
    %v3353 = vmul.f32 %v3300, %v3309
    %v3354 = vmul.f32 %v3301, %v3309
    %v3355 = vmul.f32 %v3302, %v3309
    %v3356 = vmul.f32 %v3303, %v3309
    %v3357 = vmul.f32 %v3304, %v3309
    %v3358 = vmul.f32 %v3305, %v3309
    %v3360 = vlaneseq
    %v3361 = vshrl.u32 %v3360, 7
    %v3362 = vsub.s32 0, %v3361
    %v3363 = vrot.slane %v3109, %v3362
    %v3365 = vadd.f32 %v3310, %v3363
    %v3366 = vadd.f32 %v3311, %v3363
    %v3367 = vadd.f32 %v3312, %v3363
    %v3368 = vadd.f32 %v3313, %v3363
    %v3369 = vadd.f32 %v3314, %v3363
    %v3370 = vadd.f32 %v3315, %v3363
    %v3371 = vadd.f32 %v3316, %v3363
    %v3372 = vadd.f32 %v3317, %v3363
    %v3373 = vadd.f32 %v3318, %v3363
    %v3374 = vadd.f32 %v3319, %v3363
    %v3375 = vadd.f32 %v3320, %v3363
    %v3376 = vadd.f32 %v3321, %v3363
    %v3377 = vadd.f32 %v3322, %v3363
    %v3378 = vadd.f32 %v3323, %v3363
    %v3379 = vadd.f32 %v3324, %v3363
    %v3380 = vadd.f32 %v3325, %v3363
    %v3381 = vadd.f32 %v3326, %v3363
    %v3382 = vadd.f32 %v3327, %v3363
    %v3383 = vadd.f32 %v3328, %v3363
    %v3384 = vadd.f32 %v3329, %v3363
    %v3385 = vadd.f32 %v3330, %v3363
    %v3386 = vadd.f32 %v3331, %v3363
    %v3387 = vadd.f32 %v3332, %v3363
    %v3388 = vadd.f32 %v3333, %v3363
    %v3389 = vadd.f32 %v3334, %v3363
    %v3390 = vadd.f32 %v3335, %v3363
    %v3391 = vadd.f32 %v3336, %v3363
    %v3392 = vadd.f32 %v3337, %v3363
    %v3393 = vadd.f32 %v3338, %v3363
    %v3394 = vadd.f32 %v3339, %v3363
    %v3395 = vadd.f32 %v3340, %v3363
    %v3396 = vadd.f32 %v3341, %v3363
    %v3397 = vadd.f32 %v3342, %v3363
    %v3398 = vadd.f32 %v3343, %v3363
    %v3399 = vadd.f32 %v3344, %v3363
    %v3400 = vadd.f32 %v3345, %v3363
    %v3401 = vadd.f32 %v3346, %v3363
    %v3402 = vadd.f32 %v3347, %v3363
    %v3403 = vadd.f32 %v3348, %v3363
    %v3404 = vadd.f32 %v3349, %v3363
    %v3405 = vadd.f32 %v3350, %v3363
    %v3406 = vadd.f32 %v3351, %v3363
    %v3407 = vadd.f32 %v3352, %v3363
    %v3408 = vadd.f32 %v3353, %v3363
    %v3409 = vadd.f32 %v3354, %v3363
    %v3410 = vadd.f32 %v3355, %v3363
    %v3411 = vadd.f32 %v3356, %v3363
    %v3412 = vadd.f32 %v3357, %v3363
    %v3413 = vadd.f32 %v3358, %v3363
    %3414 = vst.msk [vmem:[#allocation11] sm:$0xff] %vm2109, %v3365
    %3415 = vst.msk [vmem:[#allocation11 + $0x8] sm:$0xff] %vm2109, %v3366
    %3416 = vst.msk [vmem:[#allocation11 + $0x10] sm:$0xff] %vm2109, %v3367
    %3417 = vst.msk [vmem:[#allocation11 + $0x18] sm:$0xff] %vm2109, %v3368
    %3418 = vst.msk [vmem:[#allocation11 + $0x20] sm:$0xff] %vm2109, %v3369
    %3419 = vst.msk [vmem:[#allocation11 + $0x28] sm:$0xff] %vm2109, %v3370
    %3420 = vst.msk [vmem:[#allocation11 + $0x30] sm:$0xff] %vm2109, %v3371
    %3421 = vst.msk [vmem:[#allocation11 + $0x38] sm:$0xff] %vm2109, %v3372
    %3422 = vst.msk [vmem:[#allocation11 + $0x40] sm:$0xff] %vm2109, %v3373
    %3423 = vst.msk [vmem:[#allocation11 + $0x48] sm:$0xff] %vm2109, %v3374
    %3424 = vst.msk [vmem:[#allocation11 + $0x50] sm:$0xff] %vm2109, %v3375
    %3425 = vst.msk [vmem:[#allocation11 + $0x58] sm:$0xff] %vm2109, %v3376
    %3426 = vst.msk [vmem:[#allocation11 + $0x60] sm:$0xff] %vm2109, %v3377
    %3427 = vst.msk [vmem:[#allocation11 + $0x68] sm:$0xff] %vm2109, %v3378
    %3428 = vst.msk [vmem:[#allocation11 + $0x70] sm:$0xff] %vm2109, %v3379
    %3429 = vst.msk [vmem:[#allocation11 + $0x78] sm:$0xff] %vm2109, %v3380
    %3430 = vst.msk [vmem:[#allocation11 + $0x80] sm:$0xff] %vm2109, %v3381
    %3431 = vst.msk [vmem:[#allocation11 + $0x88] sm:$0xff] %vm2109, %v3382
    %3432 = vst.msk [vmem:[#allocation11 + $0x90] sm:$0xff] %vm2109, %v3383
    %3433 = vst.msk [vmem:[#allocation11 + $0x98] sm:$0xff] %vm2109, %v3384
    %3434 = vst.msk [vmem:[#allocation11 + $0xa0] sm:$0xff] %vm2109, %v3385
    %3435 = vst.msk [vmem:[#allocation11 + $0xa8] sm:$0xff] %vm2109, %v3386
    %3436 = vst.msk [vmem:[#allocation11 + $0xb0] sm:$0xff] %vm2109, %v3387
    %3437 = vst.msk [vmem:[#allocation11 + $0xb8] sm:$0xff] %vm2109, %v3388
    %3438 = vst.msk [vmem:[#allocation11 + $0xc0] sm:$0xff] %vm2109, %v3389
    %3439 = vst.msk [vmem:[#allocation11 + $0xc8] sm:$0xff] %vm2109, %v3390
    %3440 = vst.msk [vmem:[#allocation11 + $0xd0] sm:$0xff] %vm2109, %v3391
    %3441 = vst.msk [vmem:[#allocation11 + $0xd8] sm:$0xff] %vm2109, %v3392
    %3442 = vst.msk [vmem:[#allocation11 + $0xe0] sm:$0xff] %vm2109, %v3393
    %3443 = vst.msk [vmem:[#allocation11 + $0xe8] sm:$0xff] %vm2109, %v3394
    %3444 = vst.msk [vmem:[#allocation11 + $0xf0] sm:$0xff] %vm2109, %v3395
    %3445 = vst.msk [vmem:[#allocation11 + $0xf8] sm:$0xff] %vm2109, %v3396
    %3446 = vst.msk [vmem:[#allocation11 + $0x100] sm:$0xff] %vm2109, %v3397
    %3447 = vst.msk [vmem:[#allocation11 + $0x108] sm:$0xff] %vm2109, %v3398
    %3448 = vst.msk [vmem:[#allocation11 + $0x110] sm:$0xff] %vm2109, %v3399
    %3449 = vst.msk [vmem:[#allocation11 + $0x118] sm:$0xff] %vm2109, %v3400
    %3450 = vst.msk [vmem:[#allocation11 + $0x120] sm:$0xff] %vm2109, %v3401
    %3451 = vst.msk [vmem:[#allocation11 + $0x128] sm:$0xff] %vm2109, %v3402
    %3452 = vst.msk [vmem:[#allocation11 + $0x130] sm:$0xff] %vm2109, %v3403
    %3453 = vst.msk [vmem:[#allocation11 + $0x138] sm:$0xff] %vm2109, %v3404
    %3454 = vst.msk [vmem:[#allocation11 + $0x140] sm:$0xff] %vm2109, %v3405
    %3455 = vst.msk [vmem:[#allocation11 + $0x148] sm:$0xff] %vm2109, %v3406
    %3456 = vst.msk [vmem:[#allocation11 + $0x150] sm:$0xff] %vm2109, %v3407
    %3457 = vst.msk [vmem:[#allocation11 + $0x158] sm:$0xff] %vm2109, %v3408
    %3458 = vst.msk [vmem:[#allocation11 + $0x160] sm:$0xff] %vm2109, %v3409
    %3459 = vst.msk [vmem:[#allocation11 + $0x168] sm:$0xff] %vm2109, %v3410
    %3460 = vst.msk [vmem:[#allocation11 + $0x170] sm:$0xff] %vm2109, %v3411
    %3461 = vst.msk [vmem:[#allocation11 + $0x178] sm:$0xff] %vm2109, %v3412
    %3462 = vst.msk [vmem:[#allocation11 + $0x180] sm:$0xff] %vm2109, %v3413
    // Predicated region
    $region42: #{_lambda_.2} parent=1 // pred_check
      _
    $region43: #{_lambda_.2} parent=1 // pred_check_branch
      %3464 = sbr.rel (0) target = $region45
    $region44: #{_lambda_.2} parent=1 // pred_region
      %s3466 = ssub.s32 6272, 6272
      %3467 = vsyncadd [#allocation4], %s3466
      %s3468 = sshll.u32 [#allocation11], 4
      %s3469 = int_to_ptr.vmem [resolvable:$true] %s3468
      %3474 = dma.vmem_to_hbm [thread:$0]  %s3469, 6272, %s5, [#allocation4], 128, 128, 8
    $region45: #{_lambda_.2} parent=1 // pred_fallthru
      _
    // Predicated region
    $region46: #{_lambda_.2} parent=1 // pred_check
      _
    $region47: #{_lambda_.2} parent=1 // pred_check_branch
      %3476 = sbr.rel (0) target = $region49
    $region48: #{_lambda_.2} parent=1 // pred_region
      %3477 = dma.done [#allocation4], 6272
    $region49: #{_lambda_.2} parent=1 // pred_fallthru
      _
    %3478 = vsyncpa [#allocation3], 1
    %3479 = vsyncpa [#allocation6], 1
    %3480 = vsyncpa [#allocation9], 1
    %3481 = vsyncpa [#allocation4], 1

// kernel: _lambda_.3
$region0: #{_lambda_.3}
  #allocation0 [shape = 'u32[]', space=smem, size = 0x4, offset = 0x4, fixed_abs, tag = 'smem constant byte address 0x4 - core index']
  #allocation1 [shape = 'u32[144,128]{1,0:T(1,128)}', space=vmem, size = 0x12000, scoped, tag = 'internal scratch']
  %s0 = inlined_call_operand.hbm [shape: bf16[200,150], index: 0, kind: input, shape index: {}]
  %s1 = inlined_call_operand.hbm [shape: bf16[150,16], index: 1, kind: input, shape index: {}]
  %s2 = inlined_call_operand.hbm [shape: f32[1,16], index: 2, kind: input, shape index: {}]
  %s3 = inlined_call_operand.hbm [shape: f32[1,16], index: 3, kind: input, shape index: {}]
  %s4 = inlined_call_operand.hbm [shape: f32[1,16], index: 4, kind: input, shape index: {}]
  %s5 = inlined_call_operand.hbm [shape: bf16[25,16,120], index: 5, kind: input, shape index: {}]
  %s6 = inlined_call_operand.hbm [shape: f32[1,120], index: 6, kind: input, shape index: {}]
  %s7 = inlined_call_operand.hbm [shape: bf16[120,84], index: 7, kind: input, shape index: {}]
  %s8 = inlined_call_operand.hbm [shape: f32[1,84], index: 8, kind: input, shape index: {}]
  %s9 = inlined_call_operand.hbm [shape: bf16[84,10], index: 9, kind: input, shape index: {}]
  %s10 = inlined_call_operand.hbm [shape: f32[1,10], index: 10, kind: input, shape index: {}]
  %s11 = inlined_call_operand.hbm [shape: f32[2,10], index: 11, kind: output, shape index: {}]
  %s12 = sld [smem:[#allocation0]]
  $region98: #{_lambda_.3} parent=0
    _
  %s14 = ssub.s32 1, %s12
  %s15 = scalar_select 0, %s14, %s12
  $region1: #{_lambda_.3} parent=0
    #allocation2 [shape = 'u8[102400]{0}', space=vmem, size = 0x19000, scoped, tag = 'input window, operand 0, single buffered']
    #allocation3 [shape = 's32[1]{0}', space=sflag, size = 0x4, scoped, tag = 'scoped memory for _lambda_.3']
    #allocation4 [shape = 's32[1]{0}', space=sflag, size = 0x4, scoped, tag = 'scoped memory for _lambda_.3']
    #allocation5 [shape = 'u8[38912]{0}', space=vmem, size = 0x9800, scoped, tag = 'input window, operand 1, single buffered']
    #allocation6 [shape = 's32[1]{0}', space=sflag, size = 0x4, scoped, tag = 'scoped memory for _lambda_.3']
    #allocation7 [shape = 'u8[512]{0}', space=vmem, size = 0x400, scoped, tag = 'input window, operand 2, single buffered']
    #allocation8 [shape = 'u8[512]{0}', space=vmem, size = 0x400, scoped, tag = 'input window, operand 3, single buffered']
    #allocation9 [shape = 's32[1]{0}', space=sflag, size = 0x4, scoped, tag = 'scoped memory for _lambda_.3']
    #allocation10 [shape = 'u8[512]{0}', space=vmem, size = 0x400, scoped, tag = 'input window, operand 4, single buffered']
    #allocation11 [shape = 'u8[102400]{0}', space=vmem, size = 0x19000, scoped, tag = 'input window, operand 5, single buffered']
    #allocation12 [shape = 's32[1]{0}', space=sflag, size = 0x4, scoped, tag = 'scoped memory for _lambda_.3']
    #allocation13 [shape = 'u8[512]{0}', space=vmem, size = 0x400, scoped, tag = 'input window, operand 6, single buffered']
    #allocation14 [shape = 'u8[30720]{0}', space=vmem, size = 0x7800, scoped, tag = 'input window, operand 7, single buffered']
    #allocation15 [shape = 's32[1]{0}', space=sflag, size = 0x4, scoped, tag = 'scoped memory for _lambda_.3']
    #allocation16 [shape = 'u8[512]{0}', space=vmem, size = 0x400, scoped, tag = 'input window, operand 8, single buffered']
    #allocation17 [shape = 'u8[22528]{0}', space=vmem, size = 0x5800, scoped, tag = 'input window, operand 9, single buffered']
    #allocation18 [shape = 's32[1]{0}', space=sflag, size = 0x4, scoped, tag = 'scoped memory for _lambda_.3']
    #allocation19 [shape = 'u8[512]{0}', space=vmem, size = 0x400, scoped, tag = 'input window, operand 10, single buffered']
    #allocation20 [shape = 'u8[1024]{0}', space=vmem, size = 0x400, scoped, tag = 'output window, operand 0, single buffered']
    %16 = vsyncpa [#allocation3], 0
    %17 = vsyncpa [#allocation6], 0
    %18 = vsyncpa [#allocation9], 0
    %19 = vsyncpa [#allocation12], 0
    %20 = vsyncpa [#allocation15], 0
    %21 = vsyncpa [#allocation18], 0
    %22 = vsyncpa [#allocation4], 0
    // Predicated region
    $region2: #{_lambda_.3} parent=1 // pred_check
      _
    $region3: #{_lambda_.3} parent=1 // pred_check_branch
      %24 = sbr.rel (0) target = $region5
    $region4: #{_lambda_.3} parent=1 // pred_region
      %s26 = ssub.s32 3200, 3200
      %27 = vsyncadd [#allocation3], %s26
      %s28 = sshll.u32 [#allocation2], 4
      %s29 = int_to_ptr.vmem [resolvable:$true] %s28
      %34 = dma.hbm_to_vmem [thread:$0]  %s0, 3200, %s29, [#allocation3], 128, 128, 8
    $region5: #{_lambda_.3} parent=1 // pred_fallthru
      _
    // Predicated region
    $region6: #{_lambda_.3} parent=1 // pred_check
      _
    $region7: #{_lambda_.3} parent=1 // pred_check_branch
      %36 = sbr.rel (0) target = $region9
    $region8: #{_lambda_.3} parent=1 // pred_region
      %s38 = ssub.s32 1216, 1216
      %39 = vsyncadd [#allocation6], %s38
      %s40 = sshll.u32 [#allocation5], 4
      %s41 = int_to_ptr.vmem [resolvable:$true] %s40
      %46 = dma.hbm_to_vmem [thread:$0]  %s1, 1216, %s41, [#allocation6], 64, 64, 4
    $region9: #{_lambda_.3} parent=1 // pred_fallthru
      _
    // Predicated region
    $region10: #{_lambda_.3} parent=1 // pred_check
      _
    $region11: #{_lambda_.3} parent=1 // pred_check_branch
      %48 = sbr.rel (0) target = $region13
    $region12: #{_lambda_.3} parent=1 // pred_region
      %s50 = ssub.s32 16, 16
      %51 = vsyncadd [#allocation6], %s50
      %s53 = sshll.u32 [#allocation7], 4
      %s54 = int_to_ptr.vmem [resolvable:$true] %s53
      %56 = dma.hbm_to_vmem [thread:$0]  %s2, 16, %s54, [#allocation6]
    $region13: #{_lambda_.3} parent=1 // pred_fallthru
      _
    // Predicated region
    $region14: #{_lambda_.3} parent=1 // pred_check
      _
    $region15: #{_lambda_.3} parent=1 // pred_check_branch
      %58 = sbr.rel (0) target = $region17
    $region16: #{_lambda_.3} parent=1 // pred_region
      %s60 = ssub.s32 16, 16
      %61 = vsyncadd [#allocation9], %s60
      %s63 = sshll.u32 [#allocation8], 4
      %s64 = int_to_ptr.vmem [resolvable:$true] %s63
      %66 = dma.hbm_to_vmem [thread:$0]  %s3, 16, %s64, [#allocation9]
    $region17: #{_lambda_.3} parent=1 // pred_fallthru
      _
    // Predicated region
    $region18: #{_lambda_.3} parent=1 // pred_check
      _
    $region19: #{_lambda_.3} parent=1 // pred_check_branch
      %68 = sbr.rel (0) target = $region21
    $region20: #{_lambda_.3} parent=1 // pred_region
      %s70 = ssub.s32 16, 16
      %71 = vsyncadd [#allocation9], %s70
      %s73 = sshll.u32 [#allocation10], 4
      %s74 = int_to_ptr.vmem [resolvable:$true] %s73
      %76 = dma.hbm_to_vmem [thread:$0]  %s4, 16, %s74, [#allocation9]
    $region21: #{_lambda_.3} parent=1 // pred_fallthru
      _
    // Predicated region
    $region22: #{_lambda_.3} parent=1 // pred_check
      _
    $region23: #{_lambda_.3} parent=1 // pred_check_branch
      %78 = sbr.rel (0) target = $region25
    $region24: #{_lambda_.3} parent=1 // pred_region
      %s80 = ssub.s32 3200, 3200
      %81 = vsyncadd [#allocation12], %s80
      %s82 = sshll.u32 [#allocation11], 4
      %s83 = int_to_ptr.vmem [resolvable:$true] %s82
      %88 = dma.hbm_to_vmem [thread:$0]  %s5, 3200, %s83, [#allocation12], 64, 64, 4
    $region25: #{_lambda_.3} parent=1 // pred_fallthru
      _
    // Predicated region
    $region26: #{_lambda_.3} parent=1 // pred_check
      _
    $region27: #{_lambda_.3} parent=1 // pred_check_branch
      %90 = sbr.rel (0) target = $region29
    $region28: #{_lambda_.3} parent=1 // pred_region
      %s92 = ssub.s32 16, 16
      %93 = vsyncadd [#allocation12], %s92
      %s95 = sshll.u32 [#allocation13], 4
      %s96 = int_to_ptr.vmem [resolvable:$true] %s95
      %98 = dma.hbm_to_vmem [thread:$0]  %s6, 16, %s96, [#allocation12]
    $region29: #{_lambda_.3} parent=1 // pred_fallthru
      _
    // Predicated region
    $region30: #{_lambda_.3} parent=1 // pred_check
      _
    $region31: #{_lambda_.3} parent=1 // pred_check_branch
      %100 = sbr.rel (0) target = $region33
    $region32: #{_lambda_.3} parent=1 // pred_region
      %s102 = ssub.s32 960, 960
      %103 = vsyncadd [#allocation15], %s102
      %s104 = sshll.u32 [#allocation14], 4
      %s105 = int_to_ptr.vmem [resolvable:$true] %s104
      %110 = dma.hbm_to_vmem [thread:$0]  %s7, 960, %s105, [#allocation15], 64, 64, 4
    $region33: #{_lambda_.3} parent=1 // pred_fallthru
      _
    // Predicated region
    $region34: #{_lambda_.3} parent=1 // pred_check
      _
    $region35: #{_lambda_.3} parent=1 // pred_check_branch
      %112 = sbr.rel (0) target = $region37
    $region36: #{_lambda_.3} parent=1 // pred_region
      %s114 = ssub.s32 16, 16
      %115 = vsyncadd [#allocation15], %s114
      %s117 = sshll.u32 [#allocation16], 4
      %s118 = int_to_ptr.vmem [resolvable:$true] %s117
      %120 = dma.hbm_to_vmem [thread:$0]  %s8, 16, %s118, [#allocation15]
    $region37: #{_lambda_.3} parent=1 // pred_fallthru
      _
    // Predicated region
    $region38: #{_lambda_.3} parent=1 // pred_check
      _
    $region39: #{_lambda_.3} parent=1 // pred_check_branch
      %122 = sbr.rel (0) target = $region41
    $region40: #{_lambda_.3} parent=1 // pred_region
      %s124 = ssub.s32 704, 704
      %125 = vsyncadd [#allocation18], %s124
      %s126 = sshll.u32 [#allocation17], 4
      %s127 = int_to_ptr.vmem [resolvable:$true] %s126
      %132 = dma.hbm_to_vmem [thread:$0]  %s9, 704, %s127, [#allocation18], 64, 64, 4
    $region41: #{_lambda_.3} parent=1 // pred_fallthru
      _
    // Predicated region
    $region42: #{_lambda_.3} parent=1 // pred_check
      _
    $region43: #{_lambda_.3} parent=1 // pred_check_branch
      %134 = sbr.rel (0) target = $region45
    $region44: #{_lambda_.3} parent=1 // pred_region
      %s136 = ssub.s32 16, 16
      %137 = vsyncadd [#allocation18], %s136
      %s139 = sshll.u32 [#allocation19], 4
      %s140 = int_to_ptr.vmem [resolvable:$true] %s139
      %142 = dma.hbm_to_vmem [thread:$0]  %s10, 16, %s140, [#allocation18]
    $region45: #{_lambda_.3} parent=1 // pred_fallthru
      _
    // Predicated region
    $region46: #{_lambda_.3} parent=1 // pred_check
      _
    $region47: #{_lambda_.3} parent=1 // pred_check_branch
      %144 = sbr.rel (0) target = $region49
    $region48: #{_lambda_.3} parent=1 // pred_region
      %145 = dma.done [#allocation3], 3200
    $region49: #{_lambda_.3} parent=1 // pred_fallthru
      _
    // Predicated region
    $region50: #{_lambda_.3} parent=1 // pred_check
      _
    $region51: #{_lambda_.3} parent=1 // pred_check_branch
      %147 = sbr.rel (0) target = $region53
    $region52: #{_lambda_.3} parent=1 // pred_region
      %148 = dma.done [#allocation6], 1216
    $region53: #{_lambda_.3} parent=1 // pred_fallthru
      _
    // Predicated region
    $region54: #{_lambda_.3} parent=1 // pred_check
      _
    $region55: #{_lambda_.3} parent=1 // pred_check_branch
      %150 = sbr.rel (0) target = $region57
    $region56: #{_lambda_.3} parent=1 // pred_region
      %151 = dma.done [#allocation6], 16
    $region57: #{_lambda_.3} parent=1 // pred_fallthru
      _
    // Predicated region
    $region58: #{_lambda_.3} parent=1 // pred_check
      _
    $region59: #{_lambda_.3} parent=1 // pred_check_branch
      %153 = sbr.rel (0) target = $region61
    $region60: #{_lambda_.3} parent=1 // pred_region
      %154 = dma.done [#allocation9], 16
    $region61: #{_lambda_.3} parent=1 // pred_fallthru
      _
    // Predicated region
    $region62: #{_lambda_.3} parent=1 // pred_check
      _
    $region63: #{_lambda_.3} parent=1 // pred_check_branch
      %156 = sbr.rel (0) target = $region65
    $region64: #{_lambda_.3} parent=1 // pred_region
      %157 = dma.done [#allocation9], 16
    $region65: #{_lambda_.3} parent=1 // pred_fallthru
      _
    // Predicated region
    $region66: #{_lambda_.3} parent=1 // pred_check
      _
    $region67: #{_lambda_.3} parent=1 // pred_check_branch
      %159 = sbr.rel (0) target = $region69
    $region68: #{_lambda_.3} parent=1 // pred_region
      %160 = dma.done [#allocation12], 3200
    $region69: #{_lambda_.3} parent=1 // pred_fallthru
      _
    // Predicated region
    $region70: #{_lambda_.3} parent=1 // pred_check
      _
    $region71: #{_lambda_.3} parent=1 // pred_check_branch
      %162 = sbr.rel (0) target = $region73
    $region72: #{_lambda_.3} parent=1 // pred_region
      %163 = dma.done [#allocation12], 16
    $region73: #{_lambda_.3} parent=1 // pred_fallthru
      _
    // Predicated region
    $region74: #{_lambda_.3} parent=1 // pred_check
      _
    $region75: #{_lambda_.3} parent=1 // pred_check_branch
      %165 = sbr.rel (0) target = $region77
    $region76: #{_lambda_.3} parent=1 // pred_region
      %166 = dma.done [#allocation15], 960
    $region77: #{_lambda_.3} parent=1 // pred_fallthru
      _
    // Predicated region
    $region78: #{_lambda_.3} parent=1 // pred_check
      _
    $region79: #{_lambda_.3} parent=1 // pred_check_branch
      %168 = sbr.rel (0) target = $region81
    $region80: #{_lambda_.3} parent=1 // pred_region
      %169 = dma.done [#allocation15], 16
    $region81: #{_lambda_.3} parent=1 // pred_fallthru
      _
    // Predicated region
    $region82: #{_lambda_.3} parent=1 // pred_check
      _
    $region83: #{_lambda_.3} parent=1 // pred_check_branch
      %171 = sbr.rel (0) target = $region85
    $region84: #{_lambda_.3} parent=1 // pred_region
      %172 = dma.done [#allocation18], 704
    $region85: #{_lambda_.3} parent=1 // pred_fallthru
      _
    // Predicated region
    $region86: #{_lambda_.3} parent=1 // pred_check
      _
    $region87: #{_lambda_.3} parent=1 // pred_check_branch
      %174 = sbr.rel (0) target = $region89
    $region88: #{_lambda_.3} parent=1 // pred_region
      %175 = dma.done [#allocation18], 16
    $region89: #{_lambda_.3} parent=1 // pred_fallthru
      _
    %v177 = vld [vmem:[#allocation2] sm:$0xff]
    %v178 = vld [vmem:[#allocation2 + $0x8] sm:$0xff]
    %v179 = vld [vmem:[#allocation2 + $0x10] sm:$0xff]
    %v180 = vld [vmem:[#allocation2 + $0x18] sm:$0xff]
    %v181 = vld [vmem:[#allocation2 + $0x20] sm:$0xff]
    %v182 = vld [vmem:[#allocation2 + $0x28] sm:$0xff]
    %v183 = vld [vmem:[#allocation2 + $0x30] sm:$0xff]
    %v184 = vld [vmem:[#allocation2 + $0x38] sm:$0xff]
    %v185 = vld [vmem:[#allocation2 + $0x40] sm:$0xff]
    %v186 = vld [vmem:[#allocation2 + $0x48] sm:$0xff]
    %v187 = vld [vmem:[#allocation2 + $0x50] sm:$0xff]
    %v188 = vld [vmem:[#allocation2 + $0x58] sm:$0xff]
    %v189 = vld [vmem:[#allocation2 + $0x60] sm:$0xff]
    %v190 = vld [vmem:[#allocation2 + $0x68] sm:$0xff]
    %v191 = vld [vmem:[#allocation2 + $0x70] sm:$0xff]
    %v192 = vld [vmem:[#allocation2 + $0x78] sm:$0xff]
    %v193 = vld [vmem:[#allocation2 + $0x80] sm:$0xff]
    %v194 = vld [vmem:[#allocation2 + $0x88] sm:$0xff]
    %v195 = vld [vmem:[#allocation2 + $0x90] sm:$0xff]
    %v196 = vld [vmem:[#allocation2 + $0x98] sm:$0xff]
    %v197 = vld [vmem:[#allocation2 + $0xa0] sm:$0xff]
    %v198 = vld [vmem:[#allocation2 + $0xa8] sm:$0xff]
    %v199 = vld [vmem:[#allocation2 + $0xb0] sm:$0xff]
    %v200 = vld [vmem:[#allocation2 + $0xb8] sm:$0xff]
    %v201 = vld [vmem:[#allocation2 + $0xc0] sm:$0xff]
    %v202 = vld [vmem:[#allocation5] sm:$0xf]
    %v203 = vld [vmem:[#allocation5 + $0x4] sm:$0xf]
    %v204 = vld [vmem:[#allocation5 + $0x8] sm:$0xf]
    %v205 = vld [vmem:[#allocation5 + $0xc] sm:$0xf]
    %v206 = vld [vmem:[#allocation5 + $0x10] sm:$0xf]
    %v207 = vld [vmem:[#allocation5 + $0x14] sm:$0xf]
    %v208 = vld [vmem:[#allocation5 + $0x18] sm:$0xf]
    %v209 = vld [vmem:[#allocation5 + $0x1c] sm:$0xf]
    %v210 = vld [vmem:[#allocation5 + $0x20] sm:$0xf]
    %v211 = vld [vmem:[#allocation5 + $0x24] sm:$0xf]
    %v212 = vld [vmem:[#allocation5 + $0x28] sm:$0xf]
    %v213 = vld [vmem:[#allocation5 + $0x2c] sm:$0xf]
    %v214 = vld [vmem:[#allocation5 + $0x30] sm:$0xf]
    %v215 = vld [vmem:[#allocation5 + $0x34] sm:$0xf]
    %v216 = vld [vmem:[#allocation5 + $0x38] sm:$0xf]
    %v217 = vld [vmem:[#allocation5 + $0x3c] sm:$0xf]
    %v218 = vld [vmem:[#allocation5 + $0x40] sm:$0xf]
    %v219 = vld [vmem:[#allocation5 + $0x44] sm:$0xf]
    %v220 = vld [vmem:[#allocation5 + $0x48] sm:$0x7]
    %v221 = vld [vmem:[#allocation7] sm:$0x1]
    %v222 = vld [vmem:[#allocation8] sm:$0x1]
    %v223 = vld [vmem:[#allocation10] sm:$0x1]
    %v225 = vlaneseq
    %v226 = vshrl.u32 %v225, 7
    %v227 = vsub.s32 0, %v226
    %v228 = vrot.slane %v221, %v227
    %v255 = vunpack.c.l.b16 %v177
    %v256 = vunpack.c.h.b16 %v177
    %v257 = vunpack.c.l.b16 %v178
    %v258 = vunpack.c.h.b16 %v178
    %v259 = vunpack.c.l.b16 %v179
    %v260 = vunpack.c.h.b16 %v179
    %v261 = vunpack.c.l.b16 %v180
    %v262 = vunpack.c.h.b16 %v180
    %v263 = vunpack.c.l.b16 %v181
    %v264 = vunpack.c.h.b16 %v181
    %v265 = vunpack.c.l.b16 %v182
    %v266 = vunpack.c.h.b16 %v182
    %v267 = vunpack.c.l.b16 %v183
    %v268 = vunpack.c.h.b16 %v183
    %v269 = vunpack.c.l.b16 %v184
    %v270 = vunpack.c.h.b16 %v184
    %v271 = vunpack.c.l.b16 %v185
    %v272 = vunpack.c.h.b16 %v185
    %v273 = vunpack.c.l.b16 %v186
    %v274 = vunpack.c.h.b16 %v186
    %v275 = vunpack.c.l.b16 %v187
    %v276 = vunpack.c.h.b16 %v187
    %v277 = vunpack.c.l.b16 %v188
    %v278 = vunpack.c.h.b16 %v188
    %v279 = vunpack.c.l.b16 %v189
    %v280 = vunpack.c.h.b16 %v189
    %v281 = vunpack.c.l.b16 %v190
    %v282 = vunpack.c.h.b16 %v190
    %v283 = vunpack.c.l.b16 %v191
    %v284 = vunpack.c.h.b16 %v191
    %v285 = vunpack.c.l.b16 %v192
    %v286 = vunpack.c.h.b16 %v192
    %v287 = vunpack.c.l.b16 %v193
    %v288 = vunpack.c.h.b16 %v193
    %v289 = vunpack.c.l.b16 %v194
    %v290 = vunpack.c.h.b16 %v194
    %v291 = vunpack.c.l.b16 %v195
    %v292 = vunpack.c.h.b16 %v195
    %v293 = vunpack.c.l.b16 %v196
    %v294 = vunpack.c.h.b16 %v196
    %v295 = vunpack.c.l.b16 %v197
    %v296 = vunpack.c.h.b16 %v197
    %v297 = vunpack.c.l.b16 %v198
    %v298 = vunpack.c.h.b16 %v198
    %v299 = vunpack.c.l.b16 %v199
    %v300 = vunpack.c.h.b16 %v199
    %v301 = vunpack.c.l.b16 %v200
    %v302 = vunpack.c.h.b16 %v200
    %v303 = vunpack.c.l.b16 %v201
    %v304 = vunpack.c.h.b16 %v201
    %v305 = vpack.c.b16 %v257, %v255
    %v306 = vpack.c.b16 %v258, %v256
    %v307 = vpack.c.b16 %v261, %v259
    %v308 = vpack.c.b16 %v262, %v260
    %v309 = vpack.c.b16 %v265, %v263
    %v310 = vpack.c.b16 %v266, %v264
    %v311 = vpack.c.b16 %v269, %v267
    %v312 = vpack.c.b16 %v270, %v268
    %v313 = vpack.c.b16 %v273, %v271
    %v314 = vpack.c.b16 %v274, %v272
    %v315 = vpack.c.b16 %v277, %v275
    %v316 = vpack.c.b16 %v278, %v276
    %v317 = vpack.c.b16 %v281, %v279
    %v318 = vpack.c.b16 %v282, %v280
    %v319 = vpack.c.b16 %v285, %v283
    %v320 = vpack.c.b16 %v286, %v284
    %v321 = vpack.c.b16 %v289, %v287
    %v322 = vpack.c.b16 %v290, %v288
    %v323 = vpack.c.b16 %v293, %v291
    %v324 = vpack.c.b16 %v294, %v292
    %v325 = vpack.c.b16 %v297, %v295
    %v326 = vpack.c.b16 %v298, %v296
    %v327 = vpack.c.b16 %v301, %v299
    %v328 = vpack.c.b16 %v302, %v300
    %v329 = vpack.c.b16 %v303, %v303
    %v330 = vpack.c.b16 %v304, %v304
    %v363 = vunpack.c.l.b16 %v202
    %v364 = vunpack.c.l.b16 %v203
    %v365 = vunpack.c.l.b16 %v204
    %v366 = vunpack.c.l.b16 %v205
    %v367 = vunpack.c.l.b16 %v206
    %v368 = vunpack.c.l.b16 %v207
    %v369 = vunpack.c.l.b16 %v208
    %v370 = vunpack.c.l.b16 %v209
    %v371 = vunpack.c.l.b16 %v210
    %v372 = vunpack.c.l.b16 %v211
    %v373 = vunpack.c.l.b16 %v212
    %v374 = vunpack.c.l.b16 %v213
    %v375 = vunpack.c.l.b16 %v214
    %v376 = vunpack.c.l.b16 %v215
    %v377 = vunpack.c.l.b16 %v216
    %v378 = vunpack.c.l.b16 %v217
    %v379 = vunpack.c.l.b16 %v218
    %v380 = vunpack.c.l.b16 %v219
    %v381 = vunpack.c.l.b16 %v220
    %v382 = vpack.c.b16 %v364, %v363
    %v383 = vpack.c.b16 %v366, %v365
    %v384 = vpack.c.b16 %v368, %v367
    %v385 = vpack.c.b16 %v370, %v369
    %v386 = vpack.c.b16 %v372, %v371
    %v387 = vpack.c.b16 %v374, %v373
    %v388 = vpack.c.b16 %v376, %v375
    %v389 = vpack.c.b16 %v378, %v377
    %v390 = vpack.c.b16 %v380, %v379
    %v391 = vpack.c.b16 %v381, %v381
    %vm401 = vcmask 179200
    %v403 = vsel %vm401, %v306, 0
    %v406 = vsel %vm401, %v308, 0
    %v409 = vsel %vm401, %v310, 0
    %v412 = vsel %vm401, %v312, 0
    %v415 = vsel %vm401, %v314, 0
    %v418 = vsel %vm401, %v316, 0
    %v421 = vsel %vm401, %v318, 0
    %v424 = vsel %vm401, %v320, 0
    %v427 = vsel %vm401, %v322, 0
    %v430 = vsel %vm401, %v324, 0
    %v433 = vsel %vm401, %v326, 0
    %v436 = vsel %vm401, %v328, 0
    %v439 = vsel %vm401, %v330, 0
    %vm441 = vcmask 1042432
    %v443 = vsel %vm441, %v391, 0
    %445 = vmatprep.subr.bf16.mxu0 0
    %446 = vmatpush1.bf16.msra.mxu0 %v382
    %447 = vmatprep.subr.bf16.mxu0 0
    %448 = vmatpush1.bf16.msra.mxu0 %v383
    %449 = vmatprep.subr.bf16.mxu0 0
    %450 = vmatpush1.bf16.msra.mxu0 %v384
    %451 = vmatprep.subr.bf16.mxu0 0
    %452 = vmatpush1.bf16.msra.mxu0 %v385
    %453 = vmatprep.subr.bf16.mxu0 0
    %454 = vmatpush1.bf16.msra.mxu0 %v386
    %455 = vmatprep.subr.bf16.mxu0 0
    %456 = vmatpush1.bf16.msra.mxu0 %v387
    %457 = vmatprep.subr.bf16.mxu0 0
    %458 = vmatpush1.bf16.msra.mxu0 %v388
    %459 = vmatprep.subr.bf16.mxu0 0
    %460 = vmatpush1.bf16.msra.mxu0 %v389
    %461 = vmatprep.subr.bf16.mxu0 0
    %462 = vmatpush1.bf16.msra.mxu0 %v390
    %463 = vmatprep.subr.bf16.mxu0 0
    %464 = vmatpush1.bf16.msra.mxu0 %v443
    %465 = vmatprep.subr.bf16.mxu0 0
    %466 = vmatpush1.bf16.msra.mxu0 0
    %467 = vmatprep.subr.bf16.mxu0 0
    %468 = vmatpush1.bf16.msra.mxu0 0
    %469 = vmatprep.subr.bf16.mxu0 0
    %470 = vmatpush1.bf16.msra.mxu0 0
    %471 = vmatprep.subr.bf16.mxu0 0
    %472 = vmatpush1.bf16.msra.mxu0 0
    %473 = vmatprep.subr.bf16.mxu0 0
    %474 = vmatpush1.bf16.msra.mxu0 0
    %475 = vmatprep.subr.bf16.mxu0 0
    %476 = vmatpush1.bf16.msra.mxu0 0
    %477 = vmatprep.mubr.bf16.mxu0 %v403
    %478 = vmatmul.mubr.bf16.gmra.mrb[0].mxu0 %v305
    %v479 = vpop.f32.mrb[0].mxu0
    %v480 = vadd.f32 %v228, %v479
    %v481 = vpop.f32.mrb[0].mxu0
    %v482 = vpop.f32.mrb[0].mxu0
    %v483 = vadd.f32 %v228, %v482
    %v484 = vpop.f32.mrb[0].mxu0
    %485 = vmatprep.mubr.bf16.mxu0 %v406
    %486 = vmatmul.mubr.bf16.gmra.mrb[0].mxu0 %v307
    %v487 = vpop.f32.mrb[0].mxu0
    %v488 = vadd.f32 %v228, %v487
    %v489 = vpop.f32.mrb[0].mxu0
    %v490 = vpop.f32.mrb[0].mxu0
    %v491 = vadd.f32 %v228, %v490
    %v492 = vpop.f32.mrb[0].mxu0
    %493 = vmatprep.mubr.bf16.mxu0 %v409
    %494 = vmatmul.mubr.bf16.gmra.mrb[0].mxu0 %v309
    %v495 = vpop.f32.mrb[0].mxu0
    %v496 = vadd.f32 %v228, %v495
    %v497 = vpop.f32.mrb[0].mxu0
    %v498 = vpop.f32.mrb[0].mxu0
    %v499 = vadd.f32 %v228, %v498
    %v500 = vpop.f32.mrb[0].mxu0
    %501 = vmatprep.mubr.bf16.mxu0 %v412
    %502 = vmatmul.mubr.bf16.gmra.mrb[0].mxu0 %v311
    %v503 = vpop.f32.mrb[0].mxu0
    %v504 = vadd.f32 %v228, %v503
    %v505 = vpop.f32.mrb[0].mxu0
    %v506 = vpop.f32.mrb[0].mxu0
    %v507 = vadd.f32 %v228, %v506
    %v508 = vpop.f32.mrb[0].mxu0
    %509 = vmatprep.mubr.bf16.mxu0 %v415
    %510 = vmatmul.mubr.bf16.gmra.mrb[0].mxu0 %v313
    %v511 = vpop.f32.mrb[0].mxu0
    %v512 = vadd.f32 %v228, %v511
    %v513 = vpop.f32.mrb[0].mxu0
    %v514 = vpop.f32.mrb[0].mxu0
    %v515 = vadd.f32 %v228, %v514
    %v516 = vpop.f32.mrb[0].mxu0
    %517 = vmatprep.mubr.bf16.mxu0 %v418
    %518 = vmatmul.mubr.bf16.gmra.mrb[0].mxu0 %v315
    %v519 = vpop.f32.mrb[0].mxu0
    %v520 = vadd.f32 %v228, %v519
    %v521 = vpop.f32.mrb[0].mxu0
    %v522 = vpop.f32.mrb[0].mxu0
    %v523 = vadd.f32 %v228, %v522
    %v524 = vpop.f32.mrb[0].mxu0
    %525 = vmatprep.mubr.bf16.mxu0 %v421
    %526 = vmatmul.mubr.bf16.gmra.mrb[0].mxu0 %v317
    %v527 = vpop.f32.mrb[0].mxu0
    %v528 = vadd.f32 %v228, %v527
    %v529 = vpop.f32.mrb[0].mxu0
    %v530 = vpop.f32.mrb[0].mxu0
    %v531 = vadd.f32 %v228, %v530
    %v532 = vpop.f32.mrb[0].mxu0
    %533 = vmatprep.mubr.bf16.mxu0 %v424
    %534 = vmatmul.mubr.bf16.gmra.mrb[0].mxu0 %v319
    %v535 = vpop.f32.mrb[0].mxu0
    %v536 = vadd.f32 %v228, %v535
    %v537 = vpop.f32.mrb[0].mxu0
    %v538 = vpop.f32.mrb[0].mxu0
    %v539 = vadd.f32 %v228, %v538
    %v540 = vpop.f32.mrb[0].mxu0
    %541 = vmatprep.mubr.bf16.mxu0 %v427
    %542 = vmatmul.mubr.bf16.gmra.mrb[0].mxu0 %v321
    %v543 = vpop.f32.mrb[0].mxu0
    %v544 = vadd.f32 %v228, %v543
    %v545 = vpop.f32.mrb[0].mxu0
    %v546 = vpop.f32.mrb[0].mxu0
    %v547 = vadd.f32 %v228, %v546
    %v548 = vpop.f32.mrb[0].mxu0
    %549 = vmatprep.mubr.bf16.mxu0 %v430
    %550 = vmatmul.mubr.bf16.gmra.mrb[0].mxu0 %v323
    %v551 = vpop.f32.mrb[0].mxu0
    %v552 = vadd.f32 %v228, %v551
    %v553 = vpop.f32.mrb[0].mxu0
    %v554 = vpop.f32.mrb[0].mxu0
    %v555 = vadd.f32 %v228, %v554
    %v556 = vpop.f32.mrb[0].mxu0
    %557 = vmatprep.mubr.bf16.mxu0 %v433
    %558 = vmatmul.mubr.bf16.gmra.mrb[0].mxu0 %v325
    %v559 = vpop.f32.mrb[0].mxu0
    %v560 = vadd.f32 %v228, %v559
    %v561 = vpop.f32.mrb[0].mxu0
    %v562 = vpop.f32.mrb[0].mxu0
    %v563 = vadd.f32 %v228, %v562
    %v564 = vpop.f32.mrb[0].mxu0
    %565 = vmatprep.mubr.bf16.mxu0 %v436
    %566 = vmatmul.mubr.bf16.gmra.mrb[0].mxu0 %v327
    %v567 = vpop.f32.mrb[0].mxu0
    %v568 = vadd.f32 %v228, %v567
    %v569 = vpop.f32.mrb[0].mxu0
    %v570 = vpop.f32.mrb[0].mxu0
    %v571 = vadd.f32 %v228, %v570
    %v572 = vpop.f32.mrb[0].mxu0
    %573 = vmatprep.mubr.bf16.mxu0 %v439
    %574 = vmatmul.mubr.bf16.gmra.mrb[0].mxu0 %v329
    %v575 = vpop.f32.mrb[0].mxu0
    %v576 = vadd.f32 %v228, %v575
    %v577 = vpop.f32.mrb[0].mxu0
    %v578 = vpop.f32.mrb[0].mxu0
    %v579 = vpop.f32.mrb[0].mxu0
    %580 = vdwg.mxu0
    %v581 = vmax.f32 %v480, 0.0
    %v582 = vmax.f32 %v483, 0.0
    %v583 = vmax.f32 %v488, 0.0
    %v584 = vmax.f32 %v491, 0.0
    %v585 = vmax.f32 %v496, 0.0
    %v586 = vmax.f32 %v499, 0.0
    %v587 = vmax.f32 %v504, 0.0
    %v588 = vmax.f32 %v507, 0.0
    %v589 = vmax.f32 %v512, 0.0
    %v590 = vmax.f32 %v515, 0.0
    %v591 = vmax.f32 %v520, 0.0
    %v592 = vmax.f32 %v523, 0.0
    %v593 = vmax.f32 %v528, 0.0
    %v594 = vmax.f32 %v531, 0.0
    %v595 = vmax.f32 %v536, 0.0
    %v596 = vmax.f32 %v539, 0.0
    %v597 = vmax.f32 %v544, 0.0
    %v598 = vmax.f32 %v547, 0.0
    %v599 = vmax.f32 %v552, 0.0
    %v600 = vmax.f32 %v555, 0.0
    %v601 = vmax.f32 %v560, 0.0
    %v602 = vmax.f32 %v563, 0.0
    %v603 = vmax.f32 %v568, 0.0
    %v604 = vmax.f32 %v571, 0.0
    %v605 = vmax.f32 %v576, 0.0
    %vm606 = vcmask 130048
    %v607 = vsel %vm606, %v581, 0.0
    %v608 = vsel %vm606, %v582, 0.0
    %v609 = vadd.f32 %v607, %v608
    %v610 = vsel %vm606, %v583, 0.0
    %v611 = vadd.f32 %v609, %v610
    %v612 = vsel %vm606, %v584, 0.0
    %v613 = vadd.f32 %v611, %v612
    %v614 = vsel %vm606, %v585, 0.0
    %v615 = vadd.f32 %v613, %v614
    %v616 = vsel %vm606, %v586, 0.0
    %v617 = vadd.f32 %v615, %v616
    %v618 = vsel %vm606, %v587, 0.0
    %v619 = vadd.f32 %v617, %v618
    %v620 = vsel %vm606, %v588, 0.0
    %v621 = vadd.f32 %v619, %v620
    %v622 = vsel %vm606, %v589, 0.0
    %v623 = vadd.f32 %v621, %v622
    %v624 = vsel %vm606, %v590, 0.0
    %v625 = vadd.f32 %v623, %v624
    %v626 = vsel %vm606, %v591, 0.0
    %v627 = vadd.f32 %v625, %v626
    %v628 = vsel %vm606, %v592, 0.0
    %v629 = vadd.f32 %v627, %v628
    %v630 = vsel %vm606, %v593, 0.0
    %v631 = vadd.f32 %v629, %v630
    %v632 = vsel %vm606, %v594, 0.0
    %v633 = vadd.f32 %v631, %v632
    %v634 = vsel %vm606, %v595, 0.0
    %v635 = vadd.f32 %v633, %v634
    %v636 = vsel %vm606, %v596, 0.0
    %v637 = vadd.f32 %v635, %v636
    %v638 = vsel %vm606, %v597, 0.0
    %v639 = vadd.f32 %v637, %v638
    %v640 = vsel %vm606, %v598, 0.0
    %v641 = vadd.f32 %v639, %v640
    %v642 = vsel %vm606, %v599, 0.0
    %v643 = vadd.f32 %v641, %v642
    %v644 = vsel %vm606, %v600, 0.0
    %v645 = vadd.f32 %v643, %v644
    %v646 = vsel %vm606, %v601, 0.0
    %v647 = vadd.f32 %v645, %v646
    %v648 = vsel %vm606, %v602, 0.0
    %v649 = vadd.f32 %v647, %v648
    %v650 = vsel %vm606, %v603, 0.0
    %v651 = vadd.f32 %v649, %v650
    %v652 = vsel %vm606, %v604, 0.0
    %v653 = vadd.f32 %v651, %v652
    %v654 = vsel %vm606, %v605, 0.0
    %v655 = vadd.f32 %v653, %v654
    %v656 = vrot.slane %v655, 4
    %v657 = vadd.f32 %v655, %v656
    %v658 = vrot.slane %v657, 2
    %v659 = vadd.f32 %v657, %v658
    %v660 = vrot.slane %v659, 1
    %v661 = vadd.f32 %v659, %v660
    %v662 = vmul.f32 %v661, 0.005
    %v663 = vmul.f32 %v581, %v581
    %v664 = vmul.f32 %v582, %v582
    %v665 = vmul.f32 %v583, %v583
    %v666 = vmul.f32 %v584, %v584
    %v667 = vmul.f32 %v585, %v585
    %v668 = vmul.f32 %v586, %v586
    %v669 = vmul.f32 %v587, %v587
    %v670 = vmul.f32 %v588, %v588
    %v671 = vmul.f32 %v589, %v589
    %v672 = vmul.f32 %v590, %v590
    %v673 = vmul.f32 %v591, %v591
    %v674 = vmul.f32 %v592, %v592
    %v675 = vmul.f32 %v593, %v593
    %v676 = vmul.f32 %v594, %v594
    %v677 = vmul.f32 %v595, %v595
    %v678 = vmul.f32 %v596, %v596
    %v679 = vmul.f32 %v597, %v597
    %v680 = vmul.f32 %v598, %v598
    %v681 = vmul.f32 %v599, %v599
    %v682 = vmul.f32 %v600, %v600
    %v683 = vmul.f32 %v601, %v601
    %v684 = vmul.f32 %v602, %v602
    %v685 = vmul.f32 %v603, %v603
    %v686 = vmul.f32 %v604, %v604
    %v687 = vmul.f32 %v605, %v605
    %v688 = vsel %vm606, %v663, 0.0
    %v689 = vsel %vm606, %v664, 0.0
    %v690 = vadd.f32 %v688, %v689
    %v691 = vsel %vm606, %v665, 0.0
    %v692 = vadd.f32 %v690, %v691
    %v693 = vsel %vm606, %v666, 0.0
    %v694 = vadd.f32 %v692, %v693
    %v695 = vsel %vm606, %v667, 0.0
    %v696 = vadd.f32 %v694, %v695
    %v697 = vsel %vm606, %v668, 0.0
    %v698 = vadd.f32 %v696, %v697
    %v699 = vsel %vm606, %v669, 0.0
    %v700 = vadd.f32 %v698, %v699
    %v701 = vsel %vm606, %v670, 0.0
    %v702 = vadd.f32 %v700, %v701
    %v703 = vsel %vm606, %v671, 0.0
    %v704 = vadd.f32 %v702, %v703
    %v705 = vsel %vm606, %v672, 0.0
    %v706 = vadd.f32 %v704, %v705
    %v707 = vsel %vm606, %v673, 0.0
    %v708 = vadd.f32 %v706, %v707
    %v709 = vsel %vm606, %v674, 0.0
    %v710 = vadd.f32 %v708, %v709
    %v711 = vsel %vm606, %v675, 0.0
    %v712 = vadd.f32 %v710, %v711
    %v713 = vsel %vm606, %v676, 0.0
    %v714 = vadd.f32 %v712, %v713
    %v715 = vsel %vm606, %v677, 0.0
    %v716 = vadd.f32 %v714, %v715
    %v717 = vsel %vm606, %v678, 0.0
    %v718 = vadd.f32 %v716, %v717
    %v719 = vsel %vm606, %v679, 0.0
    %v720 = vadd.f32 %v718, %v719
    %v721 = vsel %vm606, %v680, 0.0
    %v722 = vadd.f32 %v720, %v721
    %v723 = vsel %vm606, %v681, 0.0
    %v724 = vadd.f32 %v722, %v723
    %v725 = vsel %vm606, %v682, 0.0
    %v726 = vadd.f32 %v724, %v725
    %v727 = vsel %vm606, %v683, 0.0
    %v728 = vadd.f32 %v726, %v727
    %v729 = vsel %vm606, %v684, 0.0
    %v730 = vadd.f32 %v728, %v729
    %v731 = vsel %vm606, %v685, 0.0
    %v732 = vadd.f32 %v730, %v731
    %v733 = vsel %vm606, %v686, 0.0
    %v734 = vadd.f32 %v732, %v733
    %v735 = vsel %vm606, %v687, 0.0
    %v736 = vadd.f32 %v734, %v735
    %v737 = vrot.slane %v736, 4
    %v738 = vadd.f32 %v736, %v737
    %v739 = vrot.slane %v738, 2
    %v740 = vadd.f32 %v738, %v739
    %v741 = vrot.slane %v740, 1
    %v742 = vadd.f32 %v740, %v741
    %v743 = vmul.f32 %v742, 0.005
    %v744 = vmul.f32 %v662, %v662
    %v745 = vsub.f32 %v743, %v744
    %v746 = vmax.f32 %v745, 0.0
    %v747 = vadd.f32 %v746, 1e-05
    %v748 = vrsqrt.pop %v747
    %v749 = vmul.f32 %v748, %v222
    %v750 = vmul.f32 %v662, %v749
    %v751 = vsub.f32 %v223, %v750
    %vm759 = vcmask 1045504
    %v760 = vrot.slane %v587, 2
    %v761 = vrot.slane %v588, 2
    %v762 = vsel %vm759, %v760, %v761
    %v763 = vrot.slane %v589, 2
    %v764 = vsel %vm759, %v761, %v763
    %v765 = vrot.slane %v590, 2
    %v766 = vsel %vm759, %v763, %v765
    %v767 = vrot.slane %v591, 2
    %v768 = vsel %vm759, %v765, %v767
    %v769 = vrot.slane %v592, 2
    %v770 = vsel %vm759, %v767, %v769
    %v771 = vrot.slane %v593, 2
    %v772 = vsel %vm759, %v769, %v771
    %v780 = vadd.f32 %v581, %v762
    %v781 = vadd.f32 %v582, %v764
    %v782 = vadd.f32 %v583, %v766
    %v783 = vadd.f32 %v584, %v768
    %v784 = vadd.f32 %v585, %v770
    %v785 = vadd.f32 %v586, %v772
    %v786 = vadd.f32 %v587, %v771
    %vm793 = vcmask 1043456
    %v794 = vrot.slane %v593, 4
    %v795 = vrot.slane %v594, 4
    %v796 = vsel %vm793, %v794, %v795
    %v797 = vrot.slane %v595, 4
    %v798 = vsel %vm793, %v795, %v797
    %v799 = vrot.slane %v596, 4
    %v800 = vsel %vm793, %v797, %v799
    %v801 = vrot.slane %v597, 4
    %v802 = vsel %vm793, %v799, %v801
    %v803 = vrot.slane %v598, 4
    %v804 = vsel %vm793, %v801, %v803
    %v805 = vrot.slane %v599, 4
    %v806 = vsel %vm793, %v803, %v805
    %v814 = vadd.f32 %v780, %v796
    %v815 = vadd.f32 %v781, %v798
    %v816 = vadd.f32 %v782, %v800
    %v817 = vadd.f32 %v783, %v802
    %v818 = vadd.f32 %v784, %v804
    %v819 = vadd.f32 %v785, %v806
    %v820 = vadd.f32 %v786, %v805
    %vm827 = vcmask 1041408
    %v828 = vrot.slane %v599, 6
    %v829 = vrot.slane %v600, 6
    %v830 = vsel %vm827, %v828, %v829
    %v831 = vrot.slane %v601, 6
    %v832 = vsel %vm827, %v829, %v831
    %v833 = vrot.slane %v602, 6
    %v834 = vsel %vm827, %v831, %v833
    %v835 = vrot.slane %v603, 6
    %v836 = vsel %vm827, %v833, %v835
    %v837 = vrot.slane %v604, 6
    %v838 = vsel %vm827, %v835, %v837
    %v839 = vrot.slane %v605, 6
    %v840 = vsel %vm827, %v837, %v839
    %v848 = vadd.f32 %v814, %v830
    %v849 = vadd.f32 %v815, %v832
    %v850 = vadd.f32 %v816, %v834
    %v851 = vadd.f32 %v817, %v836
    %v852 = vadd.f32 %v818, %v838
    %v853 = vadd.f32 %v819, %v840
    %v854 = vadd.f32 %v820, %v839
    %v855 = vmul.f32 %v848, 0.25
    %v856 = vmul.f32 %v849, 0.25
    %v857 = vmul.f32 %v850, 0.25
    %v858 = vmul.f32 %v851, 0.25
    %v859 = vmul.f32 %v852, 0.25
    %v860 = vmul.f32 %v853, 0.25
    %v861 = vmul.f32 %v854, 0.25
    %v862 = vlaneseq
    %v863 = vshrl.u32 %v862, 7
    %v864 = vsub.s32 0, %v863
    %v865 = vrot.slane %v749, %v864
    %v866 = vmul.f32 %v855, %v865
    %v867 = vmul.f32 %v856, %v865
    %v868 = vmul.f32 %v857, %v865
    %v869 = vmul.f32 %v858, %v865
    %v870 = vmul.f32 %v859, %v865
    %v871 = vmul.f32 %v860, %v865
    %v872 = vmul.f32 %v861, %v865
    %v874 = vlaneseq
    %v875 = vshrl.u32 %v874, 7
    %v876 = vsub.s32 0, %v875
    %v877 = vrot.slane %v751, %v876
    %v879 = vadd.f32 %v866, %v877
    %v880 = vadd.f32 %v867, %v877
    %v881 = vadd.f32 %v868, %v877
    %v882 = vadd.f32 %v869, %v877
    %v883 = vadd.f32 %v870, %v877
    %v884 = vadd.f32 %v871, %v877
    %v885 = vadd.f32 %v872, %v877
    %v886 = vpack.c.bf16 %v880, %v879
    %v887 = vpack.c.bf16 %v882, %v881
    %v888 = vpack.c.bf16 %v884, %v883
    %v889 = vpack.c.bf16 %v885, %v885
    %v890 = vld [vmem:[#allocation11] sm:$0xf]
    %v891 = vld [vmem:[#allocation11 + $0x4] sm:$0xf]
    %s892 = scalar_lea.vmem [#allocation11], 8
    %v893 = vld [vmem:[%s892] sm:$0xf]
    %v894 = vld [vmem:[%s892 + $0x4] sm:$0xf]
    %v896 = vrot.slane %v886, 1
    %v899 = vunpack.c.l.b16 %v893
    %v900 = vunpack.c.l.b16 %v894
    %v901 = vpack.c.b16 %v900, %v899
    %v904 = vsel %vm606, %v896, 0
    %906 = vmatprep.subr.bf16.mxu0 0
    %907 = vmatpush1.bf16.msra.mxu0 %v901
    %908 = vmatprep.subr.bf16.mxu0 0
    %909 = vmatpush1.bf16.msra.mxu0 0
    %910 = vmatprep.subr.bf16.mxu0 0
    %911 = vmatpush1.bf16.msra.mxu0 0
    %912 = vmatprep.subr.bf16.mxu0 0
    %913 = vmatpush1.bf16.msra.mxu0 0
    %914 = vmatprep.subr.bf16.mxu0 0
    %915 = vmatpush1.bf16.msra.mxu0 0
    %916 = vmatprep.subr.bf16.mxu0 0
    %917 = vmatpush1.bf16.msra.mxu0 0
    %918 = vmatprep.subr.bf16.mxu0 0
    %919 = vmatpush1.bf16.msra.mxu0 0
    %920 = vmatprep.subr.bf16.mxu0 0
    %921 = vmatpush1.bf16.msra.mxu0 0
    %922 = vmatprep.subr.bf16.mxu0 0
    %923 = vmatpush1.bf16.msra.mxu0 0
    %924 = vmatprep.subr.bf16.mxu0 0
    %925 = vmatpush1.bf16.msra.mxu0 0
    %926 = vmatprep.subr.bf16.mxu0 0
    %927 = vmatpush1.bf16.msra.mxu0 0
    %928 = vmatprep.subr.bf16.mxu0 0
    %929 = vmatpush1.bf16.msra.mxu0 0
    %930 = vmatprep.subr.bf16.mxu0 0
    %931 = vmatpush1.bf16.msra.mxu0 0
    %932 = vmatprep.subr.bf16.mxu0 0
    %933 = vmatpush1.bf16.msra.mxu0 0
    %934 = vmatprep.subr.bf16.mxu0 0
    %935 = vmatpush1.bf16.msra.mxu0 0
    %936 = vmatprep.subr.bf16.mxu0 0
    %937 = vmatpush1.bf16.msra.mxu0 0
    %938 = vmatprep.mubr.bf16.mxu0 0
    %939 = vmatmul.mubr.bf16.gmra.mrb[0].mxu0 %v904
    %v940 = vpop.f32.mrb[0].mxu0
    %v941 = vadd.f32 0.0, %v940
    %v942 = vpop.f32.mrb[0].mxu0
    %v943 = vpop.f32.mrb[0].mxu0
    %v944 = vpop.f32.mrb[0].mxu0
    %945 = vdwg.mxu0
    %v948 = vunpack.c.l.b16 %v890
    %v949 = vunpack.c.l.b16 %v891
    %v950 = vpack.c.b16 %v949, %v948
    %v953 = vsel %vm606, %v886, 0
    %955 = vmatprep.subr.bf16.mxu0 0
    %956 = vmatpush1.bf16.msra.mxu0 %v950
    %957 = vmatprep.subr.bf16.mxu0 0
    %958 = vmatpush1.bf16.msra.mxu0 0
    %959 = vmatprep.subr.bf16.mxu0 0
    %960 = vmatpush1.bf16.msra.mxu0 0
    %961 = vmatprep.subr.bf16.mxu0 0
    %962 = vmatpush1.bf16.msra.mxu0 0
    %963 = vmatprep.subr.bf16.mxu0 0
    %964 = vmatpush1.bf16.msra.mxu0 0
    %965 = vmatprep.subr.bf16.mxu0 0
    %966 = vmatpush1.bf16.msra.mxu0 0
    %967 = vmatprep.subr.bf16.mxu0 0
    %968 = vmatpush1.bf16.msra.mxu0 0
    %969 = vmatprep.subr.bf16.mxu0 0
    %970 = vmatpush1.bf16.msra.mxu0 0
    %971 = vmatprep.subr.bf16.mxu0 0
    %972 = vmatpush1.bf16.msra.mxu0 0
    %973 = vmatprep.subr.bf16.mxu0 0
    %974 = vmatpush1.bf16.msra.mxu0 0
    %975 = vmatprep.subr.bf16.mxu0 0
    %976 = vmatpush1.bf16.msra.mxu0 0
    %977 = vmatprep.subr.bf16.mxu0 0
    %978 = vmatpush1.bf16.msra.mxu0 0
    %979 = vmatprep.subr.bf16.mxu0 0
    %980 = vmatpush1.bf16.msra.mxu0 0
    %981 = vmatprep.subr.bf16.mxu0 0
    %982 = vmatpush1.bf16.msra.mxu0 0
    %983 = vmatprep.subr.bf16.mxu0 0
    %984 = vmatpush1.bf16.msra.mxu0 0
    %985 = vmatprep.subr.bf16.mxu0 0
    %986 = vmatpush1.bf16.msra.mxu0 0
    %987 = vmatprep.mubr.bf16.mxu0 0
    %988 = vmatmul.mubr.bf16.gmra.mrb[0].mxu0 %v953
    %v989 = vpop.f32.mrb[0].mxu0
    %v990 = vadd.f32 %v941, %v989
    %v991 = vpop.f32.mrb[0].mxu0
    %v992 = vpop.f32.mrb[0].mxu0
    %v993 = vpop.f32.mrb[0].mxu0
    %994 = vdwg.mxu0
    %s995 = scalar_lea.vmem [#allocation11], 16
    %v996 = vld [vmem:[%s995] sm:$0xf]
    %v997 = vld [vmem:[%s995 + $0x4] sm:$0xf]
    %v998 = vrot.slane %v886, 2
    %v1001 = vunpack.c.l.b16 %v996
    %v1002 = vunpack.c.l.b16 %v997
    %v1003 = vpack.c.b16 %v1002, %v1001
    %v1006 = vsel %vm606, %v998, 0
    %1008 = vmatprep.subr.bf16.mxu0 0
    %1009 = vmatpush1.bf16.msra.mxu0 %v1003
    %1010 = vmatprep.subr.bf16.mxu0 0
    %1011 = vmatpush1.bf16.msra.mxu0 0
    %1012 = vmatprep.subr.bf16.mxu0 0
    %1013 = vmatpush1.bf16.msra.mxu0 0
    %1014 = vmatprep.subr.bf16.mxu0 0
    %1015 = vmatpush1.bf16.msra.mxu0 0
    %1016 = vmatprep.subr.bf16.mxu0 0
    %1017 = vmatpush1.bf16.msra.mxu0 0
    %1018 = vmatprep.subr.bf16.mxu0 0
    %1019 = vmatpush1.bf16.msra.mxu0 0
    %1020 = vmatprep.subr.bf16.mxu0 0
    %1021 = vmatpush1.bf16.msra.mxu0 0
    %1022 = vmatprep.subr.bf16.mxu0 0
    %1023 = vmatpush1.bf16.msra.mxu0 0
    %1024 = vmatprep.subr.bf16.mxu0 0
    %1025 = vmatpush1.bf16.msra.mxu0 0
    %1026 = vmatprep.subr.bf16.mxu0 0
    %1027 = vmatpush1.bf16.msra.mxu0 0
    %1028 = vmatprep.subr.bf16.mxu0 0
    %1029 = vmatpush1.bf16.msra.mxu0 0
    %1030 = vmatprep.subr.bf16.mxu0 0
    %1031 = vmatpush1.bf16.msra.mxu0 0
    %1032 = vmatprep.subr.bf16.mxu0 0
    %1033 = vmatpush1.bf16.msra.mxu0 0
    %1034 = vmatprep.subr.bf16.mxu0 0
    %1035 = vmatpush1.bf16.msra.mxu0 0
    %1036 = vmatprep.subr.bf16.mxu0 0
    %1037 = vmatpush1.bf16.msra.mxu0 0
    %1038 = vmatprep.subr.bf16.mxu0 0
    %1039 = vmatpush1.bf16.msra.mxu0 0
    %1040 = vmatprep.mubr.bf16.mxu0 0
    %1041 = vmatmul.mubr.bf16.gmra.mrb[0].mxu0 %v1006
    %v1042 = vpop.f32.mrb[0].mxu0
    %v1043 = vadd.f32 0.0, %v1042
    %v1044 = vpop.f32.mrb[0].mxu0
    %v1045 = vpop.f32.mrb[0].mxu0
    %v1046 = vpop.f32.mrb[0].mxu0
    %1047 = vdwg.mxu0
    %v1048 = vadd.f32 %v990, %v1043
    %s1049 = scalar_lea.vmem [#allocation11], 24
    %v1050 = vld [vmem:[%s1049] sm:$0xf]
    %v1051 = vld [vmem:[%s1049 + $0x4] sm:$0xf]
    %v1052 = vrot.slane %v886, 3
    %v1055 = vunpack.c.l.b16 %v1050
    %v1056 = vunpack.c.l.b16 %v1051
    %v1057 = vpack.c.b16 %v1056, %v1055
    %v1060 = vsel %vm606, %v1052, 0
    %1062 = vmatprep.subr.bf16.mxu0 0
    %1063 = vmatpush1.bf16.msra.mxu0 %v1057
    %1064 = vmatprep.subr.bf16.mxu0 0
    %1065 = vmatpush1.bf16.msra.mxu0 0
    %1066 = vmatprep.subr.bf16.mxu0 0
    %1067 = vmatpush1.bf16.msra.mxu0 0
    %1068 = vmatprep.subr.bf16.mxu0 0
    %1069 = vmatpush1.bf16.msra.mxu0 0
    %1070 = vmatprep.subr.bf16.mxu0 0
    %1071 = vmatpush1.bf16.msra.mxu0 0
    %1072 = vmatprep.subr.bf16.mxu0 0
    %1073 = vmatpush1.bf16.msra.mxu0 0
    %1074 = vmatprep.subr.bf16.mxu0 0
    %1075 = vmatpush1.bf16.msra.mxu0 0
    %1076 = vmatprep.subr.bf16.mxu0 0
    %1077 = vmatpush1.bf16.msra.mxu0 0
    %1078 = vmatprep.subr.bf16.mxu0 0
    %1079 = vmatpush1.bf16.msra.mxu0 0
    %1080 = vmatprep.subr.bf16.mxu0 0
    %1081 = vmatpush1.bf16.msra.mxu0 0
    %1082 = vmatprep.subr.bf16.mxu0 0
    %1083 = vmatpush1.bf16.msra.mxu0 0
    %1084 = vmatprep.subr.bf16.mxu0 0
    %1085 = vmatpush1.bf16.msra.mxu0 0
    %1086 = vmatprep.subr.bf16.mxu0 0
    %1087 = vmatpush1.bf16.msra.mxu0 0
    %1088 = vmatprep.subr.bf16.mxu0 0
    %1089 = vmatpush1.bf16.msra.mxu0 0
    %1090 = vmatprep.subr.bf16.mxu0 0
    %1091 = vmatpush1.bf16.msra.mxu0 0
    %1092 = vmatprep.subr.bf16.mxu0 0
    %1093 = vmatpush1.bf16.msra.mxu0 0
    %1094 = vmatprep.mubr.bf16.mxu0 0
    %1095 = vmatmul.mubr.bf16.gmra.mrb[0].mxu0 %v1060
    %v1096 = vpop.f32.mrb[0].mxu0
    %v1097 = vadd.f32 0.0, %v1096
    %v1098 = vpop.f32.mrb[0].mxu0
    %v1099 = vpop.f32.mrb[0].mxu0
    %v1100 = vpop.f32.mrb[0].mxu0
    %1101 = vdwg.mxu0
    %v1102 = vadd.f32 %v1048, %v1097
    %s1103 = scalar_lea.vmem [#allocation11], 32
    %v1104 = vld [vmem:[%s1103] sm:$0xf]
    %v1105 = vld [vmem:[%s1103 + $0x4] sm:$0xf]
    %v1106 = vrot.slane %v886, 4
    %v1109 = vunpack.c.l.b16 %v1104
    %v1110 = vunpack.c.l.b16 %v1105
    %v1111 = vpack.c.b16 %v1110, %v1109
    %v1114 = vsel %vm606, %v1106, 0
    %1116 = vmatprep.subr.bf16.mxu0 0
    %1117 = vmatpush1.bf16.msra.mxu0 %v1111
    %1118 = vmatprep.subr.bf16.mxu0 0
    %1119 = vmatpush1.bf16.msra.mxu0 0
    %1120 = vmatprep.subr.bf16.mxu0 0
    %1121 = vmatpush1.bf16.msra.mxu0 0
    %1122 = vmatprep.subr.bf16.mxu0 0
    %1123 = vmatpush1.bf16.msra.mxu0 0
    %1124 = vmatprep.subr.bf16.mxu0 0
    %1125 = vmatpush1.bf16.msra.mxu0 0
    %1126 = vmatprep.subr.bf16.mxu0 0
    %1127 = vmatpush1.bf16.msra.mxu0 0
    %1128 = vmatprep.subr.bf16.mxu0 0
    %1129 = vmatpush1.bf16.msra.mxu0 0
    %1130 = vmatprep.subr.bf16.mxu0 0
    %1131 = vmatpush1.bf16.msra.mxu0 0
    %1132 = vmatprep.subr.bf16.mxu0 0
    %1133 = vmatpush1.bf16.msra.mxu0 0
    %1134 = vmatprep.subr.bf16.mxu0 0
    %1135 = vmatpush1.bf16.msra.mxu0 0
    %1136 = vmatprep.subr.bf16.mxu0 0
    %1137 = vmatpush1.bf16.msra.mxu0 0
    %1138 = vmatprep.subr.bf16.mxu0 0
    %1139 = vmatpush1.bf16.msra.mxu0 0
    %1140 = vmatprep.subr.bf16.mxu0 0
    %1141 = vmatpush1.bf16.msra.mxu0 0
    %1142 = vmatprep.subr.bf16.mxu0 0
    %1143 = vmatpush1.bf16.msra.mxu0 0
    %1144 = vmatprep.subr.bf16.mxu0 0
    %1145 = vmatpush1.bf16.msra.mxu0 0
    %1146 = vmatprep.subr.bf16.mxu0 0
    %1147 = vmatpush1.bf16.msra.mxu0 0
    %1148 = vmatprep.mubr.bf16.mxu0 0
    %1149 = vmatmul.mubr.bf16.gmra.mrb[0].mxu0 %v1114
    %v1150 = vpop.f32.mrb[0].mxu0
    %v1151 = vadd.f32 0.0, %v1150
    %v1152 = vpop.f32.mrb[0].mxu0
    %v1153 = vpop.f32.mrb[0].mxu0
    %v1154 = vpop.f32.mrb[0].mxu0
    %1155 = vdwg.mxu0
    %v1156 = vadd.f32 %v1102, %v1151
    %s1157 = scalar_lea.vmem [#allocation11], 40
    %v1158 = vld [vmem:[%s1157] sm:$0xf]
    %v1159 = vld [vmem:[%s1157 + $0x4] sm:$0xf]
    %v1160 = vrot.slane %v886, 5
    %v1163 = vunpack.c.l.b16 %v1158
    %v1164 = vunpack.c.l.b16 %v1159
    %v1165 = vpack.c.b16 %v1164, %v1163
    %v1168 = vsel %vm606, %v1160, 0
    %1170 = vmatprep.subr.bf16.mxu0 0
    %1171 = vmatpush1.bf16.msra.mxu0 %v1165
    %1172 = vmatprep.subr.bf16.mxu0 0
    %1173 = vmatpush1.bf16.msra.mxu0 0
    %1174 = vmatprep.subr.bf16.mxu0 0
    %1175 = vmatpush1.bf16.msra.mxu0 0
    %1176 = vmatprep.subr.bf16.mxu0 0
    %1177 = vmatpush1.bf16.msra.mxu0 0
    %1178 = vmatprep.subr.bf16.mxu0 0
    %1179 = vmatpush1.bf16.msra.mxu0 0
    %1180 = vmatprep.subr.bf16.mxu0 0
    %1181 = vmatpush1.bf16.msra.mxu0 0
    %1182 = vmatprep.subr.bf16.mxu0 0
    %1183 = vmatpush1.bf16.msra.mxu0 0
    %1184 = vmatprep.subr.bf16.mxu0 0
    %1185 = vmatpush1.bf16.msra.mxu0 0
    %1186 = vmatprep.subr.bf16.mxu0 0
    %1187 = vmatpush1.bf16.msra.mxu0 0
    %1188 = vmatprep.subr.bf16.mxu0 0
    %1189 = vmatpush1.bf16.msra.mxu0 0
    %1190 = vmatprep.subr.bf16.mxu0 0
    %1191 = vmatpush1.bf16.msra.mxu0 0
    %1192 = vmatprep.subr.bf16.mxu0 0
    %1193 = vmatpush1.bf16.msra.mxu0 0
    %1194 = vmatprep.subr.bf16.mxu0 0
    %1195 = vmatpush1.bf16.msra.mxu0 0
    %1196 = vmatprep.subr.bf16.mxu0 0
    %1197 = vmatpush1.bf16.msra.mxu0 0
    %1198 = vmatprep.subr.bf16.mxu0 0
    %1199 = vmatpush1.bf16.msra.mxu0 0
    %1200 = vmatprep.subr.bf16.mxu0 0
    %1201 = vmatpush1.bf16.msra.mxu0 0
    %1202 = vmatprep.mubr.bf16.mxu0 0
    %1203 = vmatmul.mubr.bf16.gmra.mrb[0].mxu0 %v1168
    %v1204 = vpop.f32.mrb[0].mxu0
    %v1205 = vadd.f32 0.0, %v1204
    %v1206 = vpop.f32.mrb[0].mxu0
    %v1207 = vpop.f32.mrb[0].mxu0
    %v1208 = vpop.f32.mrb[0].mxu0
    %1209 = vdwg.mxu0
    %v1210 = vadd.f32 %v1156, %v1205
    %s1211 = scalar_lea.vmem [#allocation11], 48
    %v1212 = vld [vmem:[%s1211] sm:$0xf]
    %v1213 = vld [vmem:[%s1211 + $0x4] sm:$0xf]
    %v1214 = vrot.slane %v886, 6
    %v1217 = vunpack.c.l.b16 %v1212
    %v1218 = vunpack.c.l.b16 %v1213
    %v1219 = vpack.c.b16 %v1218, %v1217
    %v1222 = vsel %vm606, %v1214, 0
    %1224 = vmatprep.subr.bf16.mxu0 0
    %1225 = vmatpush1.bf16.msra.mxu0 %v1219
    %1226 = vmatprep.subr.bf16.mxu0 0
    %1227 = vmatpush1.bf16.msra.mxu0 0
    %1228 = vmatprep.subr.bf16.mxu0 0
    %1229 = vmatpush1.bf16.msra.mxu0 0
    %1230 = vmatprep.subr.bf16.mxu0 0
    %1231 = vmatpush1.bf16.msra.mxu0 0
    %1232 = vmatprep.subr.bf16.mxu0 0
    %1233 = vmatpush1.bf16.msra.mxu0 0
    %1234 = vmatprep.subr.bf16.mxu0 0
    %1235 = vmatpush1.bf16.msra.mxu0 0
    %1236 = vmatprep.subr.bf16.mxu0 0
    %1237 = vmatpush1.bf16.msra.mxu0 0
    %1238 = vmatprep.subr.bf16.mxu0 0
    %1239 = vmatpush1.bf16.msra.mxu0 0
    %1240 = vmatprep.subr.bf16.mxu0 0
    %1241 = vmatpush1.bf16.msra.mxu0 0
    %1242 = vmatprep.subr.bf16.mxu0 0
    %1243 = vmatpush1.bf16.msra.mxu0 0
    %1244 = vmatprep.subr.bf16.mxu0 0
    %1245 = vmatpush1.bf16.msra.mxu0 0
    %1246 = vmatprep.subr.bf16.mxu0 0
    %1247 = vmatpush1.bf16.msra.mxu0 0
    %1248 = vmatprep.subr.bf16.mxu0 0
    %1249 = vmatpush1.bf16.msra.mxu0 0
    %1250 = vmatprep.subr.bf16.mxu0 0
    %1251 = vmatpush1.bf16.msra.mxu0 0
    %1252 = vmatprep.subr.bf16.mxu0 0
    %1253 = vmatpush1.bf16.msra.mxu0 0
    %1254 = vmatprep.subr.bf16.mxu0 0
    %1255 = vmatpush1.bf16.msra.mxu0 0
    %1256 = vmatprep.mubr.bf16.mxu0 0
    %1257 = vmatmul.mubr.bf16.gmra.mrb[0].mxu0 %v1222
    %v1258 = vpop.f32.mrb[0].mxu0
    %v1259 = vadd.f32 0.0, %v1258
    %v1260 = vpop.f32.mrb[0].mxu0
    %v1261 = vpop.f32.mrb[0].mxu0
    %v1262 = vpop.f32.mrb[0].mxu0
    %1263 = vdwg.mxu0
    %v1264 = vadd.f32 %v1210, %v1259
    %s1265 = scalar_lea.vmem [#allocation11], 56
    %v1266 = vld [vmem:[%s1265] sm:$0xf]
    %v1267 = vld [vmem:[%s1265 + $0x4] sm:$0xf]
    %v1268 = vrot.slane %v886, 7
    %v1271 = vunpack.c.l.b16 %v1266
    %v1272 = vunpack.c.l.b16 %v1267
    %v1273 = vpack.c.b16 %v1272, %v1271
    %v1276 = vsel %vm606, %v1268, 0
    %1278 = vmatprep.subr.bf16.mxu0 0
    %1279 = vmatpush1.bf16.msra.mxu0 %v1273
    %1280 = vmatprep.subr.bf16.mxu0 0
    %1281 = vmatpush1.bf16.msra.mxu0 0
    %1282 = vmatprep.subr.bf16.mxu0 0
    %1283 = vmatpush1.bf16.msra.mxu0 0
    %1284 = vmatprep.subr.bf16.mxu0 0
    %1285 = vmatpush1.bf16.msra.mxu0 0
    %1286 = vmatprep.subr.bf16.mxu0 0
    %1287 = vmatpush1.bf16.msra.mxu0 0
    %1288 = vmatprep.subr.bf16.mxu0 0
    %1289 = vmatpush1.bf16.msra.mxu0 0
    %1290 = vmatprep.subr.bf16.mxu0 0
    %1291 = vmatpush1.bf16.msra.mxu0 0
    %1292 = vmatprep.subr.bf16.mxu0 0
    %1293 = vmatpush1.bf16.msra.mxu0 0
    %1294 = vmatprep.subr.bf16.mxu0 0
    %1295 = vmatpush1.bf16.msra.mxu0 0
    %1296 = vmatprep.subr.bf16.mxu0 0
    %1297 = vmatpush1.bf16.msra.mxu0 0
    %1298 = vmatprep.subr.bf16.mxu0 0
    %1299 = vmatpush1.bf16.msra.mxu0 0
    %1300 = vmatprep.subr.bf16.mxu0 0
    %1301 = vmatpush1.bf16.msra.mxu0 0
    %1302 = vmatprep.subr.bf16.mxu0 0
    %1303 = vmatpush1.bf16.msra.mxu0 0
    %1304 = vmatprep.subr.bf16.mxu0 0
    %1305 = vmatpush1.bf16.msra.mxu0 0
    %1306 = vmatprep.subr.bf16.mxu0 0
    %1307 = vmatpush1.bf16.msra.mxu0 0
    %1308 = vmatprep.subr.bf16.mxu0 0
    %1309 = vmatpush1.bf16.msra.mxu0 0
    %1310 = vmatprep.mubr.bf16.mxu0 0
    %1311 = vmatmul.mubr.bf16.gmra.mrb[0].mxu0 %v1276
    %v1312 = vpop.f32.mrb[0].mxu0
    %v1313 = vadd.f32 0.0, %v1312
    %v1314 = vpop.f32.mrb[0].mxu0
    %v1315 = vpop.f32.mrb[0].mxu0
    %v1316 = vpop.f32.mrb[0].mxu0
    %1317 = vdwg.mxu0
    %v1318 = vadd.f32 %v1264, %v1313
    %s1319 = scalar_lea.vmem [#allocation11], 64
    %v1320 = vld [vmem:[%s1319] sm:$0xf]
    %v1321 = vld [vmem:[%s1319 + $0x4] sm:$0xf]
    %v1324 = vunpack.c.l.b16 %v1320
    %v1325 = vunpack.c.l.b16 %v1321
    %v1326 = vpack.c.b16 %v1325, %v1324
    %v1329 = vsel %vm606, %v887, 0
    %1331 = vmatprep.subr.bf16.mxu0 0
    %1332 = vmatpush1.bf16.msra.mxu0 %v1326
    %1333 = vmatprep.subr.bf16.mxu0 0
    %1334 = vmatpush1.bf16.msra.mxu0 0
    %1335 = vmatprep.subr.bf16.mxu0 0
    %1336 = vmatpush1.bf16.msra.mxu0 0
    %1337 = vmatprep.subr.bf16.mxu0 0
    %1338 = vmatpush1.bf16.msra.mxu0 0
    %1339 = vmatprep.subr.bf16.mxu0 0
    %1340 = vmatpush1.bf16.msra.mxu0 0
    %1341 = vmatprep.subr.bf16.mxu0 0
    %1342 = vmatpush1.bf16.msra.mxu0 0
    %1343 = vmatprep.subr.bf16.mxu0 0
    %1344 = vmatpush1.bf16.msra.mxu0 0
    %1345 = vmatprep.subr.bf16.mxu0 0
    %1346 = vmatpush1.bf16.msra.mxu0 0
    %1347 = vmatprep.subr.bf16.mxu0 0
    %1348 = vmatpush1.bf16.msra.mxu0 0
    %1349 = vmatprep.subr.bf16.mxu0 0
    %1350 = vmatpush1.bf16.msra.mxu0 0
    %1351 = vmatprep.subr.bf16.mxu0 0
    %1352 = vmatpush1.bf16.msra.mxu0 0
    %1353 = vmatprep.subr.bf16.mxu0 0
    %1354 = vmatpush1.bf16.msra.mxu0 0
    %1355 = vmatprep.subr.bf16.mxu0 0
    %1356 = vmatpush1.bf16.msra.mxu0 0
    %1357 = vmatprep.subr.bf16.mxu0 0
    %1358 = vmatpush1.bf16.msra.mxu0 0
    %1359 = vmatprep.subr.bf16.mxu0 0
    %1360 = vmatpush1.bf16.msra.mxu0 0
    %1361 = vmatprep.subr.bf16.mxu0 0
    %1362 = vmatpush1.bf16.msra.mxu0 0
    %1363 = vmatprep.mubr.bf16.mxu0 0
    %1364 = vmatmul.mubr.bf16.gmra.mrb[0].mxu0 %v1329
    %v1365 = vpop.f32.mrb[0].mxu0
    %v1366 = vadd.f32 0.0, %v1365
    %v1367 = vpop.f32.mrb[0].mxu0
    %v1368 = vpop.f32.mrb[0].mxu0
    %v1369 = vpop.f32.mrb[0].mxu0
    %1370 = vdwg.mxu0
    %v1371 = vadd.f32 %v1318, %v1366
    %s1372 = scalar_lea.vmem [#allocation11], 72
    %v1373 = vld [vmem:[%s1372] sm:$0xf]
    %v1374 = vld [vmem:[%s1372 + $0x4] sm:$0xf]
    %v1376 = vrot.slane %v887, 1
    %v1379 = vunpack.c.l.b16 %v1373
    %v1380 = vunpack.c.l.b16 %v1374
    %v1381 = vpack.c.b16 %v1380, %v1379
    %v1384 = vsel %vm606, %v1376, 0
    %1386 = vmatprep.subr.bf16.mxu0 0
    %1387 = vmatpush1.bf16.msra.mxu0 %v1381
    %1388 = vmatprep.subr.bf16.mxu0 0
    %1389 = vmatpush1.bf16.msra.mxu0 0
    %1390 = vmatprep.subr.bf16.mxu0 0
    %1391 = vmatpush1.bf16.msra.mxu0 0
    %1392 = vmatprep.subr.bf16.mxu0 0
    %1393 = vmatpush1.bf16.msra.mxu0 0
    %1394 = vmatprep.subr.bf16.mxu0 0
    %1395 = vmatpush1.bf16.msra.mxu0 0
    %1396 = vmatprep.subr.bf16.mxu0 0
    %1397 = vmatpush1.bf16.msra.mxu0 0
    %1398 = vmatprep.subr.bf16.mxu0 0
    %1399 = vmatpush1.bf16.msra.mxu0 0
    %1400 = vmatprep.subr.bf16.mxu0 0
    %1401 = vmatpush1.bf16.msra.mxu0 0
    %1402 = vmatprep.subr.bf16.mxu0 0
    %1403 = vmatpush1.bf16.msra.mxu0 0
    %1404 = vmatprep.subr.bf16.mxu0 0
    %1405 = vmatpush1.bf16.msra.mxu0 0
    %1406 = vmatprep.subr.bf16.mxu0 0
    %1407 = vmatpush1.bf16.msra.mxu0 0
    %1408 = vmatprep.subr.bf16.mxu0 0
    %1409 = vmatpush1.bf16.msra.mxu0 0
    %1410 = vmatprep.subr.bf16.mxu0 0
    %1411 = vmatpush1.bf16.msra.mxu0 0
    %1412 = vmatprep.subr.bf16.mxu0 0
    %1413 = vmatpush1.bf16.msra.mxu0 0
    %1414 = vmatprep.subr.bf16.mxu0 0
    %1415 = vmatpush1.bf16.msra.mxu0 0
    %1416 = vmatprep.subr.bf16.mxu0 0
    %1417 = vmatpush1.bf16.msra.mxu0 0
    %1418 = vmatprep.mubr.bf16.mxu0 0
    %1419 = vmatmul.mubr.bf16.gmra.mrb[0].mxu0 %v1384
    %v1420 = vpop.f32.mrb[0].mxu0
    %v1421 = vadd.f32 0.0, %v1420
    %v1422 = vpop.f32.mrb[0].mxu0
    %v1423 = vpop.f32.mrb[0].mxu0
    %v1424 = vpop.f32.mrb[0].mxu0
    %1425 = vdwg.mxu0
    %v1426 = vadd.f32 %v1371, %v1421
    %s1427 = scalar_lea.vmem [#allocation11], 80
    %v1428 = vld [vmem:[%s1427] sm:$0xf]
    %v1429 = vld [vmem:[%s1427 + $0x4] sm:$0xf]
    %v1430 = vrot.slane %v887, 2
    %v1433 = vunpack.c.l.b16 %v1428
    %v1434 = vunpack.c.l.b16 %v1429
    %v1435 = vpack.c.b16 %v1434, %v1433
    %v1438 = vsel %vm606, %v1430, 0
    %1440 = vmatprep.subr.bf16.mxu0 0
    %1441 = vmatpush1.bf16.msra.mxu0 %v1435
    %1442 = vmatprep.subr.bf16.mxu0 0
    %1443 = vmatpush1.bf16.msra.mxu0 0
    %1444 = vmatprep.subr.bf16.mxu0 0
    %1445 = vmatpush1.bf16.msra.mxu0 0
    %1446 = vmatprep.subr.bf16.mxu0 0
    %1447 = vmatpush1.bf16.msra.mxu0 0
    %1448 = vmatprep.subr.bf16.mxu0 0
    %1449 = vmatpush1.bf16.msra.mxu0 0
    %1450 = vmatprep.subr.bf16.mxu0 0
    %1451 = vmatpush1.bf16.msra.mxu0 0
    %1452 = vmatprep.subr.bf16.mxu0 0
    %1453 = vmatpush1.bf16.msra.mxu0 0
    %1454 = vmatprep.subr.bf16.mxu0 0
    %1455 = vmatpush1.bf16.msra.mxu0 0
    %1456 = vmatprep.subr.bf16.mxu0 0
    %1457 = vmatpush1.bf16.msra.mxu0 0
    %1458 = vmatprep.subr.bf16.mxu0 0
    %1459 = vmatpush1.bf16.msra.mxu0 0
    %1460 = vmatprep.subr.bf16.mxu0 0
    %1461 = vmatpush1.bf16.msra.mxu0 0
    %1462 = vmatprep.subr.bf16.mxu0 0
    %1463 = vmatpush1.bf16.msra.mxu0 0
    %1464 = vmatprep.subr.bf16.mxu0 0
    %1465 = vmatpush1.bf16.msra.mxu0 0
    %1466 = vmatprep.subr.bf16.mxu0 0
    %1467 = vmatpush1.bf16.msra.mxu0 0
    %1468 = vmatprep.subr.bf16.mxu0 0
    %1469 = vmatpush1.bf16.msra.mxu0 0
    %1470 = vmatprep.subr.bf16.mxu0 0
    %1471 = vmatpush1.bf16.msra.mxu0 0
    %1472 = vmatprep.mubr.bf16.mxu0 0
    %1473 = vmatmul.mubr.bf16.gmra.mrb[0].mxu0 %v1438
    %v1474 = vpop.f32.mrb[0].mxu0
    %v1475 = vadd.f32 0.0, %v1474
    %v1476 = vpop.f32.mrb[0].mxu0
    %v1477 = vpop.f32.mrb[0].mxu0
    %v1478 = vpop.f32.mrb[0].mxu0
    %1479 = vdwg.mxu0
    %v1480 = vadd.f32 %v1426, %v1475
    %s1481 = scalar_lea.vmem [#allocation11], 88
    %v1482 = vld [vmem:[%s1481] sm:$0xf]
    %v1483 = vld [vmem:[%s1481 + $0x4] sm:$0xf]
    %v1484 = vrot.slane %v887, 3
    %v1487 = vunpack.c.l.b16 %v1482
    %v1488 = vunpack.c.l.b16 %v1483
    %v1489 = vpack.c.b16 %v1488, %v1487
    %v1492 = vsel %vm606, %v1484, 0
    %1494 = vmatprep.subr.bf16.mxu0 0
    %1495 = vmatpush1.bf16.msra.mxu0 %v1489
    %1496 = vmatprep.subr.bf16.mxu0 0
    %1497 = vmatpush1.bf16.msra.mxu0 0
    %1498 = vmatprep.subr.bf16.mxu0 0
    %1499 = vmatpush1.bf16.msra.mxu0 0
    %1500 = vmatprep.subr.bf16.mxu0 0
    %1501 = vmatpush1.bf16.msra.mxu0 0
    %1502 = vmatprep.subr.bf16.mxu0 0
    %1503 = vmatpush1.bf16.msra.mxu0 0
    %1504 = vmatprep.subr.bf16.mxu0 0
    %1505 = vmatpush1.bf16.msra.mxu0 0
    %1506 = vmatprep.subr.bf16.mxu0 0
    %1507 = vmatpush1.bf16.msra.mxu0 0
    %1508 = vmatprep.subr.bf16.mxu0 0
    %1509 = vmatpush1.bf16.msra.mxu0 0
    %1510 = vmatprep.subr.bf16.mxu0 0
    %1511 = vmatpush1.bf16.msra.mxu0 0
    %1512 = vmatprep.subr.bf16.mxu0 0
    %1513 = vmatpush1.bf16.msra.mxu0 0
    %1514 = vmatprep.subr.bf16.mxu0 0
    %1515 = vmatpush1.bf16.msra.mxu0 0
    %1516 = vmatprep.subr.bf16.mxu0 0
    %1517 = vmatpush1.bf16.msra.mxu0 0
    %1518 = vmatprep.subr.bf16.mxu0 0
    %1519 = vmatpush1.bf16.msra.mxu0 0
    %1520 = vmatprep.subr.bf16.mxu0 0
    %1521 = vmatpush1.bf16.msra.mxu0 0
    %1522 = vmatprep.subr.bf16.mxu0 0
    %1523 = vmatpush1.bf16.msra.mxu0 0
    %1524 = vmatprep.subr.bf16.mxu0 0
    %1525 = vmatpush1.bf16.msra.mxu0 0
    %1526 = vmatprep.mubr.bf16.mxu0 0
    %1527 = vmatmul.mubr.bf16.gmra.mrb[0].mxu0 %v1492
    %v1528 = vpop.f32.mrb[0].mxu0
    %v1529 = vadd.f32 0.0, %v1528
    %v1530 = vpop.f32.mrb[0].mxu0
    %v1531 = vpop.f32.mrb[0].mxu0
    %v1532 = vpop.f32.mrb[0].mxu0
    %1533 = vdwg.mxu0
    %v1534 = vadd.f32 %v1480, %v1529
    %s1535 = scalar_lea.vmem [#allocation11], 96
    %v1536 = vld [vmem:[%s1535] sm:$0xf]
    %v1537 = vld [vmem:[%s1535 + $0x4] sm:$0xf]
    %v1538 = vrot.slane %v887, 4
    %v1541 = vunpack.c.l.b16 %v1536
    %v1542 = vunpack.c.l.b16 %v1537
    %v1543 = vpack.c.b16 %v1542, %v1541
    %v1546 = vsel %vm606, %v1538, 0
    %1548 = vmatprep.subr.bf16.mxu0 0
    %1549 = vmatpush1.bf16.msra.mxu0 %v1543
    %1550 = vmatprep.subr.bf16.mxu0 0
    %1551 = vmatpush1.bf16.msra.mxu0 0
    %1552 = vmatprep.subr.bf16.mxu0 0
    %1553 = vmatpush1.bf16.msra.mxu0 0
    %1554 = vmatprep.subr.bf16.mxu0 0
    %1555 = vmatpush1.bf16.msra.mxu0 0
    %1556 = vmatprep.subr.bf16.mxu0 0
    %1557 = vmatpush1.bf16.msra.mxu0 0
    %1558 = vmatprep.subr.bf16.mxu0 0
    %1559 = vmatpush1.bf16.msra.mxu0 0
    %1560 = vmatprep.subr.bf16.mxu0 0
    %1561 = vmatpush1.bf16.msra.mxu0 0
    %1562 = vmatprep.subr.bf16.mxu0 0
    %1563 = vmatpush1.bf16.msra.mxu0 0
    %1564 = vmatprep.subr.bf16.mxu0 0
    %1565 = vmatpush1.bf16.msra.mxu0 0
    %1566 = vmatprep.subr.bf16.mxu0 0
    %1567 = vmatpush1.bf16.msra.mxu0 0
    %1568 = vmatprep.subr.bf16.mxu0 0
    %1569 = vmatpush1.bf16.msra.mxu0 0
    %1570 = vmatprep.subr.bf16.mxu0 0
    %1571 = vmatpush1.bf16.msra.mxu0 0
    %1572 = vmatprep.subr.bf16.mxu0 0
    %1573 = vmatpush1.bf16.msra.mxu0 0
    %1574 = vmatprep.subr.bf16.mxu0 0
    %1575 = vmatpush1.bf16.msra.mxu0 0
    %1576 = vmatprep.subr.bf16.mxu0 0
    %1577 = vmatpush1.bf16.msra.mxu0 0
    %1578 = vmatprep.subr.bf16.mxu0 0
    %1579 = vmatpush1.bf16.msra.mxu0 0
    %1580 = vmatprep.mubr.bf16.mxu0 0
    %1581 = vmatmul.mubr.bf16.gmra.mrb[0].mxu0 %v1546
    %v1582 = vpop.f32.mrb[0].mxu0
    %v1583 = vadd.f32 0.0, %v1582
    %v1584 = vpop.f32.mrb[0].mxu0
    %v1585 = vpop.f32.mrb[0].mxu0
    %v1586 = vpop.f32.mrb[0].mxu0
    %1587 = vdwg.mxu0
    %v1588 = vadd.f32 %v1534, %v1583
    %s1589 = scalar_lea.vmem [#allocation11], 104
    %v1590 = vld [vmem:[%s1589] sm:$0xf]
    %v1591 = vld [vmem:[%s1589 + $0x4] sm:$0xf]
    %v1592 = vrot.slane %v887, 5
    %v1595 = vunpack.c.l.b16 %v1590
    %v1596 = vunpack.c.l.b16 %v1591
    %v1597 = vpack.c.b16 %v1596, %v1595
    %v1600 = vsel %vm606, %v1592, 0
    %1602 = vmatprep.subr.bf16.mxu0 0
    %1603 = vmatpush1.bf16.msra.mxu0 %v1597
    %1604 = vmatprep.subr.bf16.mxu0 0
    %1605 = vmatpush1.bf16.msra.mxu0 0
    %1606 = vmatprep.subr.bf16.mxu0 0
    %1607 = vmatpush1.bf16.msra.mxu0 0
    %1608 = vmatprep.subr.bf16.mxu0 0
    %1609 = vmatpush1.bf16.msra.mxu0 0
    %1610 = vmatprep.subr.bf16.mxu0 0
    %1611 = vmatpush1.bf16.msra.mxu0 0
    %1612 = vmatprep.subr.bf16.mxu0 0
    %1613 = vmatpush1.bf16.msra.mxu0 0
    %1614 = vmatprep.subr.bf16.mxu0 0
    %1615 = vmatpush1.bf16.msra.mxu0 0
    %1616 = vmatprep.subr.bf16.mxu0 0
    %1617 = vmatpush1.bf16.msra.mxu0 0
    %1618 = vmatprep.subr.bf16.mxu0 0
    %1619 = vmatpush1.bf16.msra.mxu0 0
    %1620 = vmatprep.subr.bf16.mxu0 0
    %1621 = vmatpush1.bf16.msra.mxu0 0
    %1622 = vmatprep.subr.bf16.mxu0 0
    %1623 = vmatpush1.bf16.msra.mxu0 0
    %1624 = vmatprep.subr.bf16.mxu0 0
    %1625 = vmatpush1.bf16.msra.mxu0 0
    %1626 = vmatprep.subr.bf16.mxu0 0
    %1627 = vmatpush1.bf16.msra.mxu0 0
    %1628 = vmatprep.subr.bf16.mxu0 0
    %1629 = vmatpush1.bf16.msra.mxu0 0
    %1630 = vmatprep.subr.bf16.mxu0 0
    %1631 = vmatpush1.bf16.msra.mxu0 0
    %1632 = vmatprep.subr.bf16.mxu0 0
    %1633 = vmatpush1.bf16.msra.mxu0 0
    %1634 = vmatprep.mubr.bf16.mxu0 0
    %1635 = vmatmul.mubr.bf16.gmra.mrb[0].mxu0 %v1600
    %v1636 = vpop.f32.mrb[0].mxu0
    %v1637 = vadd.f32 0.0, %v1636
    %v1638 = vpop.f32.mrb[0].mxu0
    %v1639 = vpop.f32.mrb[0].mxu0
    %v1640 = vpop.f32.mrb[0].mxu0
    %1641 = vdwg.mxu0
    %v1642 = vadd.f32 %v1588, %v1637
    %s1643 = scalar_lea.vmem [#allocation11], 112
    %v1644 = vld [vmem:[%s1643] sm:$0xf]
    %v1645 = vld [vmem:[%s1643 + $0x4] sm:$0xf]
    %v1646 = vrot.slane %v887, 6
    %v1649 = vunpack.c.l.b16 %v1644
    %v1650 = vunpack.c.l.b16 %v1645
    %v1651 = vpack.c.b16 %v1650, %v1649
    %v1654 = vsel %vm606, %v1646, 0
    %1656 = vmatprep.subr.bf16.mxu0 0
    %1657 = vmatpush1.bf16.msra.mxu0 %v1651
    %1658 = vmatprep.subr.bf16.mxu0 0
    %1659 = vmatpush1.bf16.msra.mxu0 0
    %1660 = vmatprep.subr.bf16.mxu0 0
    %1661 = vmatpush1.bf16.msra.mxu0 0
    %1662 = vmatprep.subr.bf16.mxu0 0
    %1663 = vmatpush1.bf16.msra.mxu0 0
    %1664 = vmatprep.subr.bf16.mxu0 0
    %1665 = vmatpush1.bf16.msra.mxu0 0
    %1666 = vmatprep.subr.bf16.mxu0 0
    %1667 = vmatpush1.bf16.msra.mxu0 0
    %1668 = vmatprep.subr.bf16.mxu0 0
    %1669 = vmatpush1.bf16.msra.mxu0 0
    %1670 = vmatprep.subr.bf16.mxu0 0
    %1671 = vmatpush1.bf16.msra.mxu0 0
    %1672 = vmatprep.subr.bf16.mxu0 0
    %1673 = vmatpush1.bf16.msra.mxu0 0
    %1674 = vmatprep.subr.bf16.mxu0 0
    %1675 = vmatpush1.bf16.msra.mxu0 0
    %1676 = vmatprep.subr.bf16.mxu0 0
    %1677 = vmatpush1.bf16.msra.mxu0 0
    %1678 = vmatprep.subr.bf16.mxu0 0
    %1679 = vmatpush1.bf16.msra.mxu0 0
    %1680 = vmatprep.subr.bf16.mxu0 0
    %1681 = vmatpush1.bf16.msra.mxu0 0
    %1682 = vmatprep.subr.bf16.mxu0 0
    %1683 = vmatpush1.bf16.msra.mxu0 0
    %1684 = vmatprep.subr.bf16.mxu0 0
    %1685 = vmatpush1.bf16.msra.mxu0 0
    %1686 = vmatprep.subr.bf16.mxu0 0
    %1687 = vmatpush1.bf16.msra.mxu0 0
    %1688 = vmatprep.mubr.bf16.mxu0 0
    %1689 = vmatmul.mubr.bf16.gmra.mrb[0].mxu0 %v1654
    %v1690 = vpop.f32.mrb[0].mxu0
    %v1691 = vadd.f32 0.0, %v1690
    %v1692 = vpop.f32.mrb[0].mxu0
    %v1693 = vpop.f32.mrb[0].mxu0
    %v1694 = vpop.f32.mrb[0].mxu0
    %1695 = vdwg.mxu0
    %v1696 = vadd.f32 %v1642, %v1691
    %s1697 = scalar_lea.vmem [#allocation11], 120
    %v1698 = vld [vmem:[%s1697] sm:$0xf]
    %v1699 = vld [vmem:[%s1697 + $0x4] sm:$0xf]
    %v1700 = vrot.slane %v887, 7
    %v1703 = vunpack.c.l.b16 %v1698
    %v1704 = vunpack.c.l.b16 %v1699
    %v1705 = vpack.c.b16 %v1704, %v1703
    %v1708 = vsel %vm606, %v1700, 0
    %1710 = vmatprep.subr.bf16.mxu0 0
    %1711 = vmatpush1.bf16.msra.mxu0 %v1705
    %1712 = vmatprep.subr.bf16.mxu0 0
    %1713 = vmatpush1.bf16.msra.mxu0 0
    %1714 = vmatprep.subr.bf16.mxu0 0
    %1715 = vmatpush1.bf16.msra.mxu0 0
    %1716 = vmatprep.subr.bf16.mxu0 0
    %1717 = vmatpush1.bf16.msra.mxu0 0
    %1718 = vmatprep.subr.bf16.mxu0 0
    %1719 = vmatpush1.bf16.msra.mxu0 0
    %1720 = vmatprep.subr.bf16.mxu0 0
    %1721 = vmatpush1.bf16.msra.mxu0 0
    %1722 = vmatprep.subr.bf16.mxu0 0
    %1723 = vmatpush1.bf16.msra.mxu0 0
    %1724 = vmatprep.subr.bf16.mxu0 0
    %1725 = vmatpush1.bf16.msra.mxu0 0
    %1726 = vmatprep.subr.bf16.mxu0 0
    %1727 = vmatpush1.bf16.msra.mxu0 0
    %1728 = vmatprep.subr.bf16.mxu0 0
    %1729 = vmatpush1.bf16.msra.mxu0 0
    %1730 = vmatprep.subr.bf16.mxu0 0
    %1731 = vmatpush1.bf16.msra.mxu0 0
    %1732 = vmatprep.subr.bf16.mxu0 0
    %1733 = vmatpush1.bf16.msra.mxu0 0
    %1734 = vmatprep.subr.bf16.mxu0 0
    %1735 = vmatpush1.bf16.msra.mxu0 0
    %1736 = vmatprep.subr.bf16.mxu0 0
    %1737 = vmatpush1.bf16.msra.mxu0 0
    %1738 = vmatprep.subr.bf16.mxu0 0
    %1739 = vmatpush1.bf16.msra.mxu0 0
    %1740 = vmatprep.subr.bf16.mxu0 0
    %1741 = vmatpush1.bf16.msra.mxu0 0
    %1742 = vmatprep.mubr.bf16.mxu0 0
    %1743 = vmatmul.mubr.bf16.gmra.mrb[0].mxu0 %v1708
    %v1744 = vpop.f32.mrb[0].mxu0
    %v1745 = vadd.f32 0.0, %v1744
    %v1746 = vpop.f32.mrb[0].mxu0
    %v1747 = vpop.f32.mrb[0].mxu0
    %v1748 = vpop.f32.mrb[0].mxu0
    %1749 = vdwg.mxu0
    %v1750 = vadd.f32 %v1696, %v1745
    %s1751 = scalar_lea.vmem [#allocation11], 128
    %v1752 = vld [vmem:[%s1751] sm:$0xf]
    %v1753 = vld [vmem:[%s1751 + $0x4] sm:$0xf]
    %v1756 = vunpack.c.l.b16 %v1752
    %v1757 = vunpack.c.l.b16 %v1753
    %v1758 = vpack.c.b16 %v1757, %v1756
    %v1761 = vsel %vm606, %v888, 0
    %1763 = vmatprep.subr.bf16.mxu0 0
    %1764 = vmatpush1.bf16.msra.mxu0 %v1758
    %1765 = vmatprep.subr.bf16.mxu0 0
    %1766 = vmatpush1.bf16.msra.mxu0 0
    %1767 = vmatprep.subr.bf16.mxu0 0
    %1768 = vmatpush1.bf16.msra.mxu0 0
    %1769 = vmatprep.subr.bf16.mxu0 0
    %1770 = vmatpush1.bf16.msra.mxu0 0
    %1771 = vmatprep.subr.bf16.mxu0 0
    %1772 = vmatpush1.bf16.msra.mxu0 0
    %1773 = vmatprep.subr.bf16.mxu0 0
    %1774 = vmatpush1.bf16.msra.mxu0 0
    %1775 = vmatprep.subr.bf16.mxu0 0
    %1776 = vmatpush1.bf16.msra.mxu0 0
    %1777 = vmatprep.subr.bf16.mxu0 0
    %1778 = vmatpush1.bf16.msra.mxu0 0
    %1779 = vmatprep.subr.bf16.mxu0 0
    %1780 = vmatpush1.bf16.msra.mxu0 0
    %1781 = vmatprep.subr.bf16.mxu0 0
    %1782 = vmatpush1.bf16.msra.mxu0 0
    %1783 = vmatprep.subr.bf16.mxu0 0
    %1784 = vmatpush1.bf16.msra.mxu0 0
    %1785 = vmatprep.subr.bf16.mxu0 0
    %1786 = vmatpush1.bf16.msra.mxu0 0
    %1787 = vmatprep.subr.bf16.mxu0 0
    %1788 = vmatpush1.bf16.msra.mxu0 0
    %1789 = vmatprep.subr.bf16.mxu0 0
    %1790 = vmatpush1.bf16.msra.mxu0 0
    %1791 = vmatprep.subr.bf16.mxu0 0
    %1792 = vmatpush1.bf16.msra.mxu0 0
    %1793 = vmatprep.subr.bf16.mxu0 0
    %1794 = vmatpush1.bf16.msra.mxu0 0
    %1795 = vmatprep.mubr.bf16.mxu0 0
    %1796 = vmatmul.mubr.bf16.gmra.mrb[0].mxu0 %v1761
    %v1797 = vpop.f32.mrb[0].mxu0
    %v1798 = vadd.f32 0.0, %v1797
    %v1799 = vpop.f32.mrb[0].mxu0
    %v1800 = vpop.f32.mrb[0].mxu0
    %v1801 = vpop.f32.mrb[0].mxu0
    %1802 = vdwg.mxu0
    %v1803 = vadd.f32 %v1750, %v1798
    %s1804 = scalar_lea.vmem [#allocation11], 136
    %v1805 = vld [vmem:[%s1804] sm:$0xf]
    %v1806 = vld [vmem:[%s1804 + $0x4] sm:$0xf]
    %v1808 = vrot.slane %v888, 1
    %v1811 = vunpack.c.l.b16 %v1805
    %v1812 = vunpack.c.l.b16 %v1806
    %v1813 = vpack.c.b16 %v1812, %v1811
    %v1816 = vsel %vm606, %v1808, 0
    %1818 = vmatprep.subr.bf16.mxu0 0
    %1819 = vmatpush1.bf16.msra.mxu0 %v1813
    %1820 = vmatprep.subr.bf16.mxu0 0
    %1821 = vmatpush1.bf16.msra.mxu0 0
    %1822 = vmatprep.subr.bf16.mxu0 0
    %1823 = vmatpush1.bf16.msra.mxu0 0
    %1824 = vmatprep.subr.bf16.mxu0 0
    %1825 = vmatpush1.bf16.msra.mxu0 0
    %1826 = vmatprep.subr.bf16.mxu0 0
    %1827 = vmatpush1.bf16.msra.mxu0 0
    %1828 = vmatprep.subr.bf16.mxu0 0
    %1829 = vmatpush1.bf16.msra.mxu0 0
    %1830 = vmatprep.subr.bf16.mxu0 0
    %1831 = vmatpush1.bf16.msra.mxu0 0
    %1832 = vmatprep.subr.bf16.mxu0 0
    %1833 = vmatpush1.bf16.msra.mxu0 0
    %1834 = vmatprep.subr.bf16.mxu0 0
    %1835 = vmatpush1.bf16.msra.mxu0 0
    %1836 = vmatprep.subr.bf16.mxu0 0
    %1837 = vmatpush1.bf16.msra.mxu0 0
    %1838 = vmatprep.subr.bf16.mxu0 0
    %1839 = vmatpush1.bf16.msra.mxu0 0
    %1840 = vmatprep.subr.bf16.mxu0 0
    %1841 = vmatpush1.bf16.msra.mxu0 0
    %1842 = vmatprep.subr.bf16.mxu0 0
    %1843 = vmatpush1.bf16.msra.mxu0 0
    %1844 = vmatprep.subr.bf16.mxu0 0
    %1845 = vmatpush1.bf16.msra.mxu0 0
    %1846 = vmatprep.subr.bf16.mxu0 0
    %1847 = vmatpush1.bf16.msra.mxu0 0
    %1848 = vmatprep.subr.bf16.mxu0 0
    %1849 = vmatpush1.bf16.msra.mxu0 0
    %1850 = vmatprep.mubr.bf16.mxu0 0
    %1851 = vmatmul.mubr.bf16.gmra.mrb[0].mxu0 %v1816
    %v1852 = vpop.f32.mrb[0].mxu0
    %v1853 = vadd.f32 0.0, %v1852
    %v1854 = vpop.f32.mrb[0].mxu0
    %v1855 = vpop.f32.mrb[0].mxu0
    %v1856 = vpop.f32.mrb[0].mxu0
    %1857 = vdwg.mxu0
    %v1858 = vadd.f32 %v1803, %v1853
    %s1859 = scalar_lea.vmem [#allocation11], 144
    %v1860 = vld [vmem:[%s1859] sm:$0xf]
    %v1861 = vld [vmem:[%s1859 + $0x4] sm:$0xf]
    %v1862 = vrot.slane %v888, 2
    %v1865 = vunpack.c.l.b16 %v1860
    %v1866 = vunpack.c.l.b16 %v1861
    %v1867 = vpack.c.b16 %v1866, %v1865
    %v1870 = vsel %vm606, %v1862, 0
    %1872 = vmatprep.subr.bf16.mxu0 0
    %1873 = vmatpush1.bf16.msra.mxu0 %v1867
    %1874 = vmatprep.subr.bf16.mxu0 0
    %1875 = vmatpush1.bf16.msra.mxu0 0
    %1876 = vmatprep.subr.bf16.mxu0 0
    %1877 = vmatpush1.bf16.msra.mxu0 0
    %1878 = vmatprep.subr.bf16.mxu0 0
    %1879 = vmatpush1.bf16.msra.mxu0 0
    %1880 = vmatprep.subr.bf16.mxu0 0
    %1881 = vmatpush1.bf16.msra.mxu0 0
    %1882 = vmatprep.subr.bf16.mxu0 0
    %1883 = vmatpush1.bf16.msra.mxu0 0
    %1884 = vmatprep.subr.bf16.mxu0 0
    %1885 = vmatpush1.bf16.msra.mxu0 0
    %1886 = vmatprep.subr.bf16.mxu0 0
    %1887 = vmatpush1.bf16.msra.mxu0 0
    %1888 = vmatprep.subr.bf16.mxu0 0
    %1889 = vmatpush1.bf16.msra.mxu0 0
    %1890 = vmatprep.subr.bf16.mxu0 0
    %1891 = vmatpush1.bf16.msra.mxu0 0
    %1892 = vmatprep.subr.bf16.mxu0 0
    %1893 = vmatpush1.bf16.msra.mxu0 0
    %1894 = vmatprep.subr.bf16.mxu0 0
    %1895 = vmatpush1.bf16.msra.mxu0 0
    %1896 = vmatprep.subr.bf16.mxu0 0
    %1897 = vmatpush1.bf16.msra.mxu0 0
    %1898 = vmatprep.subr.bf16.mxu0 0
    %1899 = vmatpush1.bf16.msra.mxu0 0
    %1900 = vmatprep.subr.bf16.mxu0 0
    %1901 = vmatpush1.bf16.msra.mxu0 0
    %1902 = vmatprep.subr.bf16.mxu0 0
    %1903 = vmatpush1.bf16.msra.mxu0 0
    %1904 = vmatprep.mubr.bf16.mxu0 0
    %1905 = vmatmul.mubr.bf16.gmra.mrb[0].mxu0 %v1870
    %v1906 = vpop.f32.mrb[0].mxu0
    %v1907 = vadd.f32 0.0, %v1906
    %v1908 = vpop.f32.mrb[0].mxu0
    %v1909 = vpop.f32.mrb[0].mxu0
    %v1910 = vpop.f32.mrb[0].mxu0
    %1911 = vdwg.mxu0
    %v1912 = vadd.f32 %v1858, %v1907
    %s1913 = scalar_lea.vmem [#allocation11], 152
    %v1914 = vld [vmem:[%s1913] sm:$0xf]
    %v1915 = vld [vmem:[%s1913 + $0x4] sm:$0xf]
    %v1916 = vrot.slane %v888, 3
    %v1919 = vunpack.c.l.b16 %v1914
    %v1920 = vunpack.c.l.b16 %v1915
    %v1921 = vpack.c.b16 %v1920, %v1919
    %v1924 = vsel %vm606, %v1916, 0
    %1926 = vmatprep.subr.bf16.mxu0 0
    %1927 = vmatpush1.bf16.msra.mxu0 %v1921
    %1928 = vmatprep.subr.bf16.mxu0 0
    %1929 = vmatpush1.bf16.msra.mxu0 0
    %1930 = vmatprep.subr.bf16.mxu0 0
    %1931 = vmatpush1.bf16.msra.mxu0 0
    %1932 = vmatprep.subr.bf16.mxu0 0
    %1933 = vmatpush1.bf16.msra.mxu0 0
    %1934 = vmatprep.subr.bf16.mxu0 0
    %1935 = vmatpush1.bf16.msra.mxu0 0
    %1936 = vmatprep.subr.bf16.mxu0 0
    %1937 = vmatpush1.bf16.msra.mxu0 0
    %1938 = vmatprep.subr.bf16.mxu0 0
    %1939 = vmatpush1.bf16.msra.mxu0 0
    %1940 = vmatprep.subr.bf16.mxu0 0
    %1941 = vmatpush1.bf16.msra.mxu0 0
    %1942 = vmatprep.subr.bf16.mxu0 0
    %1943 = vmatpush1.bf16.msra.mxu0 0
    %1944 = vmatprep.subr.bf16.mxu0 0
    %1945 = vmatpush1.bf16.msra.mxu0 0
    %1946 = vmatprep.subr.bf16.mxu0 0
    %1947 = vmatpush1.bf16.msra.mxu0 0
    %1948 = vmatprep.subr.bf16.mxu0 0
    %1949 = vmatpush1.bf16.msra.mxu0 0
    %1950 = vmatprep.subr.bf16.mxu0 0
    %1951 = vmatpush1.bf16.msra.mxu0 0
    %1952 = vmatprep.subr.bf16.mxu0 0
    %1953 = vmatpush1.bf16.msra.mxu0 0
    %1954 = vmatprep.subr.bf16.mxu0 0
    %1955 = vmatpush1.bf16.msra.mxu0 0
    %1956 = vmatprep.subr.bf16.mxu0 0
    %1957 = vmatpush1.bf16.msra.mxu0 0
    %1958 = vmatprep.mubr.bf16.mxu0 0
    %1959 = vmatmul.mubr.bf16.gmra.mrb[0].mxu0 %v1924
    %v1960 = vpop.f32.mrb[0].mxu0
    %v1961 = vadd.f32 0.0, %v1960
    %v1962 = vpop.f32.mrb[0].mxu0
    %v1963 = vpop.f32.mrb[0].mxu0
    %v1964 = vpop.f32.mrb[0].mxu0
    %1965 = vdwg.mxu0
    %v1966 = vadd.f32 %v1912, %v1961
    %s1967 = scalar_lea.vmem [#allocation11], 160
    %v1968 = vld [vmem:[%s1967] sm:$0xf]
    %v1969 = vld [vmem:[%s1967 + $0x4] sm:$0xf]
    %v1970 = vrot.slane %v888, 4
    %v1973 = vunpack.c.l.b16 %v1968
    %v1974 = vunpack.c.l.b16 %v1969
    %v1975 = vpack.c.b16 %v1974, %v1973
    %v1978 = vsel %vm606, %v1970, 0
    %1980 = vmatprep.subr.bf16.mxu0 0
    %1981 = vmatpush1.bf16.msra.mxu0 %v1975
    %1982 = vmatprep.subr.bf16.mxu0 0
    %1983 = vmatpush1.bf16.msra.mxu0 0
    %1984 = vmatprep.subr.bf16.mxu0 0
    %1985 = vmatpush1.bf16.msra.mxu0 0
    %1986 = vmatprep.subr.bf16.mxu0 0
    %1987 = vmatpush1.bf16.msra.mxu0 0
    %1988 = vmatprep.subr.bf16.mxu0 0
    %1989 = vmatpush1.bf16.msra.mxu0 0
    %1990 = vmatprep.subr.bf16.mxu0 0
    %1991 = vmatpush1.bf16.msra.mxu0 0
    %1992 = vmatprep.subr.bf16.mxu0 0
    %1993 = vmatpush1.bf16.msra.mxu0 0
    %1994 = vmatprep.subr.bf16.mxu0 0
    %1995 = vmatpush1.bf16.msra.mxu0 0
    %1996 = vmatprep.subr.bf16.mxu0 0
    %1997 = vmatpush1.bf16.msra.mxu0 0
    %1998 = vmatprep.subr.bf16.mxu0 0
    %1999 = vmatpush1.bf16.msra.mxu0 0
    %2000 = vmatprep.subr.bf16.mxu0 0
    %2001 = vmatpush1.bf16.msra.mxu0 0
    %2002 = vmatprep.subr.bf16.mxu0 0
    %2003 = vmatpush1.bf16.msra.mxu0 0
    %2004 = vmatprep.subr.bf16.mxu0 0
    %2005 = vmatpush1.bf16.msra.mxu0 0
    %2006 = vmatprep.subr.bf16.mxu0 0
    %2007 = vmatpush1.bf16.msra.mxu0 0
    %2008 = vmatprep.subr.bf16.mxu0 0
    %2009 = vmatpush1.bf16.msra.mxu0 0
    %2010 = vmatprep.subr.bf16.mxu0 0
    %2011 = vmatpush1.bf16.msra.mxu0 0
    %2012 = vmatprep.mubr.bf16.mxu0 0
    %2013 = vmatmul.mubr.bf16.gmra.mrb[0].mxu0 %v1978
    %v2014 = vpop.f32.mrb[0].mxu0
    %v2015 = vadd.f32 0.0, %v2014
    %v2016 = vpop.f32.mrb[0].mxu0
    %v2017 = vpop.f32.mrb[0].mxu0
    %v2018 = vpop.f32.mrb[0].mxu0
    %2019 = vdwg.mxu0
    %v2020 = vadd.f32 %v1966, %v2015
    %s2021 = scalar_lea.vmem [#allocation11], 168
    %v2022 = vld [vmem:[%s2021] sm:$0xf]
    %v2023 = vld [vmem:[%s2021 + $0x4] sm:$0xf]
    %v2024 = vrot.slane %v888, 5
    %v2027 = vunpack.c.l.b16 %v2022
    %v2028 = vunpack.c.l.b16 %v2023
    %v2029 = vpack.c.b16 %v2028, %v2027
    %v2032 = vsel %vm606, %v2024, 0
    %2034 = vmatprep.subr.bf16.mxu0 0
    %2035 = vmatpush1.bf16.msra.mxu0 %v2029
    %2036 = vmatprep.subr.bf16.mxu0 0
    %2037 = vmatpush1.bf16.msra.mxu0 0
    %2038 = vmatprep.subr.bf16.mxu0 0
    %2039 = vmatpush1.bf16.msra.mxu0 0
    %2040 = vmatprep.subr.bf16.mxu0 0
    %2041 = vmatpush1.bf16.msra.mxu0 0
    %2042 = vmatprep.subr.bf16.mxu0 0
    %2043 = vmatpush1.bf16.msra.mxu0 0
    %2044 = vmatprep.subr.bf16.mxu0 0
    %2045 = vmatpush1.bf16.msra.mxu0 0
    %2046 = vmatprep.subr.bf16.mxu0 0
    %2047 = vmatpush1.bf16.msra.mxu0 0
    %2048 = vmatprep.subr.bf16.mxu0 0
    %2049 = vmatpush1.bf16.msra.mxu0 0
    %2050 = vmatprep.subr.bf16.mxu0 0
    %2051 = vmatpush1.bf16.msra.mxu0 0
    %2052 = vmatprep.subr.bf16.mxu0 0
    %2053 = vmatpush1.bf16.msra.mxu0 0
    %2054 = vmatprep.subr.bf16.mxu0 0
    %2055 = vmatpush1.bf16.msra.mxu0 0
    %2056 = vmatprep.subr.bf16.mxu0 0
    %2057 = vmatpush1.bf16.msra.mxu0 0
    %2058 = vmatprep.subr.bf16.mxu0 0
    %2059 = vmatpush1.bf16.msra.mxu0 0
    %2060 = vmatprep.subr.bf16.mxu0 0
    %2061 = vmatpush1.bf16.msra.mxu0 0
    %2062 = vmatprep.subr.bf16.mxu0 0
    %2063 = vmatpush1.bf16.msra.mxu0 0
    %2064 = vmatprep.subr.bf16.mxu0 0
    %2065 = vmatpush1.bf16.msra.mxu0 0
    %2066 = vmatprep.mubr.bf16.mxu0 0
    %2067 = vmatmul.mubr.bf16.gmra.mrb[0].mxu0 %v2032
    %v2068 = vpop.f32.mrb[0].mxu0
    %v2069 = vadd.f32 0.0, %v2068
    %v2070 = vpop.f32.mrb[0].mxu0
    %v2071 = vpop.f32.mrb[0].mxu0
    %v2072 = vpop.f32.mrb[0].mxu0
    %2073 = vdwg.mxu0
    %v2074 = vadd.f32 %v2020, %v2069
    %s2075 = scalar_lea.vmem [#allocation11], 176
    %v2076 = vld [vmem:[%s2075] sm:$0xf]
    %v2077 = vld [vmem:[%s2075 + $0x4] sm:$0xf]
    %v2078 = vrot.slane %v888, 6
    %v2081 = vunpack.c.l.b16 %v2076
    %v2082 = vunpack.c.l.b16 %v2077
    %v2083 = vpack.c.b16 %v2082, %v2081
    %v2086 = vsel %vm606, %v2078, 0
    %2088 = vmatprep.subr.bf16.mxu0 0
    %2089 = vmatpush1.bf16.msra.mxu0 %v2083
    %2090 = vmatprep.subr.bf16.mxu0 0
    %2091 = vmatpush1.bf16.msra.mxu0 0
    %2092 = vmatprep.subr.bf16.mxu0 0
    %2093 = vmatpush1.bf16.msra.mxu0 0
    %2094 = vmatprep.subr.bf16.mxu0 0
    %2095 = vmatpush1.bf16.msra.mxu0 0
    %2096 = vmatprep.subr.bf16.mxu0 0
    %2097 = vmatpush1.bf16.msra.mxu0 0
    %2098 = vmatprep.subr.bf16.mxu0 0
    %2099 = vmatpush1.bf16.msra.mxu0 0
    %2100 = vmatprep.subr.bf16.mxu0 0
    %2101 = vmatpush1.bf16.msra.mxu0 0
    %2102 = vmatprep.subr.bf16.mxu0 0
    %2103 = vmatpush1.bf16.msra.mxu0 0
    %2104 = vmatprep.subr.bf16.mxu0 0
    %2105 = vmatpush1.bf16.msra.mxu0 0
    %2106 = vmatprep.subr.bf16.mxu0 0
    %2107 = vmatpush1.bf16.msra.mxu0 0
    %2108 = vmatprep.subr.bf16.mxu0 0
    %2109 = vmatpush1.bf16.msra.mxu0 0
    %2110 = vmatprep.subr.bf16.mxu0 0
    %2111 = vmatpush1.bf16.msra.mxu0 0
    %2112 = vmatprep.subr.bf16.mxu0 0
    %2113 = vmatpush1.bf16.msra.mxu0 0
    %2114 = vmatprep.subr.bf16.mxu0 0
    %2115 = vmatpush1.bf16.msra.mxu0 0
    %2116 = vmatprep.subr.bf16.mxu0 0
    %2117 = vmatpush1.bf16.msra.mxu0 0
    %2118 = vmatprep.subr.bf16.mxu0 0
    %2119 = vmatpush1.bf16.msra.mxu0 0
    %2120 = vmatprep.mubr.bf16.mxu0 0
    %2121 = vmatmul.mubr.bf16.gmra.mrb[0].mxu0 %v2086
    %v2122 = vpop.f32.mrb[0].mxu0
    %v2123 = vadd.f32 0.0, %v2122
    %v2124 = vpop.f32.mrb[0].mxu0
    %v2125 = vpop.f32.mrb[0].mxu0
    %v2126 = vpop.f32.mrb[0].mxu0
    %2127 = vdwg.mxu0
    %v2128 = vadd.f32 %v2074, %v2123
    %s2129 = scalar_lea.vmem [#allocation11], 184
    %v2130 = vld [vmem:[%s2129] sm:$0xf]
    %v2131 = vld [vmem:[%s2129 + $0x4] sm:$0xf]
    %v2132 = vrot.slane %v888, 7
    %v2135 = vunpack.c.l.b16 %v2130
    %v2136 = vunpack.c.l.b16 %v2131
    %v2137 = vpack.c.b16 %v2136, %v2135
    %v2140 = vsel %vm606, %v2132, 0
    %2142 = vmatprep.subr.bf16.mxu0 0
    %2143 = vmatpush1.bf16.msra.mxu0 %v2137
    %2144 = vmatprep.subr.bf16.mxu0 0
    %2145 = vmatpush1.bf16.msra.mxu0 0
    %2146 = vmatprep.subr.bf16.mxu0 0
    %2147 = vmatpush1.bf16.msra.mxu0 0
    %2148 = vmatprep.subr.bf16.mxu0 0
    %2149 = vmatpush1.bf16.msra.mxu0 0
    %2150 = vmatprep.subr.bf16.mxu0 0
    %2151 = vmatpush1.bf16.msra.mxu0 0
    %2152 = vmatprep.subr.bf16.mxu0 0
    %2153 = vmatpush1.bf16.msra.mxu0 0
    %2154 = vmatprep.subr.bf16.mxu0 0
    %2155 = vmatpush1.bf16.msra.mxu0 0
    %2156 = vmatprep.subr.bf16.mxu0 0
    %2157 = vmatpush1.bf16.msra.mxu0 0
    %2158 = vmatprep.subr.bf16.mxu0 0
    %2159 = vmatpush1.bf16.msra.mxu0 0
    %2160 = vmatprep.subr.bf16.mxu0 0
    %2161 = vmatpush1.bf16.msra.mxu0 0
    %2162 = vmatprep.subr.bf16.mxu0 0
    %2163 = vmatpush1.bf16.msra.mxu0 0
    %2164 = vmatprep.subr.bf16.mxu0 0
    %2165 = vmatpush1.bf16.msra.mxu0 0
    %2166 = vmatprep.subr.bf16.mxu0 0
    %2167 = vmatpush1.bf16.msra.mxu0 0
    %2168 = vmatprep.subr.bf16.mxu0 0
    %2169 = vmatpush1.bf16.msra.mxu0 0
    %2170 = vmatprep.subr.bf16.mxu0 0
    %2171 = vmatpush1.bf16.msra.mxu0 0
    %2172 = vmatprep.subr.bf16.mxu0 0
    %2173 = vmatpush1.bf16.msra.mxu0 0
    %2174 = vmatprep.mubr.bf16.mxu0 0
    %2175 = vmatmul.mubr.bf16.gmra.mrb[0].mxu0 %v2140
    %v2176 = vpop.f32.mrb[0].mxu0
    %v2177 = vadd.f32 0.0, %v2176
    %v2178 = vpop.f32.mrb[0].mxu0
    %v2179 = vpop.f32.mrb[0].mxu0
    %v2180 = vpop.f32.mrb[0].mxu0
    %2181 = vdwg.mxu0
    %v2182 = vadd.f32 %v2128, %v2177
    %s2183 = scalar_lea.vmem [#allocation11], 192
    %v2184 = vld [vmem:[%s2183] sm:$0xf]
    %v2185 = vld [vmem:[%s2183 + $0x4] sm:$0xf]
    %v2188 = vunpack.c.l.b16 %v2184
    %v2189 = vunpack.c.l.b16 %v2185
    %v2190 = vpack.c.b16 %v2189, %v2188
    %v2193 = vsel %vm606, %v889, 0
    %2195 = vmatprep.subr.bf16.mxu0 0
    %2196 = vmatpush1.bf16.msra.mxu0 %v2190
    %2197 = vmatprep.subr.bf16.mxu0 0
    %2198 = vmatpush1.bf16.msra.mxu0 0
    %2199 = vmatprep.subr.bf16.mxu0 0
    %2200 = vmatpush1.bf16.msra.mxu0 0
    %2201 = vmatprep.subr.bf16.mxu0 0
    %2202 = vmatpush1.bf16.msra.mxu0 0
    %2203 = vmatprep.subr.bf16.mxu0 0
    %2204 = vmatpush1.bf16.msra.mxu0 0
    %2205 = vmatprep.subr.bf16.mxu0 0
    %2206 = vmatpush1.bf16.msra.mxu0 0
    %2207 = vmatprep.subr.bf16.mxu0 0
    %2208 = vmatpush1.bf16.msra.mxu0 0
    %2209 = vmatprep.subr.bf16.mxu0 0
    %2210 = vmatpush1.bf16.msra.mxu0 0
    %2211 = vmatprep.subr.bf16.mxu0 0
    %2212 = vmatpush1.bf16.msra.mxu0 0
    %2213 = vmatprep.subr.bf16.mxu0 0
    %2214 = vmatpush1.bf16.msra.mxu0 0
    %2215 = vmatprep.subr.bf16.mxu0 0
    %2216 = vmatpush1.bf16.msra.mxu0 0
    %2217 = vmatprep.subr.bf16.mxu0 0
    %2218 = vmatpush1.bf16.msra.mxu0 0
    %2219 = vmatprep.subr.bf16.mxu0 0
    %2220 = vmatpush1.bf16.msra.mxu0 0
    %2221 = vmatprep.subr.bf16.mxu0 0
    %2222 = vmatpush1.bf16.msra.mxu0 0
    %2223 = vmatprep.subr.bf16.mxu0 0
    %2224 = vmatpush1.bf16.msra.mxu0 0
    %2225 = vmatprep.subr.bf16.mxu0 0
    %2226 = vmatpush1.bf16.msra.mxu0 0
    %2227 = vmatprep.mubr.bf16.mxu0 0
    %2228 = vmatmul.mubr.bf16.gmra.mrb[0].mxu0 %v2193
    %v2229 = vpop.f32.mrb[0].mxu0
    %v2230 = vadd.f32 0.0, %v2229
    %v2231 = vpop.f32.mrb[0].mxu0
    %v2232 = vpop.f32.mrb[0].mxu0
    %v2233 = vpop.f32.mrb[0].mxu0
    %2234 = vdwg.mxu0
    %v2235 = vadd.f32 %v2182, %v2230
    %v2236 = vld [vmem:[#allocation13] sm:$0x1]
    %v2238 = vlaneseq
    %v2239 = vshrl.u32 %v2238, 7
    %v2240 = vsub.s32 0, %v2239
    %v2241 = vrot.slane %v2236, %v2240
    %v2243 = vadd.f32 %v2235, %v2241
    %v2244 = vmax.f32 %v2243, 0.0
    %v2245 = vpack.c.bf16 %v2244, %v2244
    %v2246 = vld [vmem:[#allocation14] sm:$0xf]
    %v2247 = vld [vmem:[#allocation14 + $0x4] sm:$0xf]
    %v2248 = vld [vmem:[#allocation14 + $0x8] sm:$0xf]
    %v2249 = vld [vmem:[#allocation14 + $0xc] sm:$0xf]
    %v2250 = vld [vmem:[#allocation14 + $0x10] sm:$0xf]
    %v2251 = vld [vmem:[#allocation14 + $0x14] sm:$0xf]
    %v2252 = vld [vmem:[#allocation14 + $0x18] sm:$0xf]
    %v2253 = vld [vmem:[#allocation14 + $0x1c] sm:$0xf]
    %v2254 = vld [vmem:[#allocation14 + $0x20] sm:$0xf]
    %v2255 = vld [vmem:[#allocation14 + $0x24] sm:$0xf]
    %v2256 = vld [vmem:[#allocation14 + $0x28] sm:$0xf]
    %v2257 = vld [vmem:[#allocation14 + $0x2c] sm:$0xf]
    %v2258 = vld [vmem:[#allocation14 + $0x30] sm:$0xf]
    %v2259 = vld [vmem:[#allocation14 + $0x34] sm:$0xf]
    %v2260 = vld [vmem:[#allocation14 + $0x38] sm:$0xf]
    %v2261 = vld [vmem:[#allocation16] sm:$0x1]
    %v2263 = vlaneseq
    %v2264 = vshrl.u32 %v2263, 7
    %v2265 = vsub.s32 0, %v2264
    %v2266 = vrot.slane %v2261, %v2265
    %v2283 = vunpack.c.l.b16 %v2246
    %v2284 = vunpack.c.l.b16 %v2247
    %v2285 = vunpack.c.l.b16 %v2248
    %v2286 = vunpack.c.l.b16 %v2249
    %v2287 = vunpack.c.l.b16 %v2250
    %v2288 = vunpack.c.l.b16 %v2251
    %v2289 = vunpack.c.l.b16 %v2252
    %v2290 = vunpack.c.l.b16 %v2253
    %v2291 = vunpack.c.l.b16 %v2254
    %v2292 = vunpack.c.l.b16 %v2255
    %v2293 = vunpack.c.l.b16 %v2256
    %v2294 = vunpack.c.l.b16 %v2257
    %v2295 = vunpack.c.l.b16 %v2258
    %v2296 = vunpack.c.l.b16 %v2259
    %v2297 = vunpack.c.l.b16 %v2260
    %v2298 = vpack.c.b16 %v2284, %v2283
    %v2299 = vpack.c.b16 %v2286, %v2285
    %v2300 = vpack.c.b16 %v2288, %v2287
    %v2301 = vpack.c.b16 %v2290, %v2289
    %v2302 = vpack.c.b16 %v2292, %v2291
    %v2303 = vpack.c.b16 %v2294, %v2293
    %v2304 = vpack.c.b16 %v2296, %v2295
    %v2305 = vpack.c.b16 %v2297, %v2297
    %vm2313 = vcmask 982016
    %v2315 = vsel %vm2313, %v2245, 0
    %v2318 = vsel %vm793, %v2305, 0
    %2320 = vmatprep.subr.bf16.mxu0 0
    %2321 = vmatpush1.bf16.msra.mxu0 %v2298
    %2322 = vmatprep.subr.bf16.mxu0 0
    %2323 = vmatpush1.bf16.msra.mxu0 %v2299
    %2324 = vmatprep.subr.bf16.mxu0 0
    %2325 = vmatpush1.bf16.msra.mxu0 %v2300
    %2326 = vmatprep.subr.bf16.mxu0 0
    %2327 = vmatpush1.bf16.msra.mxu0 %v2301
    %2328 = vmatprep.subr.bf16.mxu0 0
    %2329 = vmatpush1.bf16.msra.mxu0 %v2302
    %2330 = vmatprep.subr.bf16.mxu0 0
    %2331 = vmatpush1.bf16.msra.mxu0 %v2303
    %2332 = vmatprep.subr.bf16.mxu0 0
    %2333 = vmatpush1.bf16.msra.mxu0 %v2304
    %2334 = vmatprep.subr.bf16.mxu0 0
    %2335 = vmatpush1.bf16.msra.mxu0 %v2318
    %2336 = vmatprep.subr.bf16.mxu0 0
    %2337 = vmatpush1.bf16.msra.mxu0 0
    %2338 = vmatprep.subr.bf16.mxu0 0
    %2339 = vmatpush1.bf16.msra.mxu0 0
    %2340 = vmatprep.subr.bf16.mxu0 0
    %2341 = vmatpush1.bf16.msra.mxu0 0
    %2342 = vmatprep.subr.bf16.mxu0 0
    %2343 = vmatpush1.bf16.msra.mxu0 0
    %2344 = vmatprep.subr.bf16.mxu0 0
    %2345 = vmatpush1.bf16.msra.mxu0 0
    %2346 = vmatprep.subr.bf16.mxu0 0
    %2347 = vmatpush1.bf16.msra.mxu0 0
    %2348 = vmatprep.subr.bf16.mxu0 0
    %2349 = vmatpush1.bf16.msra.mxu0 0
    %2350 = vmatprep.subr.bf16.mxu0 0
    %2351 = vmatpush1.bf16.msra.mxu0 0
    %2352 = vmatprep.mubr.bf16.mxu0 0
    %2353 = vmatmul.mubr.bf16.gmra.mrb[0].mxu0 %v2315
    %v2354 = vpop.f32.mrb[0].mxu0
    %v2355 = vadd.f32 %v2266, %v2354
    %v2356 = vpop.f32.mrb[0].mxu0
    %v2357 = vpop.f32.mrb[0].mxu0
    %v2358 = vpop.f32.mrb[0].mxu0
    %2359 = vdwg.mxu0
    %v2360 = vmax.f32 %v2355, 0.0
    %v2361 = vpack.c.bf16 %v2360, %v2360
    %v2362 = vld [vmem:[#allocation17] sm:$0xf]
    %v2363 = vld [vmem:[#allocation17 + $0x4] sm:$0xf]
    %v2364 = vld [vmem:[#allocation17 + $0x8] sm:$0xf]
    %v2365 = vld [vmem:[#allocation17 + $0xc] sm:$0xf]
    %v2366 = vld [vmem:[#allocation17 + $0x10] sm:$0xf]
    %v2367 = vld [vmem:[#allocation17 + $0x14] sm:$0xf]
    %v2368 = vld [vmem:[#allocation17 + $0x18] sm:$0xf]
    %v2369 = vld [vmem:[#allocation17 + $0x1c] sm:$0xf]
    %v2370 = vld [vmem:[#allocation17 + $0x20] sm:$0xf]
    %v2371 = vld [vmem:[#allocation17 + $0x24] sm:$0xf]
    %v2372 = vld [vmem:[#allocation17 + $0x28] sm:$0x3]
    %v2373 = vld [vmem:[#allocation19] sm:$0x1]
    %v2375 = vlaneseq
    %v2376 = vshrl.u32 %v2375, 7
    %v2377 = vsub.s32 0, %v2376
    %v2378 = vrot.slane %v2373, %v2377
    %v2391 = vunpack.c.l.b16 %v2362
    %v2392 = vunpack.c.l.b16 %v2363
    %v2393 = vunpack.c.l.b16 %v2364
    %v2394 = vunpack.c.l.b16 %v2365
    %v2395 = vunpack.c.l.b16 %v2366
    %v2396 = vunpack.c.l.b16 %v2367
    %v2397 = vunpack.c.l.b16 %v2368
    %v2398 = vunpack.c.l.b16 %v2369
    %v2399 = vunpack.c.l.b16 %v2370
    %v2400 = vunpack.c.l.b16 %v2371
    %v2401 = vunpack.c.l.b16 %v2372
    %v2402 = vpack.c.b16 %v2392, %v2391
    %v2403 = vpack.c.b16 %v2394, %v2393
    %v2404 = vpack.c.b16 %v2396, %v2395
    %v2405 = vpack.c.b16 %v2398, %v2397
    %v2406 = vpack.c.b16 %v2400, %v2399
    %v2407 = vpack.c.b16 %v2401, %v2401
    %vm2413 = vcmask 687104
    %v2415 = vsel %vm2413, %v2361, 0
    %v2418 = vsel %vm827, %v2407, 0
    %2420 = vmatprep.subr.bf16.mxu0 0
    %2421 = vmatpush1.bf16.msra.mxu0 %v2402
    %2422 = vmatprep.subr.bf16.mxu0 0
    %2423 = vmatpush1.bf16.msra.mxu0 %v2403
    %2424 = vmatprep.subr.bf16.mxu0 0
    %2425 = vmatpush1.bf16.msra.mxu0 %v2404
    %2426 = vmatprep.subr.bf16.mxu0 0
    %2427 = vmatpush1.bf16.msra.mxu0 %v2405
    %2428 = vmatprep.subr.bf16.mxu0 0
    %2429 = vmatpush1.bf16.msra.mxu0 %v2406
    %2430 = vmatprep.subr.bf16.mxu0 0
    %2431 = vmatpush1.bf16.msra.mxu0 %v2418
    %2432 = vmatprep.subr.bf16.mxu0 0
    %2433 = vmatpush1.bf16.msra.mxu0 0
    %2434 = vmatprep.subr.bf16.mxu0 0
    %2435 = vmatpush1.bf16.msra.mxu0 0
    %2436 = vmatprep.subr.bf16.mxu0 0
    %2437 = vmatpush1.bf16.msra.mxu0 0
    %2438 = vmatprep.subr.bf16.mxu0 0
    %2439 = vmatpush1.bf16.msra.mxu0 0
    %2440 = vmatprep.subr.bf16.mxu0 0
    %2441 = vmatpush1.bf16.msra.mxu0 0
    %2442 = vmatprep.subr.bf16.mxu0 0
    %2443 = vmatpush1.bf16.msra.mxu0 0
    %2444 = vmatprep.subr.bf16.mxu0 0
    %2445 = vmatpush1.bf16.msra.mxu0 0
    %2446 = vmatprep.subr.bf16.mxu0 0
    %2447 = vmatpush1.bf16.msra.mxu0 0
    %2448 = vmatprep.subr.bf16.mxu0 0
    %2449 = vmatpush1.bf16.msra.mxu0 0
    %2450 = vmatprep.subr.bf16.mxu0 0
    %2451 = vmatpush1.bf16.msra.mxu0 0
    %2452 = vmatprep.mubr.bf16.mxu0 0
    %2453 = vmatmul.mubr.bf16.gmra.mrb[0].mxu0 %v2415
    %v2454 = vpop.f32.mrb[0].mxu0
    %v2455 = vadd.f32 %v2378, %v2454
    %v2456 = vpop.f32.mrb[0].mxu0
    %v2457 = vpop.f32.mrb[0].mxu0
    %v2458 = vpop.f32.mrb[0].mxu0
    %2459 = vdwg.mxu0
    %vm2460 = vcmask 74752
    %v2461 = vsel %vm2460, %v2455, -inf
    %2462 = vmax.xlane.f32.xlu0 %v2461
    %v2463 = vpop.xlane.xlu0 %2462
    %v2464 = vsub.f32 %v2455, %v2463
    %v2465 = vmul.f32 %v2464, 1.442695
    %v2466 = vpow.pop %v2465
    %v2467 = vsel %vm2460, %v2466, 0.0
    %2468 = vadd.xlane.f32.xlu0 %v2467
    %v2469 = vpop.xlane.xlu0 %2468
    %v2470 = vrcp.pop %v2469
    %v2471 = vmul.f32 %v2466, %v2470
    %2472 = vst.msk [vmem:[#allocation20] sm:$0x3] %vm2460, %v2471
    // Predicated region
    $region90: #{_lambda_.3} parent=1 // pred_check
      _
    $region91: #{_lambda_.3} parent=1 // pred_check_branch
      %2474 = sbr.rel (0) target = $region93
    $region92: #{_lambda_.3} parent=1 // pred_region
      %s2476 = ssub.s32 32, 32
      %2477 = vsyncadd [#allocation4], %s2476
      %s2479 = sshll.u32 [#allocation20], 4
      %s2480 = int_to_ptr.vmem [resolvable:$true] %s2479
      %2482 = dma.vmem_to_hbm [thread:$0]  %s2480, 32, %s11, [#allocation4]
    $region93: #{_lambda_.3} parent=1 // pred_fallthru
      _
    // Predicated region
    $region94: #{_lambda_.3} parent=1 // pred_check
      _
    $region95: #{_lambda_.3} parent=1 // pred_check_branch
      %2484 = sbr.rel (0) target = $region97
    $region96: #{_lambda_.3} parent=1 // pred_region
      %2485 = dma.done [#allocation4], 32
    $region97: #{_lambda_.3} parent=1 // pred_fallthru
      _
    %2486 = vsyncpa [#allocation3], 1
    %2487 = vsyncpa [#allocation6], 1
    %2488 = vsyncpa [#allocation9], 1
    %2489 = vsyncpa [#allocation12], 1
    %2490 = vsyncpa [#allocation15], 1
    %2491 = vsyncpa [#allocation18], 1
    %2492 = vsyncpa [#allocation4], 1

</llo_original>
